<compile_context>
chip_gen: v7x
topology: tpu7x:2x2x1
jax: 0.10.0
libtpu: 0.0.40
codegen_flags: <defaults>
</compile_context>

<pallas_src>
import math

import jax
import jax.numpy as jnp
from jax import lax
from jax.experimental import pallas as pl
from jax.experimental.pallas import tpu as pltpu
import numpy as np


def _round_up(x, m):
    return (x + m - 1) // m * m


# ---------------------------------------------------------------------------
# Kernel: one grid step per LSTM layer. Encoder at l==0, decoder at l==L-1.
# ---------------------------------------------------------------------------
def _rnn_predictor_kernel(x_ref, enc_w_ref, enc_b_ref, wih_ref, b_ref, whh_ref,
                          h0_ref, c0_ref, dec_w_ref, dec_b_ref,
                          dec_ref, hT_ref, cT_ref,
                          act_sc, gx_sc):
    TB = x_ref.shape[0]                 # T * Bp (flattened, 2-D everywhere)
    _, Bp, Hp = h0_ref.shape
    T = TB // Bp
    TQ = gx_sc.shape[0] // Bp           # time-chunk for the hoisted projection

    l = pl.program_id(0)
    n_layers = pl.num_programs(0)

    wih = wih_ref[0]                    # (Hp, 4Hp)  bf16
    whh = whh_ref[0]                    # (Hp, 4Hp)  bf16
    bias = b_ref[0]                     # (1, 4Hp)   f32 (b_ih + b_hh)

    carry = (h0_ref[0], c0_ref[0])      # (Bp, Hp) f32 each

    for t0 in range(0, T, TQ):          # static chunk loop (single chunk if small)
        tc = min(TQ, T - t0)
        rows = tc * Bp
        row0 = t0 * Bp

        # ---- encoder Linear (first layer only), dropout = identity in eval ----
        @pl.when(l == 0)
        def _encode(row0=row0, rows=rows):
            act_sc[pl.ds(row0, rows), :] = (
                jnp.dot(x_ref[pl.ds(row0, rows), :], enc_w_ref[...],
                        preferred_element_type=jnp.float32)
                + enc_b_ref[...])

        # ---- hoisted input projection for this chunk: act @ W_ih + b ----------
        gx_sc[pl.ds(0, rows), :] = (
            jnp.dot(act_sc[pl.ds(row0, rows), :].astype(jnp.bfloat16), wih,
                    preferred_element_type=jnp.float32)
            + bias)

        # ---- time recurrence over this chunk (gate math in f32) ---------------
        def step(t, hc, row0=row0):
            h, c = hc
            gbase = pl.multiple_of(t * Bp, Bp)
            abase = pl.multiple_of(row0 + t * Bp, Bp)
            gates = gx_sc[pl.ds(gbase, Bp), :] + jnp.dot(
                h.astype(jnp.bfloat16), whh, preferred_element_type=jnp.float32)
            i_g = jax.nn.sigmoid(gates[:, 0 * Hp:1 * Hp])   # lane-aligned slices
            f_g = jax.nn.sigmoid(gates[:, 1 * Hp:2 * Hp])
            g_g = jnp.tanh(gates[:, 2 * Hp:3 * Hp])
            o_g = jax.nn.sigmoid(gates[:, 3 * Hp:4 * Hp])
            c_new = f_g * c + i_g * g_g
            h_new = o_g * jnp.tanh(c_new)
            act_sc[pl.ds(abase, Bp), :] = h_new              # next layer's input
            return (h_new, c_new)

        carry = lax.fori_loop(0, tc, step, carry, unroll=min(tc, 8))

        # ---- decoder Linear (last layer only), lane-dense padded output -------
        @pl.when(l == n_layers - 1)
        def _decode(row0=row0, rows=rows):
            dec_ref[pl.ds(row0, rows), :] = (
                jnp.dot(act_sc[pl.ds(row0, rows), :].astype(jnp.bfloat16),
                        dec_w_ref[...], preferred_element_type=jnp.float32)
                + dec_b_ref[...])

    hT_ref[0] = carry[0]
    cT_ref[0] = carry[1]


# ---------------------------------------------------------------------------
# Wrapper: pad (batch -> x8 sublanes, hidden / out -> x128 lanes), launch, slice.
# ---------------------------------------------------------------------------
def rnn_predictor_forward(packed, x, hidden, res_connection=False):
    dims = packed["dims"]
    E, H, Dout, L = dims["E"], dims["H"], dims["Dout"], dims["L"]
    Ep, Hp, Doutp = dims["Ep"], dims["Hp"], dims["Doutp"]
    T, B, Ex = x.shape
    assert Ex == E
    Bp = _round_up(max(B, 1), 8)
    h0, c0 = hidden

    x_p = jnp.zeros((T, Bp, Ep), jnp.float32).at[:, :B, :E].set(x)
    x_p = x_p.reshape(T * Bp, Ep).astype(jnp.bfloat16)
    h0_p = jnp.zeros((L, Bp, Hp), jnp.float32).at[:, :B, :H].set(h0)
    c0_p = jnp.zeros((L, Bp, Hp), jnp.float32).at[:, :B, :H].set(c0)

    # Bound the hoisted-gate scratch to ~4 MiB by chunking over time.
    bytes_per_t = Bp * 4 * Hp * 4
    TQ = max(1, min(T, (4 << 20) // max(bytes_per_t, 1)))

    # Explicit scoped-VMEM budget sized from actual residency (with headroom).
    blk_bytes = (T * Bp * Ep * 2 + Ep * Hp * 2 + Hp * 4                 # x, enc
                 + 2 * Hp * 4 * Hp * 2 + 4 * Hp * 4                     # wih/whh/b
                 + 2 * Bp * Hp * 4 + Hp * Doutp * 2 + Doutp * 4         # h0/c0, dec w/b
                 + T * Bp * Doutp * 4 + 2 * Bp * Hp * 4)                # outputs
    scratch_bytes = T * Bp * Hp * 4 + TQ * Bp * 4 * Hp * 4
    resident = 2 * blk_bytes + scratch_bytes
    try:
        phys = int(pltpu.get_tpu_info().vmem_capacity_bytes)
    except Exception:
        phys = 64 * 1024 * 1024
    vmem_limit = max(16 << 20,
                     int(min(phys - (4 << 20),
                             max(32 << 20, 2 * resident + (4 << 20)))))

    per_layer = lambda l: (l, 0, 0)
    whole2 = lambda l: (0, 0)

    dec_p, hT_p, cT_p = pl.pallas_call(
        _rnn_predictor_kernel,
        grid=(L,),
        out_shape=(
            jax.ShapeDtypeStruct((T * Bp, Doutp), jnp.float32),
            jax.ShapeDtypeStruct((L, Bp, Hp), jnp.float32),
            jax.ShapeDtypeStruct((L, Bp, Hp), jnp.float32),
        ),
        in_specs=[
            pl.BlockSpec((T * Bp, Ep), whole2),          # x (bf16)
            pl.BlockSpec((Ep, Hp), whole2),              # enc_w (bf16)
            pl.BlockSpec((1, Hp), whole2),               # enc_b
            pl.BlockSpec((1, Hp, 4 * Hp), per_layer),    # w_ih (bf16)
            pl.BlockSpec((1, 1, 4 * Hp), per_layer),     # b_ih + b_hh
            pl.BlockSpec((1, Hp, 4 * Hp), per_layer),    # w_hh (bf16)
            pl.BlockSpec((1, Bp, Hp), per_layer),        # h0
            pl.BlockSpec((1, Bp, Hp), per_layer),        # c0
            pl.BlockSpec((Hp, Doutp), whole2),           # dec_w (bf16)
            pl.BlockSpec((1, Doutp), whole2),            # dec_b
        ],
        out_specs=(
            pl.BlockSpec((T * Bp, Doutp), whole2),       # decoded (written @ l==L-1)
            pl.BlockSpec((1, Bp, Hp), per_layer),        # h_T per layer
            pl.BlockSpec((1, Bp, Hp), per_layer),        # c_T per layer
        ),
        scratch_shapes=[
            pltpu.VMEM((T * Bp, Hp), jnp.float32),        # layer activations
            pltpu.VMEM((TQ * Bp, 4 * Hp), jnp.float32),   # hoisted gate chunk
        ],
        compiler_params=pltpu.CompilerParams(
            dimension_semantics=("arbitrary",),
            vmem_limit_bytes=vmem_limit),
    )(x_p, packed["enc_w"], packed["enc_b"], packed["wih"], packed["b"],
      packed["whh"], h0_p, c0_p, packed["dec_w"], packed["dec_b"])

    dec = dec_p.reshape(T, Bp, Doutp)[:, :B, :Dout]
    hT = hT_p[:, :B, :H]
    cT = cT_p[:, :B, :H]

    if res_connection:
        assert Dout == E, "res_connection requires dec_out_size == enc_inp_size"
        dec = dec + x
    return dec, (hT, cT)


# ---------------------------------------------------------------------------
# Parameter init (PyTorch-equivalent, logical sizes, (in, out) layout, f32).
# ---------------------------------------------------------------------------
def init_params(key, enc_inp, rnn_inp, rnn_hid, dec_out, nlayers):
    assert rnn_inp == rnn_hid, "module's forward requires rnn_inp_size == rnn_hid_size"
    keys = jax.random.split(key, 3 + 4 * nlayers)
    initrange = 0.1
    enc_w = jax.random.uniform(keys[0], (rnn_inp, enc_inp), jnp.float32,
                               -initrange, initrange)
    enc_bound = 1.0 / math.sqrt(enc_inp)
    enc_b = jax.random.uniform(keys[1], (1, rnn_inp), jnp.float32,
                               -enc_bound, enc_bound)
    dec_w = jax.random.uniform(keys[2], (dec_out, rnn_hid), jnp.float32,
                               -initrange, initrange)
    params = {
        "enc_w": enc_w.T,                                  # (enc_inp, rnn_inp)
        "enc_b": enc_b,
        "dec_w": dec_w.T,                                  # (rnn_hid, dec_out)
        "dec_b": jnp.zeros((1, dec_out), jnp.float32),     # decoder.bias.fill_(0)
    }
    stdv = 1.0 / math.sqrt(rnn_hid)
    wih, whh, bias = [], [], []
    k = 3
    for _ in range(nlayers):
        w_ih = jax.random.uniform(keys[k], (4 * rnn_hid, rnn_hid),
                                  jnp.float32, -stdv, stdv); k += 1
        w_hh = jax.random.uniform(keys[k], (4 * rnn_hid, rnn_hid),
                                  jnp.float32, -stdv, stdv); k += 1
        b_ih = jax.random.uniform(keys[k], (4 * rnn_hid,), jnp.float32, -stdv, stdv); k += 1
        b_hh = jax.random.uniform(keys[k], (4 * rnn_hid,), jnp.float32, -stdv, stdv); k += 1
        wih.append(w_ih.T)                                 # (H, 4H)
        whh.append(w_hh.T)                                 # (H, 4H)
        bias.append((b_ih + b_hh).reshape(1, 4 * rnn_hid))
    params["wih"] = jnp.stack(wih)     # (L, H, 4H)
    params["whh"] = jnp.stack(whh)     # (L, H, 4H)
    params["b"] = jnp.stack(bias)      # (L, 1, 4H)
    return params


# ---------------------------------------------------------------------------
# Pack params for the kernel: per-gate lane padding (each gate -> Hp=ceil128
# lanes), row padding, bf16 weights (MXU operands), f32 biases.
# ---------------------------------------------------------------------------
def pack_params(params, enc_inp, rnn_hid, dec_out, nlayers):
    E, H, Dout, L = enc_inp, rnn_hid, dec_out, nlayers
    Ep, Hp, Doutp = _round_up(E, 128), _round_up(H, 128), _round_up(Dout, 128)

    def pad2(a, r, c):
        return jnp.pad(a, ((0, r - a.shape[0]), (0, c - a.shape[1])))

    def pad_gates(a):
        # a: (..., 4*H) with gate blocks [i|f|g|o]; pad each gate to Hp lanes
        # so the kernel's gate slices stay 128-lane aligned.
        h = a.shape[-1] // 4
        a = a.reshape(a.shape[:-1] + (4, h))
        a = jnp.pad(a, [(0, 0)] * (a.ndim - 1) + [(0, Hp - h)])
        return a.reshape(a.shape[:-2] + (4 * Hp,))

    wih = jnp.pad(pad_gates(params["wih"]), ((0, 0), (0, Hp - H), (0, 0)))
    whh = jnp.pad(pad_gates(params["whh"]), ((0, 0), (0, Hp - H), (0, 0)))
    b = pad_gates(params["b"])

    return {
        "enc_w": pad2(params["enc_w"], Ep, Hp).astype(jnp.bfloat16),
        "enc_b": pad2(params["enc_b"], 1, Hp),
        "wih": wih.astype(jnp.bfloat16),
        "whh": whh.astype(jnp.bfloat16),
        "b": b,
        "dec_w": pad2(params["dec_w"], Hp, Doutp).astype(jnp.bfloat16),
        "dec_b": pad2(params["dec_b"], 1, Doutp),
        "dims": dict(E=E, H=H, Dout=Dout, L=L, Ep=Ep, Hp=Hp, Doutp=Doutp),
    }


# ---------------------------------------------------------------------------
# Pure-JAX reference (logical params, mirrors the kernel's bf16 MXU operands).
# ---------------------------------------------------------------------------
def _reference_forward(params, x, hidden):
    bf, f32 = jnp.bfloat16, jnp.float32
    T, B, E = x.shape
    L, H, _ = params["whh"].shape
    emb = (jnp.dot(x.reshape(T * B, E).astype(bf), params["enc_w"].astype(bf),
                   preferred_element_type=f32) + params["enc_b"]).reshape(T, B, H)
    h0s, c0s = hidden
    layer_in = emb
    h_fin, c_fin = [], []
    for l in range(L):
        wih = params["wih"][l].astype(bf)
        whh = params["whh"][l].astype(bf)
        b = params["b"][l]
        gx = (jnp.dot(layer_in.reshape(T * B, H).astype(bf), wih,
                      preferred_element_type=f32) + b).reshape(T, B, 4 * H)
        h, c = h0s[l], c0s[l]
        outs = []
        for t in range(T):
            g = gx[t] + jnp.dot(h.astype(bf), whh, preferred_element_type=f32)
            i = jax.nn.sigmoid(g[:, 0 * H:1 * H])
            f = jax.nn.sigmoid(g[:, 1 * H:2 * H])
            gg = jnp.tanh(g[:, 2 * H:3 * H])
            o = jax.nn.sigmoid(g[:, 3 * H:4 * H])
            c = f * c + i * gg
            h = o * jnp.tanh(c)
            outs.append(h)
        layer_in = jnp.stack(outs)
        h_fin.append(h); c_fin.append(c)
    dec = (jnp.dot(layer_in.reshape(T * B, H).astype(bf), params["dec_w"].astype(bf),
                   preferred_element_type=f32) + params["dec_b"])
    return dec.reshape(T, B, -1), (jnp.stack(h_fin), jnp.stack(c_fin))


if __name__ == "__main__":
    T, B = 8, 2
    enc_inp, rnn_hid, dec_out, nlayers = 4, 32, 4, 2

    key = jax.random.PRNGKey(0)
    pkey, xkey = jax.random.split(key)
    params = init_params(pkey, enc_inp, rnn_hid, rnn_hid, dec_out, nlayers)
    packed = pack_params(params, enc_inp, rnn_hid, dec_out, nlayers)

    x = jax.random.normal(xkey, (T, B, enc_inp), jnp.float32)
    hidden = (jnp.zeros((nlayers, B, rnn_hid), jnp.float32),   # init_hidden (LSTM)
              jnp.zeros((nlayers, B, rnn_hid), jnp.float32))

    decoded, (hT, cT) = rnn_predictor_forward(packed, x, hidden)
    jax.block_until_ready((decoded, hT, cT))

    assert decoded.shape == (T, B, dec_out)
    assert hT.shape == (nlayers, B, rnn_hid) and cT.shape == (nlayers, B, rnn_hid)

    ref_dec, (ref_h, ref_c) = _reference_forward(params, x, hidden)
    np.testing.assert_allclose(np.asarray(decoded), np.asarray(ref_dec), rtol=2e-3, atol=2e-3)
    np.testing.assert_allclose(np.asarray(hT), np.asarray(ref_h), rtol=2e-3, atol=2e-3)
    np.testing.assert_allclose(np.asarray(cT), np.asarray(ref_c), rtol=2e-3, atol=2e-3)

    print("KERNEL_OK")
</pallas_src>

<mosaic_0001>
module attributes {stable_mosaic.version = 11 : i64} {
  func.func @_rnn_predictor_kernel(%arg0: i32, %arg1: memref<64x128xbf16, #tpu.memory_space<vmem>>, %arg2: memref<128x128xbf16, #tpu.memory_space<vmem>>, %arg3: memref<1x128xf32, #tpu.memory_space<vmem>>, %arg4: memref<1x128x512xbf16, #tpu.memory_space<vmem>>, %arg5: memref<1x1x512xf32, #tpu.memory_space<vmem>>, %arg6: memref<1x128x512xbf16, #tpu.memory_space<vmem>>, %arg7: memref<1x8x128xf32, #tpu.memory_space<vmem>>, %arg8: memref<1x8x128xf32, #tpu.memory_space<vmem>>, %arg9: memref<128x128xbf16, #tpu.memory_space<vmem>>, %arg10: memref<1x128xf32, #tpu.memory_space<vmem>>, %arg11: memref<64x128xf32, #tpu.memory_space<vmem>>, %arg12: memref<1x8x128xf32, #tpu.memory_space<vmem>>, %arg13: memref<1x8x128xf32, #tpu.memory_space<vmem>>, %arg14: memref<64x128xf32, #tpu.memory_space<vmem>>, %arg15: memref<64x512xf32, #tpu.memory_space<vmem>>) attributes {dimension_semantics = [#tpu.dimension_semantics<arbitrary>], iteration_bounds = array<i64: 2>, scalar_prefetch = 0 : i64, scratch_operands = 2 : i64, tpu.core_type = #tpu.core_type<tc>, window_params = [{pipeline_mode = #tpu.pipeline_mode<synchronous>, transform_indices = @transform_0, window_bounds = array<i64: 64, 128>}, {pipeline_mode = #tpu.pipeline_mode<synchronous>, transform_indices = @transform_1, window_bounds = array<i64: 128, 128>}, {pipeline_mode = #tpu.pipeline_mode<synchronous>, transform_indices = @transform_2, window_bounds = array<i64: 1, 128>}, {transform_indices = @transform_3, window_bounds = array<i64: 1, 128, 512>}, {transform_indices = @transform_4, window_bounds = array<i64: 1, 1, 512>}, {transform_indices = @transform_5, window_bounds = array<i64: 1, 128, 512>}, {transform_indices = @transform_6, window_bounds = array<i64: 1, 8, 128>}, {transform_indices = @transform_7, window_bounds = array<i64: 1, 8, 128>}, {pipeline_mode = #tpu.pipeline_mode<synchronous>, transform_indices = @transform_8, window_bounds = array<i64: 128, 128>}, {pipeline_mode = #tpu.pipeline_mode<synchronous>, transform_indices = @transform_9, window_bounds = array<i64: 1, 128>}, {pipeline_mode = #tpu.pipeline_mode<synchronous>, transform_indices = @transform_10, window_bounds = array<i64: 64, 128>}, {transform_indices = @transform_11, window_bounds = array<i64: 1, 8, 128>}, {transform_indices = @transform_12, window_bounds = array<i64: 1, 8, 128>}]} {
    %c0 = arith.constant 0 : index
    %c0_0 = arith.constant 0 : index
    %c0_1 = arith.constant 0 : index
    %0 = vector.load %arg4[%c0, %c0_0, %c0_1] : memref<1x128x512xbf16, #tpu.memory_space<vmem>>, vector<1x128x512xbf16>
    %1 = vector.shape_cast %0 : vector<1x128x512xbf16> to vector<128x512xbf16>
    %c0_2 = arith.constant 0 : index
    %c0_3 = arith.constant 0 : index
    %c0_4 = arith.constant 0 : index
    %2 = vector.load %arg6[%c0_2, %c0_3, %c0_4] : memref<1x128x512xbf16, #tpu.memory_space<vmem>>, vector<1x128x512xbf16>
    %3 = vector.shape_cast %2 : vector<1x128x512xbf16> to vector<128x512xbf16>
    %c0_5 = arith.constant 0 : index
    %c0_6 = arith.constant 0 : index
    %c0_7 = arith.constant 0 : index
    %4 = vector.load %arg5[%c0_5, %c0_6, %c0_7] : memref<1x1x512xf32, #tpu.memory_space<vmem>>, vector<1x1x512xf32>
    %5 = vector.shape_cast %4 : vector<1x1x512xf32> to vector<1x512xf32>
    %c0_8 = arith.constant 0 : index
    %c0_9 = arith.constant 0 : index
    %c0_10 = arith.constant 0 : index
    %6 = vector.load %arg7[%c0_8, %c0_9, %c0_10] : memref<1x8x128xf32, #tpu.memory_space<vmem>>, vector<1x8x128xf32>
    %7 = vector.shape_cast %6 : vector<1x8x128xf32> to vector<8x128xf32>
    %c0_11 = arith.constant 0 : index
    %c0_12 = arith.constant 0 : index
    %c0_13 = arith.constant 0 : index
    %8 = vector.load %arg8[%c0_11, %c0_12, %c0_13] : memref<1x8x128xf32, #tpu.memory_space<vmem>>, vector<1x8x128xf32>
    %9 = vector.shape_cast %8 : vector<1x8x128xf32> to vector<8x128xf32>
    %c0_i32 = arith.constant 0 : i32
    %10 = arith.cmpi eq, %arg0, %c0_i32 : i32
    %11 = arith.extui %10 : i1 to i32
    %c0_i32_14 = arith.constant 0 : i32
    %12 = arith.cmpi ne, %11, %c0_i32_14 : i32
    scf.if %12 {
      %c0_100 = arith.constant 0 : index
      %c0_101 = arith.constant 0 : index
      %324 = vector.load %arg1[%c0_100, %c0_101] : memref<64x128xbf16, #tpu.memory_space<vmem>>, vector<64x128xbf16>
      %c0_102 = arith.constant 0 : index
      %c0_103 = arith.constant 0 : index
      %325 = vector.load %arg2[%c0_102, %c0_103] : memref<128x128xbf16, #tpu.memory_space<vmem>>, vector<128x128xbf16>
      %cst_104 = arith.constant dense<0.000000e+00> : vector<64x128xf32>
      %326 = tpu.matmul %324, %325, %cst_104 {dimension_numbers = #tpu.dot_dimension_numbers<[1], [0], [0], [1], [0, 0, 1, 1], [], []>} : vector<64x128xbf16>, vector<128x128xbf16>, vector<64x128xf32> -> vector<64x128xf32>
      %c0_105 = arith.constant 0 : index
      %c0_106 = arith.constant 0 : index
      %327 = vector.load %arg3[%c0_105, %c0_106] : memref<1x128xf32, #tpu.memory_space<vmem>>, vector<1x128xf32>
      %328 = vector.broadcast %327 : vector<1x128xf32> to vector<64x128xf32>
      %329 = arith.addf %326, %328 : vector<64x128xf32>
      %c0_107 = arith.constant 0 : index
      %c0_108 = arith.constant 0 : index
      %330 = vector.load %arg14[%c0_107, %c0_108] : memref<64x128xf32, #tpu.memory_space<vmem>>, vector<64x128xf32>
      tpu.vector_store %arg14[%c0_107, %c0_108], %329 {strides = array<i32>} : memref<64x128xf32, #tpu.memory_space<vmem>>, vector<64x128xf32>,
    } else {
    }
    %c0_15 = arith.constant 0 : index
    %c0_16 = arith.constant 0 : index
    %13 = vector.load %arg14[%c0_15, %c0_16] : memref<64x128xf32, #tpu.memory_space<vmem>>, vector<64x128xf32>
    %14 = arith.truncf %13 : vector<64x128xf32> to vector<64x128xbf16>
    %cst = arith.constant dense<0.000000e+00> : vector<64x512xf32>
    %15 = tpu.matmul %14, %1, %cst {dimension_numbers = #tpu.dot_dimension_numbers<[1], [0], [0], [1], [0, 0, 1, 1], [], []>} : vector<64x128xbf16>, vector<128x512xbf16>, vector<64x512xf32> -> vector<64x512xf32>
    %16 = vector.broadcast %5 : vector<1x512xf32> to vector<64x512xf32>
    %17 = arith.addf %15, %16 : vector<64x512xf32>
    %c0_17 = arith.constant 0 : index
    %c0_18 = arith.constant 0 : index
    %18 = vector.load %arg15[%c0_17, %c0_18] : memref<64x512xf32, #tpu.memory_space<vmem>>, vector<64x512xf32>
    tpu.vector_store %arg15[%c0_17, %c0_18], %17 {strides = array<i32>} : memref<64x512xf32, #tpu.memory_space<vmem>>, vector<64x512xf32>,
    %c0_i32_19 = arith.constant 0 : i32
    %c8_i32 = arith.constant 8 : i32
    %19 = arith.muli %c0_i32_19, %c8_i32 : i32
    %20 = tpu.assume_multiple %19, 8 : i32
    %c8_i32_20 = arith.constant 8 : i32
    %21 = arith.muli %c0_i32_19, %c8_i32_20 : i32
    %c0_i32_21 = arith.constant 0 : i32
    %22 = arith.addi %c0_i32_21, %21 : i32
    %23 = tpu.assume_multiple %22, 8 : i32
    %24 = arith.index_cast %20 : i32 to index
    %c0_22 = arith.constant 0 : index
    %25 = vector.load %arg15[%24, %c0_22] : memref<64x512xf32, #tpu.memory_space<vmem>>, vector<8x512xf32>
    %26 = arith.truncf %7 : vector<8x128xf32> to vector<8x128xbf16>
    %cst_23 = arith.constant dense<0.000000e+00> : vector<8x512xf32>
    %27 = tpu.matmul %26, %3, %cst_23 {dimension_numbers = #tpu.dot_dimension_numbers<[1], [0], [0], [1], [0, 0, 1, 1], [], []>} : vector<8x128xbf16>, vector<128x512xbf16>, vector<8x512xf32> -> vector<8x512xf32>
    %28 = arith.addf %25, %27 : vector<8x512xf32>
    %29 = vector.extract_strided_slice %28 {offsets = [0, 0], sizes = [8, 128], strides = [1, 1]} : vector<8x512xf32> to vector<8x128xf32>
    %30 = arith.negf %29 : vector<8x128xf32>
    %31 = math.exp %30 : vector<8x128xf32>
    %cst_24 = arith.constant 1.000000e+00 : f32
    %32 = vector.broadcast %cst_24 : f32 to vector<8x128xf32>
    %33 = arith.addf %32, %31 : vector<8x128xf32>
    %34 = arith.divf %32, %33 : vector<8x128xf32>
    %35 = vector.extract_strided_slice %28 {offsets = [0, 128], sizes = [8, 128], strides = [1, 1]} : vector<8x512xf32> to vector<8x128xf32>
    %36 = arith.negf %35 : vector<8x128xf32>
    %37 = math.exp %36 : vector<8x128xf32>
    %cst_25 = arith.constant 1.000000e+00 : f32
    %38 = vector.broadcast %cst_25 : f32 to vector<8x128xf32>
    %39 = arith.addf %38, %37 : vector<8x128xf32>
    %40 = arith.divf %38, %39 : vector<8x128xf32>
    %41 = vector.extract_strided_slice %28 {offsets = [0, 256], sizes = [8, 128], strides = [1, 1]} : vector<8x512xf32> to vector<8x128xf32>
    %42 = math.tanh %41 : vector<8x128xf32>
    %43 = vector.extract_strided_slice %28 {offsets = [0, 384], sizes = [8, 128], strides = [1, 1]} : vector<8x512xf32> to vector<8x128xf32>
    %44 = arith.negf %43 : vector<8x128xf32>
    %45 = math.exp %44 : vector<8x128xf32>
    %cst_26 = arith.constant 1.000000e+00 : f32
    %46 = vector.broadcast %cst_26 : f32 to vector<8x128xf32>
    %47 = arith.addf %46, %45 : vector<8x128xf32>
    %48 = arith.divf %46, %47 : vector<8x128xf32>
    %49 = arith.mulf %40, %9 : vector<8x128xf32>
    %50 = arith.mulf %34, %42 : vector<8x128xf32>
    %51 = arith.addf %49, %50 : vector<8x128xf32>
    %52 = math.tanh %51 : vector<8x128xf32>
    %53 = arith.mulf %48, %52 : vector<8x128xf32>
    %54 = arith.index_cast %23 : i32 to index
    %c0_27 = arith.constant 0 : index
    %55 = vector.load %arg14[%54, %c0_27] : memref<64x128xf32, #tpu.memory_space<vmem>>, vector<8x128xf32>
    tpu.vector_store %arg14[%54, %c0_27], %53 {strides = array<i32>} : memref<64x128xf32, #tpu.memory_space<vmem>>, vector<8x128xf32>,
    %c1_i32 = arith.constant 1 : i32
    %c8_i32_28 = arith.constant 8 : i32
    %56 = arith.muli %c1_i32, %c8_i32_28 : i32
    %57 = tpu.assume_multiple %56, 8 : i32
    %c8_i32_29 = arith.constant 8 : i32
    %58 = arith.muli %c1_i32, %c8_i32_29 : i32
    %c0_i32_30 = arith.constant 0 : i32
    %59 = arith.addi %c0_i32_30, %58 : i32
    %60 = tpu.assume_multiple %59, 8 : i32
    %61 = arith.index_cast %57 : i32 to index
    %c0_31 = arith.constant 0 : index
    %62 = vector.load %arg15[%61, %c0_31] : memref<64x512xf32, #tpu.memory_space<vmem>>, vector<8x512xf32>
    %63 = arith.truncf %53 : vector<8x128xf32> to vector<8x128xbf16>
    %cst_32 = arith.constant dense<0.000000e+00> : vector<8x512xf32>
    %64 = tpu.matmul %63, %3, %cst_32 {dimension_numbers = #tpu.dot_dimension_numbers<[1], [0], [0], [1], [0, 0, 1, 1], [], []>} : vector<8x128xbf16>, vector<128x512xbf16>, vector<8x512xf32> -> vector<8x512xf32>
    %65 = arith.addf %62, %64 : vector<8x512xf32>
    %66 = vector.extract_strided_slice %65 {offsets = [0, 0], sizes = [8, 128], strides = [1, 1]} : vector<8x512xf32> to vector<8x128xf32>
    %67 = arith.negf %66 : vector<8x128xf32>
    %68 = math.exp %67 : vector<8x128xf32>
    %cst_33 = arith.constant 1.000000e+00 : f32
    %69 = vector.broadcast %cst_33 : f32 to vector<8x128xf32>
    %70 = arith.addf %69, %68 : vector<8x128xf32>
    %71 = arith.divf %69, %70 : vector<8x128xf32>
    %72 = vector.extract_strided_slice %65 {offsets = [0, 128], sizes = [8, 128], strides = [1, 1]} : vector<8x512xf32> to vector<8x128xf32>
    %73 = arith.negf %72 : vector<8x128xf32>
    %74 = math.exp %73 : vector<8x128xf32>
    %cst_34 = arith.constant 1.000000e+00 : f32
    %75 = vector.broadcast %cst_34 : f32 to vector<8x128xf32>
    %76 = arith.addf %75, %74 : vector<8x128xf32>
    %77 = arith.divf %75, %76 : vector<8x128xf32>
    %78 = vector.extract_strided_slice %65 {offsets = [0, 256], sizes = [8, 128], strides = [1, 1]} : vector<8x512xf32> to vector<8x128xf32>
    %79 = math.tanh %78 : vector<8x128xf32>
    %80 = vector.extract_strided_slice %65 {offsets = [0, 384], sizes = [8, 128], strides = [1, 1]} : vector<8x512xf32> to vector<8x128xf32>
    %81 = arith.negf %80 : vector<8x128xf32>
    %82 = math.exp %81 : vector<8x128xf32>
    %cst_35 = arith.constant 1.000000e+00 : f32
    %83 = vector.broadcast %cst_35 : f32 to vector<8x128xf32>
    %84 = arith.addf %83, %82 : vector<8x128xf32>
    %85 = arith.divf %83, %84 : vector<8x128xf32>
    %86 = arith.mulf %77, %51 : vector<8x128xf32>
    %87 = arith.mulf %71, %79 : vector<8x128xf32>
    %88 = arith.addf %86, %87 : vector<8x128xf32>
    %89 = math.tanh %88 : vector<8x128xf32>
    %90 = arith.mulf %85, %89 : vector<8x128xf32>
    %91 = arith.index_cast %60 : i32 to index
    %c0_36 = arith.constant 0 : index
    %92 = vector.load %arg14[%91, %c0_36] : memref<64x128xf32, #tpu.memory_space<vmem>>, vector<8x128xf32>
    tpu.vector_store %arg14[%91, %c0_36], %90 {strides = array<i32>} : memref<64x128xf32, #tpu.memory_space<vmem>>, vector<8x128xf32>,
    %c2_i32 = arith.constant 2 : i32
    %c8_i32_37 = arith.constant 8 : i32
    %93 = arith.muli %c2_i32, %c8_i32_37 : i32
    %94 = tpu.assume_multiple %93, 8 : i32
    %c8_i32_38 = arith.constant 8 : i32
    %95 = arith.muli %c2_i32, %c8_i32_38 : i32
    %c0_i32_39 = arith.constant 0 : i32
    %96 = arith.addi %c0_i32_39, %95 : i32
    %97 = tpu.assume_multiple %96, 8 : i32
    %98 = arith.index_cast %94 : i32 to index
    %c0_40 = arith.constant 0 : index
    %99 = vector.load %arg15[%98, %c0_40] : memref<64x512xf32, #tpu.memory_space<vmem>>, vector<8x512xf32>
    %100 = arith.truncf %90 : vector<8x128xf32> to vector<8x128xbf16>
    %cst_41 = arith.constant dense<0.000000e+00> : vector<8x512xf32>
    %101 = tpu.matmul %100, %3, %cst_41 {dimension_numbers = #tpu.dot_dimension_numbers<[1], [0], [0], [1], [0, 0, 1, 1], [], []>} : vector<8x128xbf16>, vector<128x512xbf16>, vector<8x512xf32> -> vector<8x512xf32>
    %102 = arith.addf %99, %101 : vector<8x512xf32>
    %103 = vector.extract_strided_slice %102 {offsets = [0, 0], sizes = [8, 128], strides = [1, 1]} : vector<8x512xf32> to vector<8x128xf32>
    %104 = arith.negf %103 : vector<8x128xf32>
    %105 = math.exp %104 : vector<8x128xf32>
    %cst_42 = arith.constant 1.000000e+00 : f32
    %106 = vector.broadcast %cst_42 : f32 to vector<8x128xf32>
    %107 = arith.addf %106, %105 : vector<8x128xf32>
    %108 = arith.divf %106, %107 : vector<8x128xf32>
    %109 = vector.extract_strided_slice %102 {offsets = [0, 128], sizes = [8, 128], strides = [1, 1]} : vector<8x512xf32> to vector<8x128xf32>
    %110 = arith.negf %109 : vector<8x128xf32>
    %111 = math.exp %110 : vector<8x128xf32>
    %cst_43 = arith.constant 1.000000e+00 : f32
    %112 = vector.broadcast %cst_43 : f32 to vector<8x128xf32>
    %113 = arith.addf %112, %111 : vector<8x128xf32>
    %114 = arith.divf %112, %113 : vector<8x128xf32>
    %115 = vector.extract_strided_slice %102 {offsets = [0, 256], sizes = [8, 128], strides = [1, 1]} : vector<8x512xf32> to vector<8x128xf32>
    %116 = math.tanh %115 : vector<8x128xf32>
    %117 = vector.extract_strided_slice %102 {offsets = [0, 384], sizes = [8, 128], strides = [1, 1]} : vector<8x512xf32> to vector<8x128xf32>
    %118 = arith.negf %117 : vector<8x128xf32>
    %119 = math.exp %118 : vector<8x128xf32>
    %cst_44 = arith.constant 1.000000e+00 : f32
    %120 = vector.broadcast %cst_44 : f32 to vector<8x128xf32>
    %121 = arith.addf %120, %119 : vector<8x128xf32>
    %122 = arith.divf %120, %121 : vector<8x128xf32>
    %123 = arith.mulf %114, %88 : vector<8x128xf32>
    %124 = arith.mulf %108, %116 : vector<8x128xf32>
    %125 = arith.addf %123, %124 : vector<8x128xf32>
    %126 = math.tanh %125 : vector<8x128xf32>
    %127 = arith.mulf %122, %126 : vector<8x128xf32>
    %128 = arith.index_cast %97 : i32 to index
    %c0_45 = arith.constant 0 : index
    %129 = vector.load %arg14[%128, %c0_45] : memref<64x128xf32, #tpu.memory_space<vmem>>, vector<8x128xf32>
    tpu.vector_store %arg14[%128, %c0_45], %127 {strides = array<i32>} : memref<64x128xf32, #tpu.memory_space<vmem>>, vector<8x128xf32>,
    %c3_i32 = arith.constant 3 : i32
    %c8_i32_46 = arith.constant 8 : i32
    %130 = arith.muli %c3_i32, %c8_i32_46 : i32
    %131 = tpu.assume_multiple %130, 8 : i32
    %c8_i32_47 = arith.constant 8 : i32
    %132 = arith.muli %c3_i32, %c8_i32_47 : i32
    %c0_i32_48 = arith.constant 0 : i32
    %133 = arith.addi %c0_i32_48, %132 : i32
    %134 = tpu.assume_multiple %133, 8 : i32
    %135 = arith.index_cast %131 : i32 to index
    %c0_49 = arith.constant 0 : index
    %136 = vector.load %arg15[%135, %c0_49] : memref<64x512xf32, #tpu.memory_space<vmem>>, vector<8x512xf32>
    %137 = arith.truncf %127 : vector<8x128xf32> to vector<8x128xbf16>
    %cst_50 = arith.constant dense<0.000000e+00> : vector<8x512xf32>
    %138 = tpu.matmul %137, %3, %cst_50 {dimension_numbers = #tpu.dot_dimension_numbers<[1], [0], [0], [1], [0, 0, 1, 1], [], []>} : vector<8x128xbf16>, vector<128x512xbf16>, vector<8x512xf32> -> vector<8x512xf32>
    %139 = arith.addf %136, %138 : vector<8x512xf32>
    %140 = vector.extract_strided_slice %139 {offsets = [0, 0], sizes = [8, 128], strides = [1, 1]} : vector<8x512xf32> to vector<8x128xf32>
    %141 = arith.negf %140 : vector<8x128xf32>
    %142 = math.exp %141 : vector<8x128xf32>
    %cst_51 = arith.constant 1.000000e+00 : f32
    %143 = vector.broadcast %cst_51 : f32 to vector<8x128xf32>
    %144 = arith.addf %143, %142 : vector<8x128xf32>
    %145 = arith.divf %143, %144 : vector<8x128xf32>
    %146 = vector.extract_strided_slice %139 {offsets = [0, 128], sizes = [8, 128], strides = [1, 1]} : vector<8x512xf32> to vector<8x128xf32>
    %147 = arith.negf %146 : vector<8x128xf32>
    %148 = math.exp %147 : vector<8x128xf32>
    %cst_52 = arith.constant 1.000000e+00 : f32
    %149 = vector.broadcast %cst_52 : f32 to vector<8x128xf32>
    %150 = arith.addf %149, %148 : vector<8x128xf32>
    %151 = arith.divf %149, %150 : vector<8x128xf32>
    %152 = vector.extract_strided_slice %139 {offsets = [0, 256], sizes = [8, 128], strides = [1, 1]} : vector<8x512xf32> to vector<8x128xf32>
    %153 = math.tanh %152 : vector<8x128xf32>
    %154 = vector.extract_strided_slice %139 {offsets = [0, 384], sizes = [8, 128], strides = [1, 1]} : vector<8x512xf32> to vector<8x128xf32>
    %155 = arith.negf %154 : vector<8x128xf32>
    %156 = math.exp %155 : vector<8x128xf32>
    %cst_53 = arith.constant 1.000000e+00 : f32
    %157 = vector.broadcast %cst_53 : f32 to vector<8x128xf32>
    %158 = arith.addf %157, %156 : vector<8x128xf32>
    %159 = arith.divf %157, %158 : vector<8x128xf32>
    %160 = arith.mulf %151, %125 : vector<8x128xf32>
    %161 = arith.mulf %145, %153 : vector<8x128xf32>
    %162 = arith.addf %160, %161 : vector<8x128xf32>
    %163 = math.tanh %162 : vector<8x128xf32>
    %164 = arith.mulf %159, %163 : vector<8x128xf32>
    %165 = arith.index_cast %134 : i32 to index
    %c0_54 = arith.constant 0 : index
    %166 = vector.load %arg14[%165, %c0_54] : memref<64x128xf32, #tpu.memory_space<vmem>>, vector<8x128xf32>
    tpu.vector_store %arg14[%165, %c0_54], %164 {strides = array<i32>} : memref<64x128xf32, #tpu.memory_space<vmem>>, vector<8x128xf32>,
    %c4_i32 = arith.constant 4 : i32
    %c8_i32_55 = arith.constant 8 : i32
    %167 = arith.muli %c4_i32, %c8_i32_55 : i32
    %168 = tpu.assume_multiple %167, 8 : i32
    %c8_i32_56 = arith.constant 8 : i32
    %169 = arith.muli %c4_i32, %c8_i32_56 : i32
    %c0_i32_57 = arith.constant 0 : i32
    %170 = arith.addi %c0_i32_57, %169 : i32
    %171 = tpu.assume_multiple %170, 8 : i32
    %172 = arith.index_cast %168 : i32 to index
    %c0_58 = arith.constant 0 : index
    %173 = vector.load %arg15[%172, %c0_58] : memref<64x512xf32, #tpu.memory_space<vmem>>, vector<8x512xf32>
    %174 = arith.truncf %164 : vector<8x128xf32> to vector<8x128xbf16>
    %cst_59 = arith.constant dense<0.000000e+00> : vector<8x512xf32>
    %175 = tpu.matmul %174, %3, %cst_59 {dimension_numbers = #tpu.dot_dimension_numbers<[1], [0], [0], [1], [0, 0, 1, 1], [], []>} : vector<8x128xbf16>, vector<128x512xbf16>, vector<8x512xf32> -> vector<8x512xf32>
    %176 = arith.addf %173, %175 : vector<8x512xf32>
    %177 = vector.extract_strided_slice %176 {offsets = [0, 0], sizes = [8, 128], strides = [1, 1]} : vector<8x512xf32> to vector<8x128xf32>
    %178 = arith.negf %177 : vector<8x128xf32>
    %179 = math.exp %178 : vector<8x128xf32>
    %cst_60 = arith.constant 1.000000e+00 : f32
    %180 = vector.broadcast %cst_60 : f32 to vector<8x128xf32>
    %181 = arith.addf %180, %179 : vector<8x128xf32>
    %182 = arith.divf %180, %181 : vector<8x128xf32>
    %183 = vector.extract_strided_slice %176 {offsets = [0, 128], sizes = [8, 128], strides = [1, 1]} : vector<8x512xf32> to vector<8x128xf32>
    %184 = arith.negf %183 : vector<8x128xf32>
    %185 = math.exp %184 : vector<8x128xf32>
    %cst_61 = arith.constant 1.000000e+00 : f32
    %186 = vector.broadcast %cst_61 : f32 to vector<8x128xf32>
    %187 = arith.addf %186, %185 : vector<8x128xf32>
    %188 = arith.divf %186, %187 : vector<8x128xf32>
    %189 = vector.extract_strided_slice %176 {offsets = [0, 256], sizes = [8, 128], strides = [1, 1]} : vector<8x512xf32> to vector<8x128xf32>
    %190 = math.tanh %189 : vector<8x128xf32>
    %191 = vector.extract_strided_slice %176 {offsets = [0, 384], sizes = [8, 128], strides = [1, 1]} : vector<8x512xf32> to vector<8x128xf32>
    %192 = arith.negf %191 : vector<8x128xf32>
    %193 = math.exp %192 : vector<8x128xf32>
    %cst_62 = arith.constant 1.000000e+00 : f32
    %194 = vector.broadcast %cst_62 : f32 to vector<8x128xf32>
    %195 = arith.addf %194, %193 : vector<8x128xf32>
    %196 = arith.divf %194, %195 : vector<8x128xf32>
    %197 = arith.mulf %188, %162 : vector<8x128xf32>
    %198 = arith.mulf %182, %190 : vector<8x128xf32>
    %199 = arith.addf %197, %198 : vector<8x128xf32>
    %200 = math.tanh %199 : vector<8x128xf32>
    %201 = arith.mulf %196, %200 : vector<8x128xf32>
    %202 = arith.index_cast %171 : i32 to index
    %c0_63 = arith.constant 0 : index
    %203 = vector.load %arg14[%202, %c0_63] : memref<64x128xf32, #tpu.memory_space<vmem>>, vector<8x128xf32>
    tpu.vector_store %arg14[%202, %c0_63], %201 {strides = array<i32>} : memref<64x128xf32, #tpu.memory_space<vmem>>, vector<8x128xf32>,
    %c5_i32 = arith.constant 5 : i32
    %c8_i32_64 = arith.constant 8 : i32
    %204 = arith.muli %c5_i32, %c8_i32_64 : i32
    %205 = tpu.assume_multiple %204, 8 : i32
    %c8_i32_65 = arith.constant 8 : i32
    %206 = arith.muli %c5_i32, %c8_i32_65 : i32
    %c0_i32_66 = arith.constant 0 : i32
    %207 = arith.addi %c0_i32_66, %206 : i32
    %208 = tpu.assume_multiple %207, 8 : i32
    %209 = arith.index_cast %205 : i32 to index
    %c0_67 = arith.constant 0 : index
    %210 = vector.load %arg15[%209, %c0_67] : memref<64x512xf32, #tpu.memory_space<vmem>>, vector<8x512xf32>
    %211 = arith.truncf %201 : vector<8x128xf32> to vector<8x128xbf16>
    %cst_68 = arith.constant dense<0.000000e+00> : vector<8x512xf32>
    %212 = tpu.matmul %211, %3, %cst_68 {dimension_numbers = #tpu.dot_dimension_numbers<[1], [0], [0], [1], [0, 0, 1, 1], [], []>} : vector<8x128xbf16>, vector<128x512xbf16>, vector<8x512xf32> -> vector<8x512xf32>
    %213 = arith.addf %210, %212 : vector<8x512xf32>
    %214 = vector.extract_strided_slice %213 {offsets = [0, 0], sizes = [8, 128], strides = [1, 1]} : vector<8x512xf32> to vector<8x128xf32>
    %215 = arith.negf %214 : vector<8x128xf32>
    %216 = math.exp %215 : vector<8x128xf32>
    %cst_69 = arith.constant 1.000000e+00 : f32
    %217 = vector.broadcast %cst_69 : f32 to vector<8x128xf32>
    %218 = arith.addf %217, %216 : vector<8x128xf32>
    %219 = arith.divf %217, %218 : vector<8x128xf32>
    %220 = vector.extract_strided_slice %213 {offsets = [0, 128], sizes = [8, 128], strides = [1, 1]} : vector<8x512xf32> to vector<8x128xf32>
    %221 = arith.negf %220 : vector<8x128xf32>
    %222 = math.exp %221 : vector<8x128xf32>
    %cst_70 = arith.constant 1.000000e+00 : f32
    %223 = vector.broadcast %cst_70 : f32 to vector<8x128xf32>
    %224 = arith.addf %223, %222 : vector<8x128xf32>
    %225 = arith.divf %223, %224 : vector<8x128xf32>
    %226 = vector.extract_strided_slice %213 {offsets = [0, 256], sizes = [8, 128], strides = [1, 1]} : vector<8x512xf32> to vector<8x128xf32>
    %227 = math.tanh %226 : vector<8x128xf32>
    %228 = vector.extract_strided_slice %213 {offsets = [0, 384], sizes = [8, 128], strides = [1, 1]} : vector<8x512xf32> to vector<8x128xf32>
    %229 = arith.negf %228 : vector<8x128xf32>
    %230 = math.exp %229 : vector<8x128xf32>
    %cst_71 = arith.constant 1.000000e+00 : f32
    %231 = vector.broadcast %cst_71 : f32 to vector<8x128xf32>
    %232 = arith.addf %231, %230 : vector<8x128xf32>
    %233 = arith.divf %231, %232 : vector<8x128xf32>
    %234 = arith.mulf %225, %199 : vector<8x128xf32>
    %235 = arith.mulf %219, %227 : vector<8x128xf32>
    %236 = arith.addf %234, %235 : vector<8x128xf32>
    %237 = math.tanh %236 : vector<8x128xf32>
    %238 = arith.mulf %233, %237 : vector<8x128xf32>
    %239 = arith.index_cast %208 : i32 to index
    %c0_72 = arith.constant 0 : index
    %240 = vector.load %arg14[%239, %c0_72] : memref<64x128xf32, #tpu.memory_space<vmem>>, vector<8x128xf32>
    tpu.vector_store %arg14[%239, %c0_72], %238 {strides = array<i32>} : memref<64x128xf32, #tpu.memory_space<vmem>>, vector<8x128xf32>,
    %c6_i32 = arith.constant 6 : i32
    %c8_i32_73 = arith.constant 8 : i32
    %241 = arith.muli %c6_i32, %c8_i32_73 : i32
    %242 = tpu.assume_multiple %241, 8 : i32
    %c8_i32_74 = arith.constant 8 : i32
    %243 = arith.muli %c6_i32, %c8_i32_74 : i32
    %c0_i32_75 = arith.constant 0 : i32
    %244 = arith.addi %c0_i32_75, %243 : i32
    %245 = tpu.assume_multiple %244, 8 : i32
    %246 = arith.index_cast %242 : i32 to index
    %c0_76 = arith.constant 0 : index
    %247 = vector.load %arg15[%246, %c0_76] : memref<64x512xf32, #tpu.memory_space<vmem>>, vector<8x512xf32>
    %248 = arith.truncf %238 : vector<8x128xf32> to vector<8x128xbf16>
    %cst_77 = arith.constant dense<0.000000e+00> : vector<8x512xf32>
    %249 = tpu.matmul %248, %3, %cst_77 {dimension_numbers = #tpu.dot_dimension_numbers<[1], [0], [0], [1], [0, 0, 1, 1], [], []>} : vector<8x128xbf16>, vector<128x512xbf16>, vector<8x512xf32> -> vector<8x512xf32>
    %250 = arith.addf %247, %249 : vector<8x512xf32>
    %251 = vector.extract_strided_slice %250 {offsets = [0, 0], sizes = [8, 128], strides = [1, 1]} : vector<8x512xf32> to vector<8x128xf32>
    %252 = arith.negf %251 : vector<8x128xf32>
    %253 = math.exp %252 : vector<8x128xf32>
    %cst_78 = arith.constant 1.000000e+00 : f32
    %254 = vector.broadcast %cst_78 : f32 to vector<8x128xf32>
    %255 = arith.addf %254, %253 : vector<8x128xf32>
    %256 = arith.divf %254, %255 : vector<8x128xf32>
    %257 = vector.extract_strided_slice %250 {offsets = [0, 128], sizes = [8, 128], strides = [1, 1]} : vector<8x512xf32> to vector<8x128xf32>
    %258 = arith.negf %257 : vector<8x128xf32>
    %259 = math.exp %258 : vector<8x128xf32>
    %cst_79 = arith.constant 1.000000e+00 : f32
    %260 = vector.broadcast %cst_79 : f32 to vector<8x128xf32>
    %261 = arith.addf %260, %259 : vector<8x128xf32>
    %262 = arith.divf %260, %261 : vector<8x128xf32>
    %263 = vector.extract_strided_slice %250 {offsets = [0, 256], sizes = [8, 128], strides = [1, 1]} : vector<8x512xf32> to vector<8x128xf32>
    %264 = math.tanh %263 : vector<8x128xf32>
    %265 = vector.extract_strided_slice %250 {offsets = [0, 384], sizes = [8, 128], strides = [1, 1]} : vector<8x512xf32> to vector<8x128xf32>
    %266 = arith.negf %265 : vector<8x128xf32>
    %267 = math.exp %266 : vector<8x128xf32>
    %cst_80 = arith.constant 1.000000e+00 : f32
    %268 = vector.broadcast %cst_80 : f32 to vector<8x128xf32>
    %269 = arith.addf %268, %267 : vector<8x128xf32>
    %270 = arith.divf %268, %269 : vector<8x128xf32>
    %271 = arith.mulf %262, %236 : vector<8x128xf32>
    %272 = arith.mulf %256, %264 : vector<8x128xf32>
    %273 = arith.addf %271, %272 : vector<8x128xf32>
    %274 = math.tanh %273 : vector<8x128xf32>
    %275 = arith.mulf %270, %274 : vector<8x128xf32>
    %276 = arith.index_cast %245 : i32 to index
    %c0_81 = arith.constant 0 : index
    %277 = vector.load %arg14[%276, %c0_81] : memref<64x128xf32, #tpu.memory_space<vmem>>, vector<8x128xf32>
    tpu.vector_store %arg14[%276, %c0_81], %275 {strides = array<i32>} : memref<64x128xf32, #tpu.memory_space<vmem>>, vector<8x128xf32>,
    %c7_i32 = arith.constant 7 : i32
    %c8_i32_82 = arith.constant 8 : i32
    %278 = arith.muli %c7_i32, %c8_i32_82 : i32
    %279 = tpu.assume_multiple %278, 8 : i32
    %c8_i32_83 = arith.constant 8 : i32
    %280 = arith.muli %c7_i32, %c8_i32_83 : i32
    %c0_i32_84 = arith.constant 0 : i32
    %281 = arith.addi %c0_i32_84, %280 : i32
    %282 = tpu.assume_multiple %281, 8 : i32
    %283 = arith.index_cast %279 : i32 to index
    %c0_85 = arith.constant 0 : index
    %284 = vector.load %arg15[%283, %c0_85] : memref<64x512xf32, #tpu.memory_space<vmem>>, vector<8x512xf32>
    %285 = arith.truncf %275 : vector<8x128xf32> to vector<8x128xbf16>
    %cst_86 = arith.constant dense<0.000000e+00> : vector<8x512xf32>
    %286 = tpu.matmul %285, %3, %cst_86 {dimension_numbers = #tpu.dot_dimension_numbers<[1], [0], [0], [1], [0, 0, 1, 1], [], []>} : vector<8x128xbf16>, vector<128x512xbf16>, vector<8x512xf32> -> vector<8x512xf32>
    %287 = arith.addf %284, %286 : vector<8x512xf32>
    %288 = vector.extract_strided_slice %287 {offsets = [0, 0], sizes = [8, 128], strides = [1, 1]} : vector<8x512xf32> to vector<8x128xf32>
    %289 = arith.negf %288 : vector<8x128xf32>
    %290 = math.exp %289 : vector<8x128xf32>
    %cst_87 = arith.constant 1.000000e+00 : f32
    %291 = vector.broadcast %cst_87 : f32 to vector<8x128xf32>
    %292 = arith.addf %291, %290 : vector<8x128xf32>
    %293 = arith.divf %291, %292 : vector<8x128xf32>
    %294 = vector.extract_strided_slice %287 {offsets = [0, 128], sizes = [8, 128], strides = [1, 1]} : vector<8x512xf32> to vector<8x128xf32>
    %295 = arith.negf %294 : vector<8x128xf32>
    %296 = math.exp %295 : vector<8x128xf32>
    %cst_88 = arith.constant 1.000000e+00 : f32
    %297 = vector.broadcast %cst_88 : f32 to vector<8x128xf32>
    %298 = arith.addf %297, %296 : vector<8x128xf32>
    %299 = arith.divf %297, %298 : vector<8x128xf32>
    %300 = vector.extract_strided_slice %287 {offsets = [0, 256], sizes = [8, 128], strides = [1, 1]} : vector<8x512xf32> to vector<8x128xf32>
    %301 = math.tanh %300 : vector<8x128xf32>
    %302 = vector.extract_strided_slice %287 {offsets = [0, 384], sizes = [8, 128], strides = [1, 1]} : vector<8x512xf32> to vector<8x128xf32>
    %303 = arith.negf %302 : vector<8x128xf32>
    %304 = math.exp %303 : vector<8x128xf32>
    %cst_89 = arith.constant 1.000000e+00 : f32
    %305 = vector.broadcast %cst_89 : f32 to vector<8x128xf32>
    %306 = arith.addf %305, %304 : vector<8x128xf32>
    %307 = arith.divf %305, %306 : vector<8x128xf32>
    %308 = arith.mulf %299, %273 : vector<8x128xf32>
    %309 = arith.mulf %293, %301 : vector<8x128xf32>
    %310 = arith.addf %308, %309 : vector<8x128xf32>
    %311 = math.tanh %310 : vector<8x128xf32>
    %312 = arith.mulf %307, %311 : vector<8x128xf32>
    %313 = arith.index_cast %282 : i32 to index
    %c0_90 = arith.constant 0 : index
    %314 = vector.load %arg14[%313, %c0_90] : memref<64x128xf32, #tpu.memory_space<vmem>>, vector<8x128xf32>
    tpu.vector_store %arg14[%313, %c0_90], %312 {strides = array<i32>} : memref<64x128xf32, #tpu.memory_space<vmem>>, vector<8x128xf32>,
    %c8_i32_91 = arith.constant 8 : i32
    %c1_i32_92 = arith.constant 1 : i32
    %315 = arith.cmpi eq, %arg0, %c1_i32_92 : i32
    %316 = arith.extui %315 : i1 to i32
    %c0_i32_93 = arith.constant 0 : i32
    %317 = arith.cmpi ne, %316, %c0_i32_93 : i32
    scf.if %317 {
      %c0_100 = arith.constant 0 : index
      %c0_101 = arith.constant 0 : index
      %324 = vector.load %arg14[%c0_100, %c0_101] : memref<64x128xf32, #tpu.memory_space<vmem>>, vector<64x128xf32>
      %325 = arith.truncf %324 : vector<64x128xf32> to vector<64x128xbf16>
      %c0_102 = arith.constant 0 : index
      %c0_103 = arith.constant 0 : index
      %326 = vector.load %arg9[%c0_102, %c0_103] : memref<128x128xbf16, #tpu.memory_space<vmem>>, vector<128x128xbf16>
      %cst_104 = arith.constant dense<0.000000e+00> : vector<64x128xf32>
      %327 = tpu.matmul %325, %326, %cst_104 {dimension_numbers = #tpu.dot_dimension_numbers<[1], [0], [0], [1], [0, 0, 1, 1], [], []>} : vector<64x128xbf16>, vector<128x128xbf16>, vector<64x128xf32> -> vector<64x128xf32>
      %c0_105 = arith.constant 0 : index
      %c0_106 = arith.constant 0 : index
      %328 = vector.load %arg10[%c0_105, %c0_106] : memref<1x128xf32, #tpu.memory_space<vmem>>, vector<1x128xf32>
      %329 = vector.broadcast %328 : vector<1x128xf32> to vector<64x128xf32>
      %330 = arith.addf %327, %329 : vector<64x128xf32>
      %c0_107 = arith.constant 0 : index
      %c0_108 = arith.constant 0 : index
      %331 = vector.load %arg11[%c0_107, %c0_108] : memref<64x128xf32, #tpu.memory_space<vmem>>, vector<64x128xf32>
      tpu.vector_store %arg11[%c0_107, %c0_108], %330 {strides = array<i32>} : memref<64x128xf32, #tpu.memory_space<vmem>>, vector<64x128xf32>,
    } else {
    }
    %c0_94 = arith.constant 0 : index
    %c0_95 = arith.constant 0 : index
    %c0_96 = arith.constant 0 : index
    %318 = vector.load %arg12[%c0_94, %c0_95, %c0_96] : memref<1x8x128xf32, #tpu.memory_space<vmem>>, vector<1x8x128xf32>
    %319 = vector.shape_cast %318 : vector<1x8x128xf32> to vector<8x128xf32>
    %320 = vector.shape_cast %312 : vector<8x128xf32> to vector<1x8x128xf32>
    tpu.vector_store %arg12[%c0_94, %c0_95, %c0_96], %320 {strides = array<i32>} : memref<1x8x128xf32, #tpu.memory_space<vmem>>, vector<1x8x128xf32>,
    %c0_97 = arith.constant 0 : index
    %c0_98 = arith.constant 0 : index
    %c0_99 = arith.constant 0 : index
    %321 = vector.load %arg13[%c0_97, %c0_98, %c0_99] : memref<1x8x128xf32, #tpu.memory_space<vmem>>, vector<1x8x128xf32>
    %322 = vector.shape_cast %321 : vector<1x8x128xf32> to vector<8x128xf32>
    %323 = vector.shape_cast %310 : vector<8x128xf32> to vector<1x8x128xf32>
    tpu.vector_store %arg13[%c0_97, %c0_98, %c0_99], %323 {strides = array<i32>} : memref<1x8x128xf32, #tpu.memory_space<vmem>>, vector<1x8x128xf32>,
    return
  }
  func.func @transform_0(%arg0: i32) -> (i32, i32) {
    %c0_i32 = arith.constant 0 : i32
    %c0_i32_0 = arith.constant 0 : i32
    %c0_i32_1 = arith.constant 0 : i32
    return %c0_i32, %c0_i32_0 : i32, i32
  }
  func.func @transform_1(%arg0: i32) -> (i32, i32) {
    %c0_i32 = arith.constant 0 : i32
    %c0_i32_0 = arith.constant 0 : i32
    %c0_i32_1 = arith.constant 0 : i32
    return %c0_i32, %c0_i32_0 : i32, i32
  }
  func.func @transform_2(%arg0: i32) -> (i32, i32) {
    %c0_i32 = arith.constant 0 : i32
    %c0_i32_0 = arith.constant 0 : i32
    %c0_i32_1 = arith.constant 0 : i32
    return %c0_i32, %c0_i32_0 : i32, i32
  }
  func.func @transform_3(%arg0: i32) -> (i32, i32, i32) {
    %c0_i32 = arith.constant 0 : i32
    %c0_i32_0 = arith.constant 0 : i32
    %c0_i32_1 = arith.constant 0 : i32
    return %arg0, %c0_i32, %c0_i32_0 : i32, i32, i32
  }
  func.func @transform_4(%arg0: i32) -> (i32, i32, i32) {
    %c0_i32 = arith.constant 0 : i32
    %c0_i32_0 = arith.constant 0 : i32
    %c0_i32_1 = arith.constant 0 : i32
    return %arg0, %c0_i32, %c0_i32_0 : i32, i32, i32
  }
  func.func @transform_5(%arg0: i32) -> (i32, i32, i32) {
    %c0_i32 = arith.constant 0 : i32
    %c0_i32_0 = arith.constant 0 : i32
    %c0_i32_1 = arith.constant 0 : i32
    return %arg0, %c0_i32, %c0_i32_0 : i32, i32, i32
  }
  func.func @transform_6(%arg0: i32) -> (i32, i32, i32) {
    %c0_i32 = arith.constant 0 : i32
    %c0_i32_0 = arith.constant 0 : i32
    %c0_i32_1 = arith.constant 0 : i32
    return %arg0, %c0_i32, %c0_i32_0 : i32, i32, i32
  }
  func.func @transform_7(%arg0: i32) -> (i32, i32, i32) {
    %c0_i32 = arith.constant 0 : i32
    %c0_i32_0 = arith.constant 0 : i32
    %c0_i32_1 = arith.constant 0 : i32
    return %arg0, %c0_i32, %c0_i32_0 : i32, i32, i32
  }
  func.func @transform_8(%arg0: i32) -> (i32, i32) {
    %c0_i32 = arith.constant 0 : i32
    %c0_i32_0 = arith.constant 0 : i32
    %c0_i32_1 = arith.constant 0 : i32
    return %c0_i32, %c0_i32_0 : i32, i32
  }
  func.func @transform_9(%arg0: i32) -> (i32, i32) {
    %c0_i32 = arith.constant 0 : i32
    %c0_i32_0 = arith.constant 0 : i32
    %c0_i32_1 = arith.constant 0 : i32
    return %c0_i32, %c0_i32_0 : i32, i32
  }
  func.func @transform_10(%arg0: i32) -> (i32, i32) {
    %c0_i32 = arith.constant 0 : i32
    %c0_i32_0 = arith.constant 0 : i32
    %c0_i32_1 = arith.constant 0 : i32
    return %c0_i32, %c0_i32_0 : i32, i32
  }
  func.func @transform_11(%arg0: i32) -> (i32, i32, i32) {
    %c0_i32 = arith.constant 0 : i32
    %c0_i32_0 = arith.constant 0 : i32
    %c0_i32_1 = arith.constant 0 : i32
    return %arg0, %c0_i32, %c0_i32_0 : i32, i32, i32
  }
  func.func @transform_12(%arg0: i32) -> (i32, i32, i32) {
    %c0_i32 = arith.constant 0 : i32
    %c0_i32_0 = arith.constant 0 : i32
    %c0_i32_1 = arith.constant 0 : i32
    return %arg0, %c0_i32, %c0_i32_0 : i32, i32, i32
  }
}

</mosaic_0001>

<llo_original>
// kernel: tpu_custom_call.1
$region0: #{tpu_custom_call.1}
  #allocation0 [shape = 'u32[]', space=smem, size = 0x4, offset = 0x4, fixed_abs, tag = 'smem constant byte address 0x4 - core index']
  #allocation1 [shape = 'u32[144,128]{1,0:T(1,128)}', space=vmem, size = 0x12000, scoped, tag = 'internal scratch']
  #allocation2 [shape = 'f32[64,128]{1,0:T(8,128)}', space=vmem, size = 0x8000, scoped, tag = 'scratch operand']
  #allocation3 [shape = 'f32[64,512]{1,0:T(8,128)}', space=vmem, size = 0x20000, scoped, tag = 'scratch operand']
  %s0 = inlined_call_operand.hbm [shape: bf16[64,128], index: 0, kind: input, shape index: {}]
  %s1 = inlined_call_operand.hbm [shape: bf16[128,128], index: 1, kind: input, shape index: {}]
  %s2 = inlined_call_operand.vmem [shape: f32[1,128], index: 2, kind: input, shape index: {}]
  %s3 = inlined_call_operand.hbm [shape: bf16[2,128,512], index: 3, kind: input, shape index: {}]
  %s4 = inlined_call_operand.hbm [shape: f32[2,1,512], index: 4, kind: input, shape index: {}]
  %s5 = inlined_call_operand.hbm [shape: bf16[2,128,512], index: 5, kind: input, shape index: {}]
  %s6 = inlined_call_operand.vmem [shape: f32[2,8,128], index: 6, kind: input, shape index: {}]
  %s7 = inlined_call_operand.hbm [shape: f32[2,8,128], index: 7, kind: input, shape index: {}]
  %s8 = inlined_call_operand.hbm [shape: bf16[128,128], index: 8, kind: input, shape index: {}]
  %s9 = inlined_call_operand.vmem [shape: f32[1,128], index: 9, kind: input, shape index: {}]
  %s10 = inlined_call_operand.hbm [shape: f32[64,128], index: 10, kind: output, shape index: {0}]
  %s11 = inlined_call_operand.hbm [shape: f32[2,8,128], index: 11, kind: output, shape index: {1}]
  %s12 = inlined_call_operand.hbm [shape: f32[2,8,128], index: 12, kind: output, shape index: {2}]
  %13 = xla_tuple %s10, %s11, %s12
  %s14 = sld [smem:[#allocation0]]
  $region125: #{tpu_custom_call.1} parent=0
    _
  %s16 = ssub.s32 1, %s14
  %s17 = scalar_select 0, %s16, %s14
  $region1: #{tpu_custom_call.1} parent=0
    #allocation4 [shape = 'u8[16384]{0}', space=vmem, size = 0x4000, scoped, tag = 'input window, operand 0, single buffered']
    #allocation5 [shape = 's32[2]{0}', space=sflag, size = 0x8, scoped, tag = 'scoped memory for tpu_custom_call.1']
    #allocation6 [shape = 's32[2]{0}', space=sflag, size = 0x8, scoped, tag = 'scoped memory for tpu_custom_call.1']
    #allocation7 [shape = 'u8[32768]{0}', space=vmem, size = 0x8000, scoped, tag = 'input window, operand 1, single buffered']
    #allocation8 [shape = 's32[1]{0}', space=sflag, size = 0x4, scoped, tag = 'scoped memory for tpu_custom_call.1']
    #allocation9 [shape = 'u8[262144]{0}', space=vmem, size = 0x40000, scoped, tag = 'input window, operand 3']
    #allocation10 [shape = 'u8[4096]{0}', space=vmem, size = 0x1000, scoped, tag = 'input window, operand 4']
    #allocation11 [shape = 'u8[262144]{0}', space=vmem, size = 0x40000, scoped, tag = 'input window, operand 5']
    #allocation12 [shape = 'u8[8192]{0}', space=vmem, size = 0x2000, scoped, tag = 'input window, operand 7']
    #allocation13 [shape = 'u8[32768]{0}', space=vmem, size = 0x8000, scoped, tag = 'input window, operand 8, single buffered']
    #allocation14 [shape = 'u8[32768]{0}', space=vmem, size = 0x8000, scoped, tag = 'output window, operand 0, single buffered']
    #allocation15 [shape = 'u8[8192]{0}', space=vmem, size = 0x2000, scoped, tag = 'output window, operand 1']
    #allocation16 [shape = 's32[2]{0}', space=sflag, size = 0x8, scoped, tag = 'scoped memory for tpu_custom_call.1']
    #allocation17 [shape = 'u8[8192]{0}', space=vmem, size = 0x2000, scoped, tag = 'output window, operand 2']
    %18 = vsyncpa [#allocation5], 0
    %19 = vsyncpa [#allocation8], 0
    %20 = vsyncpa [#allocation6], 0
    %21 = vsyncpa [#allocation16], 0
    %s22 = scalar_lea.sflag [#allocation16], 1
    %23 = vsyncpa %s22, 0
    loop: start=0, step=1, limit=4
    $region2: #{tpu_custom_call.1} parent=1 // loop_pre_header
      _
    $region3: #{tpu_custom_call.1} parent=1 // loop_header
      %s25 = sphi 0, %s29
      %p26 = scmp.ge.s32.totalorder %s25, 4
      %s33 = sphi 0, %s33
      %s35 = sphi 0, %s33
      %s36 = sphi 0, %s35
      %s50 = sphi 0, %s36
      %s54 = sphi 0, %s54
      %s56 = sphi 0, %s54
      %s57 = sphi 0, %s56
      %s71 = sphi 0, %s57
      %s75 = sphi 0, %s75
      %s77 = sphi 0, %s75
      %s78 = sphi 0, %s77
      %s92 = sphi 0, %s78
      %s98 = sphi 0, %s100
      %s101 = sphi 0, %s98
      %s102 = sphi 0, %s101
      %s118 = sphi 0, %s102
      %s124 = sphi 0, %s126
      %s127 = sphi 0, %s124
      %s128 = sphi 0, %s127
      %s144 = sphi 0, %s128
      %s150 = sphi 0, %s152
      %s153 = sphi 0, %s150
      %s154 = sphi 0, %s153
      %s170 = sphi 0, %s154
      %s176 = sphi 0, %s178
      %s179 = sphi 0, %s176
      %s180 = sphi 0, %s179
      %s196 = sphi 0, %s180
      %s202 = sphi 0, %s204
      %s205 = sphi 0, %s202
      %s206 = sphi 0, %s205
      %s222 = sphi 0, %s206
      %s226 = sphi 0, %s226
      %s228 = sphi 0, %s226
      %s229 = sphi 0, %s228
      %s243 = sphi 0, %s229
      %s247 = sphi 0, %s247
      %s249 = sphi 0, %s247
      %s250 = sphi 0, %s249
      %s264 = sphi 0, %s250
      %s268 = sphi 0, %s268
      %s270 = sphi 0, %s268
      %s271 = sphi 0, %s270
      %s285 = sphi 0, %s271
      %s291 = sphi 0, %s293
      %s294 = sphi 0, %s291
      %s295 = sphi 0, %s294
      %s311 = sphi 0, %s295
      %s317 = sphi 0, %s319
      %s320 = sphi 0, %s317
      %s321 = sphi 0, %s320
      %s337 = sphi 0, %s321
    $region4: #{tpu_custom_call.1} parent=1 // loop_header_branch
      %28 = sbr.rel (%p26) target = $region8
    $region5: #{tpu_custom_call.1} parent=1 // loop_body
      %s30 = ssub.s32 %s25, 1
      %s31 = ssub.s32 %s25, 2
      %s32 = sadd.s32 %s25, 1
      %s34 = sadd.s32 %s33, 1
      %p37 = scmp.eq.s32.totalorder %s25, 1
      %p38 = scmp.ne.s32.totalorder %s33, %s35
      %p39 = scmp.eq.s32.totalorder %s25, 0
      %p40 = por %p38, %p39
      %p41 = scmp.ne.s32.totalorder %s33, %s35
      %p42 = scmp.eq.s32.totalorder %s30, 1
      %p43 = por %p41, %p42
      %p44 = scmp.ne.s32.totalorder %s35, %s36
      %p45 = scmp.eq.s32.totalorder %s30, 0
      %p46 = por %p44, %p45
      %p47 = scmp.ne.s32.totalorder %s35, %s36
      %p48 = scmp.eq.s32.totalorder %s31, 1
      %p49 = por %p47, %p48
      %p51 = scmp.ne.s32.totalorder %s36, %s50
      %p52 = scmp.eq.s32.totalorder %s31, 0
      %p53 = por %p51, %p52
      %s55 = sadd.s32 %s54, 1
      %p58 = scmp.eq.s32.totalorder %s25, 1
      %p59 = scmp.ne.s32.totalorder %s54, %s56
      %p60 = scmp.eq.s32.totalorder %s25, 0
      %p61 = por %p59, %p60
      %p62 = scmp.ne.s32.totalorder %s54, %s56
      %p63 = scmp.eq.s32.totalorder %s30, 1
      %p64 = por %p62, %p63
      %p65 = scmp.ne.s32.totalorder %s56, %s57
      %p66 = scmp.eq.s32.totalorder %s30, 0
      %p67 = por %p65, %p66
      %p68 = scmp.ne.s32.totalorder %s56, %s57
      %p69 = scmp.eq.s32.totalorder %s31, 1
      %p70 = por %p68, %p69
      %p72 = scmp.ne.s32.totalorder %s57, %s71
      %p73 = scmp.eq.s32.totalorder %s31, 0
      %p74 = por %p72, %p73
      %s76 = sadd.s32 %s75, 1
      %p79 = scmp.eq.s32.totalorder %s25, 1
      %p80 = scmp.ne.s32.totalorder %s75, %s77
      %p81 = scmp.eq.s32.totalorder %s25, 0
      %p82 = por %p80, %p81
      %p83 = scmp.ne.s32.totalorder %s75, %s77
      %p84 = scmp.eq.s32.totalorder %s30, 1
      %p85 = por %p83, %p84
      %p86 = scmp.ne.s32.totalorder %s77, %s78
      %p87 = scmp.eq.s32.totalorder %s30, 0
      %p88 = por %p86, %p87
      %p89 = scmp.ne.s32.totalorder %s77, %s78
      %p90 = scmp.eq.s32.totalorder %s31, 1
      %p91 = por %p89, %p90
      %p93 = scmp.ne.s32.totalorder %s78, %s92
      %p94 = scmp.eq.s32.totalorder %s31, 0
      %p95 = por %p93, %p94
      %s96 = ssub.s32 %s25, %s32
      %p97 = scmp.eq.s32.totalorder %s96, 0
      %s99 = sadd.s32 %s98, 1
      %s100 = scalar_select %p97, %s98, %s99
      %p103 = pneg %p97
      %p104 = scmp.eq.s32.totalorder %s25, 1
      %p105 = por %p103, %p104
      %p106 = scmp.ne.s32.totalorder %s98, %s101
      %p107 = scmp.eq.s32.totalorder %s25, 0
      %p108 = por %p106, %p107
      %p109 = scmp.ne.s32.totalorder %s98, %s101
      %p110 = scmp.eq.s32.totalorder %s30, 1
      %p111 = por %p109, %p110
      %p112 = scmp.ne.s32.totalorder %s101, %s102
      %p113 = scmp.eq.s32.totalorder %s30, 0
      %p114 = por %p112, %p113
      %p115 = scmp.ne.s32.totalorder %s101, %s102
      %p116 = scmp.eq.s32.totalorder %s31, 1
      %p117 = por %p115, %p116
      %p119 = scmp.ne.s32.totalorder %s102, %s118
      %p120 = scmp.eq.s32.totalorder %s31, 0
      %p121 = por %p119, %p120
      %s122 = ssub.s32 %s25, %s32
      %p123 = scmp.eq.s32.totalorder %s122, 0
      %s125 = sadd.s32 %s124, 1
      %s126 = scalar_select %p123, %s124, %s125
      %p129 = pneg %p123
      %p130 = scmp.eq.s32.totalorder %s25, 1
      %p131 = por %p129, %p130
      %p132 = scmp.ne.s32.totalorder %s124, %s127
      %p133 = scmp.eq.s32.totalorder %s25, 0
      %p134 = por %p132, %p133
      %p135 = scmp.ne.s32.totalorder %s124, %s127
      %p136 = scmp.eq.s32.totalorder %s30, 1
      %p137 = por %p135, %p136
      %p138 = scmp.ne.s32.totalorder %s127, %s128
      %p139 = scmp.eq.s32.totalorder %s30, 0
      %p140 = por %p138, %p139
      %p141 = scmp.ne.s32.totalorder %s127, %s128
      %p142 = scmp.eq.s32.totalorder %s31, 1
      %p143 = por %p141, %p142
      %p145 = scmp.ne.s32.totalorder %s128, %s144
      %p146 = scmp.eq.s32.totalorder %s31, 0
      %p147 = por %p145, %p146
      %s148 = ssub.s32 %s25, %s32
      %p149 = scmp.eq.s32.totalorder %s148, 0
      %s151 = sadd.s32 %s150, 1
      %s152 = scalar_select %p149, %s150, %s151
      %p155 = pneg %p149
      %p156 = scmp.eq.s32.totalorder %s25, 1
      %p157 = por %p155, %p156
      %p158 = scmp.ne.s32.totalorder %s150, %s153
      %p159 = scmp.eq.s32.totalorder %s25, 0
      %p160 = por %p158, %p159
      %p161 = scmp.ne.s32.totalorder %s150, %s153
      %p162 = scmp.eq.s32.totalorder %s30, 1
      %p163 = por %p161, %p162
      %p164 = scmp.ne.s32.totalorder %s153, %s154
      %p165 = scmp.eq.s32.totalorder %s30, 0
      %p166 = por %p164, %p165
      %p167 = scmp.ne.s32.totalorder %s153, %s154
      %p168 = scmp.eq.s32.totalorder %s31, 1
      %p169 = por %p167, %p168
      %p171 = scmp.ne.s32.totalorder %s154, %s170
      %p172 = scmp.eq.s32.totalorder %s31, 0
      %p173 = por %p171, %p172
      %s174 = ssub.s32 %s25, %s32
      %p175 = scmp.eq.s32.totalorder %s174, 0
      %s177 = sadd.s32 %s176, 1
      %s178 = scalar_select %p175, %s176, %s177
      %p181 = pneg %p175
      %p182 = scmp.eq.s32.totalorder %s25, 1
      %p183 = por %p181, %p182
      %p184 = scmp.ne.s32.totalorder %s176, %s179
      %p185 = scmp.eq.s32.totalorder %s25, 0
      %p186 = por %p184, %p185
      %p187 = scmp.ne.s32.totalorder %s176, %s179
      %p188 = scmp.eq.s32.totalorder %s30, 1
      %p189 = por %p187, %p188
      %p190 = scmp.ne.s32.totalorder %s179, %s180
      %p191 = scmp.eq.s32.totalorder %s30, 0
      %p192 = por %p190, %p191
      %p193 = scmp.ne.s32.totalorder %s179, %s180
      %p194 = scmp.eq.s32.totalorder %s31, 1
      %p195 = por %p193, %p194
      %p197 = scmp.ne.s32.totalorder %s180, %s196
      %p198 = scmp.eq.s32.totalorder %s31, 0
      %p199 = por %p197, %p198
      %s200 = ssub.s32 %s25, %s32
      %p201 = scmp.eq.s32.totalorder %s200, 0
      %s203 = sadd.s32 %s202, 1
      %s204 = scalar_select %p201, %s202, %s203
      %p207 = pneg %p201
      %p208 = scmp.eq.s32.totalorder %s25, 1
      %p209 = por %p207, %p208
      %p210 = scmp.ne.s32.totalorder %s202, %s205
      %p211 = scmp.eq.s32.totalorder %s25, 0
      %p212 = por %p210, %p211
      %p213 = scmp.ne.s32.totalorder %s202, %s205
      %p214 = scmp.eq.s32.totalorder %s30, 1
      %p215 = por %p213, %p214
      %p216 = scmp.ne.s32.totalorder %s205, %s206
      %p217 = scmp.eq.s32.totalorder %s30, 0
      %p218 = por %p216, %p217
      %p219 = scmp.ne.s32.totalorder %s205, %s206
      %p220 = scmp.eq.s32.totalorder %s31, 1
      %p221 = por %p219, %p220
      %p223 = scmp.ne.s32.totalorder %s206, %s222
      %p224 = scmp.eq.s32.totalorder %s31, 0
      %p225 = por %p223, %p224
      %s227 = sadd.s32 %s226, 1
      %p230 = scmp.eq.s32.totalorder %s25, 1
      %p231 = scmp.ne.s32.totalorder %s226, %s228
      %p232 = scmp.eq.s32.totalorder %s25, 0
      %p233 = por %p231, %p232
      %p234 = scmp.ne.s32.totalorder %s226, %s228
      %p235 = scmp.eq.s32.totalorder %s30, 1
      %p236 = por %p234, %p235
      %p237 = scmp.ne.s32.totalorder %s228, %s229
      %p238 = scmp.eq.s32.totalorder %s30, 0
      %p239 = por %p237, %p238
      %p240 = scmp.ne.s32.totalorder %s228, %s229
      %p241 = scmp.eq.s32.totalorder %s31, 1
      %p242 = por %p240, %p241
      %p244 = scmp.ne.s32.totalorder %s229, %s243
      %p245 = scmp.eq.s32.totalorder %s31, 0
      %p246 = por %p244, %p245
      %s248 = sadd.s32 %s247, 1
      %p251 = scmp.eq.s32.totalorder %s25, 1
      %p252 = scmp.ne.s32.totalorder %s247, %s249
      %p253 = scmp.eq.s32.totalorder %s25, 0
      %p254 = por %p252, %p253
      %p255 = scmp.ne.s32.totalorder %s247, %s249
      %p256 = scmp.eq.s32.totalorder %s30, 1
      %p257 = por %p255, %p256
      %p258 = scmp.ne.s32.totalorder %s249, %s250
      %p259 = scmp.eq.s32.totalorder %s30, 0
      %p260 = por %p258, %p259
      %p261 = scmp.ne.s32.totalorder %s249, %s250
      %p262 = scmp.eq.s32.totalorder %s31, 1
      %p263 = por %p261, %p262
      %p265 = scmp.ne.s32.totalorder %s250, %s264
      %p266 = scmp.eq.s32.totalorder %s31, 0
      %p267 = por %p265, %p266
      %s269 = sadd.s32 %s268, 1
      %p272 = scmp.eq.s32.totalorder %s25, 1
      %p273 = scmp.ne.s32.totalorder %s268, %s270
      %p274 = scmp.eq.s32.totalorder %s25, 0
      %p275 = por %p273, %p274
      %p276 = scmp.ne.s32.totalorder %s268, %s270
      %p277 = scmp.eq.s32.totalorder %s30, 1
      %p278 = por %p276, %p277
      %p279 = scmp.ne.s32.totalorder %s270, %s271
      %p280 = scmp.eq.s32.totalorder %s30, 0
      %p281 = por %p279, %p280
      %p282 = scmp.ne.s32.totalorder %s270, %s271
      %p283 = scmp.eq.s32.totalorder %s31, 1
      %p284 = por %p282, %p283
      %p286 = scmp.ne.s32.totalorder %s271, %s285
      %p287 = scmp.eq.s32.totalorder %s31, 0
      %p288 = por %p286, %p287
      %s289 = ssub.s32 %s25, %s32
      %p290 = scmp.eq.s32.totalorder %s289, 0
      %s292 = sadd.s32 %s291, 1
      %s293 = scalar_select %p290, %s291, %s292
      %p296 = pneg %p290
      %p297 = scmp.eq.s32.totalorder %s25, 1
      %p298 = por %p296, %p297
      %p299 = scmp.ne.s32.totalorder %s291, %s294
      %p300 = scmp.eq.s32.totalorder %s25, 0
      %p301 = por %p299, %p300
      %p302 = scmp.ne.s32.totalorder %s291, %s294
      %p303 = scmp.eq.s32.totalorder %s30, 1
      %p304 = por %p302, %p303
      %p305 = scmp.ne.s32.totalorder %s294, %s295
      %p306 = scmp.eq.s32.totalorder %s30, 0
      %p307 = por %p305, %p306
      %p308 = scmp.ne.s32.totalorder %s294, %s295
      %p309 = scmp.eq.s32.totalorder %s31, 1
      %p310 = por %p308, %p309
      %p312 = scmp.ne.s32.totalorder %s295, %s311
      %p313 = scmp.eq.s32.totalorder %s31, 0
      %p314 = por %p312, %p313
      %s315 = ssub.s32 %s25, %s32
      %p316 = scmp.eq.s32.totalorder %s315, 0
      %s318 = sadd.s32 %s317, 1
      %s319 = scalar_select %p316, %s317, %s318
      %p322 = pneg %p316
      %p323 = scmp.eq.s32.totalorder %s25, 1
      %p324 = por %p322, %p323
      %p325 = scmp.ne.s32.totalorder %s317, %s320
      %p326 = scmp.eq.s32.totalorder %s25, 0
      %p327 = por %p325, %p326
      %p328 = scmp.ne.s32.totalorder %s317, %s320
      %p329 = scmp.eq.s32.totalorder %s30, 1
      %p330 = por %p328, %p329
      %p331 = scmp.ne.s32.totalorder %s320, %s321
      %p332 = scmp.eq.s32.totalorder %s30, 0
      %p333 = por %p331, %p332
      %p334 = scmp.ne.s32.totalorder %s320, %s321
      %p335 = scmp.eq.s32.totalorder %s31, 1
      %p336 = por %p334, %p335
      %p338 = scmp.ne.s32.totalorder %s321, %s337
      %p339 = scmp.eq.s32.totalorder %s31, 0
      %p340 = por %p338, %p339
      %p341 = scmp.le.s32.totalorder 1, %s25
      %p342 = scmp.lt.s32.totalorder %s25, 3
      %p343 = pnand %p341, %p342
      %p344 = pneg %p343
      // Predicated region
      $region9: #{tpu_custom_call.1} parent=5 // pred_check
        _
      $region10: #{tpu_custom_call.1} parent=5 // pred_check_branch
        %346 = sbr.rel (%p343) target = $region12
      $region11: #{tpu_custom_call.1} parent=5 // pred_region
        %s347 = ssub.s32 %s25, 1
        // Predicated region
        $region13: #{tpu_custom_call.1} parent=11 // pred_check
          %p348 = pneg %p46
        $region14: #{tpu_custom_call.1} parent=11 // pred_check_branch
          %350 = sbr.rel (%p348) target = $region16
        $region15: #{tpu_custom_call.1} parent=11 // pred_region
          %s352 = ssub.s32 512, 512
          %353 = vsyncadd [#allocation5], %s352
          %s354 = sshll.u32 [#allocation4], 4
          %s355 = int_to_ptr.vmem [resolvable:$true] %s354
          %360 = dma.hbm_to_vmem [thread:$0]  %s0, 512, %s355, [#allocation5], 64, 64, 4
        $region16: #{tpu_custom_call.1} parent=11 // pred_fallthru
          _
        // Predicated region
        $region17: #{tpu_custom_call.1} parent=11 // pred_check
          %p361 = pneg %p67
        $region18: #{tpu_custom_call.1} parent=11 // pred_check_branch
          %363 = sbr.rel (%p361) target = $region20
        $region19: #{tpu_custom_call.1} parent=11 // pred_region
          %s365 = ssub.s32 1024, 1024
          %366 = vsyncadd [#allocation8], %s365
          %s367 = sshll.u32 [#allocation7], 4
          %s368 = int_to_ptr.vmem [resolvable:$true] %s367
          %373 = dma.hbm_to_vmem [thread:$0]  %s1, 1024, %s368, [#allocation8], 64, 64, 4
        $region20: #{tpu_custom_call.1} parent=11 // pred_fallthru
          _
        // Predicated region
        $region21: #{tpu_custom_call.1} parent=11 // pred_check
          %p374 = pneg %p88
        $region22: #{tpu_custom_call.1} parent=11 // pred_check_branch
          %376 = sbr.rel (%p374) target = $region24
        $region23: #{tpu_custom_call.1} parent=11 // pred_region
          _
        $region24: #{tpu_custom_call.1} parent=11 // pred_fallthru
          _
        // Predicated region
        $region25: #{tpu_custom_call.1} parent=11 // pred_check
          %p377 = pneg %p239
        $region26: #{tpu_custom_call.1} parent=11 // pred_check_branch
          %379 = sbr.rel (%p377) target = $region28
        $region27: #{tpu_custom_call.1} parent=11 // pred_region
          %s381 = ssub.s32 1024, 1024
          %382 = vsyncadd [#allocation8], %s381
          %s383 = sshll.u32 [#allocation13], 4
          %s384 = int_to_ptr.vmem [resolvable:$true] %s383
          %389 = dma.hbm_to_vmem [thread:$0]  %s8, 1024, %s384, [#allocation8], 64, 64, 4
        $region28: #{tpu_custom_call.1} parent=11 // pred_fallthru
          _
        // Predicated region
        $region29: #{tpu_custom_call.1} parent=11 // pred_check
          %p390 = pneg %p260
        $region30: #{tpu_custom_call.1} parent=11 // pred_check_branch
          %392 = sbr.rel (%p390) target = $region32
        $region31: #{tpu_custom_call.1} parent=11 // pred_region
          _
        $region32: #{tpu_custom_call.1} parent=11 // pred_fallthru
          _
      $region12: #{tpu_custom_call.1} parent=5 // pred_fallthru
        _
      %p393 = scmp.lt.s32.totalorder %s25, 2
      // Predicated region
      $region33: #{tpu_custom_call.1} parent=5 // pred_check
        %p394 = pneg %p393
      $region34: #{tpu_custom_call.1} parent=5 // pred_check_branch
        %396 = sbr.rel (%p394) target = $region36
      $region35: #{tpu_custom_call.1} parent=5 // pred_region
        // Predicated region
        $region37: #{tpu_custom_call.1} parent=35 // pred_check
          %p397 = pneg %p108
        $region38: #{tpu_custom_call.1} parent=35 // pred_check_branch
          %399 = sbr.rel (%p397) target = $region40
        $region39: #{tpu_custom_call.1} parent=35 // pred_region
          %s400 = sand.u32 %s25, 1
          %s401 = scalar_lea.sflag [#allocation5], %s400
          %s402 = sand.u32 %s98, 1
          %s403 = smul.addr %s402, 256
          %s404 = scalar_lea.vmem [#allocation9], %s403
          %s406 = ssub.s32 4096, 4096
          %407 = vsyncadd %s401, %s406
          %s408 = smul.addr %s25, 64
          %s409 = smul.addr %s408, 64
          %s410 = scalar_lea.hbm %s3, %s409
          %s411 = sshll.u32 %s404, 4
          %s412 = int_to_ptr.vmem [resolvable:$true] %s411
          %417 = dma.hbm_to_vmem [thread:$0]  %s410, 4096, %s412, %s401, 256, 256, 16
        $region40: #{tpu_custom_call.1} parent=35 // pred_fallthru
          _
        // Predicated region
        $region41: #{tpu_custom_call.1} parent=35 // pred_check
          %p418 = pneg %p134
        $region42: #{tpu_custom_call.1} parent=35 // pred_check_branch
          %420 = sbr.rel (%p418) target = $region44
        $region43: #{tpu_custom_call.1} parent=35 // pred_region
          %s421 = sand.u32 %s25, 1
          %s422 = scalar_lea.sflag [#allocation5], %s421
          %s423 = sand.u32 %s124, 1
          %s424 = smul.addr %s423, 4
          %s425 = scalar_lea.vmem [#allocation10], %s424
          %s427 = ssub.s32 64, 64
          %428 = vsyncadd %s422, %s427
          %s429 = smul.addr %s25, 4
          %s430 = smul.addr %s429, 16
          %s431 = scalar_lea.hbm %s4, %s430
          %s433 = sshll.u32 %s425, 4
          %s434 = int_to_ptr.vmem [resolvable:$true] %s433
          %436 = dma.hbm_to_vmem [thread:$0]  %s431, 64, %s434, %s422
        $region44: #{tpu_custom_call.1} parent=35 // pred_fallthru
          _
        // Predicated region
        $region45: #{tpu_custom_call.1} parent=35 // pred_check
          %p437 = pneg %p160
        $region46: #{tpu_custom_call.1} parent=35 // pred_check_branch
          %439 = sbr.rel (%p437) target = $region48
        $region47: #{tpu_custom_call.1} parent=35 // pred_region
          %s440 = sand.u32 %s25, 1
          %s441 = scalar_lea.sflag [#allocation5], %s440
          %s442 = sand.u32 %s150, 1
          %s443 = smul.addr %s442, 256
          %s444 = scalar_lea.vmem [#allocation11], %s443
          %s446 = ssub.s32 4096, 4096
          %447 = vsyncadd %s441, %s446
          %s448 = smul.addr %s25, 64
          %s449 = smul.addr %s448, 64
          %s450 = scalar_lea.hbm %s5, %s449
          %s451 = sshll.u32 %s444, 4
          %s452 = int_to_ptr.vmem [resolvable:$true] %s451
          %457 = dma.hbm_to_vmem [thread:$0]  %s450, 4096, %s452, %s441, 256, 256, 16
        $region48: #{tpu_custom_call.1} parent=35 // pred_fallthru
          _
        // Predicated region
        $region49: #{tpu_custom_call.1} parent=35 // pred_check
          %p458 = pneg %p186
        $region50: #{tpu_custom_call.1} parent=35 // pred_check_branch
          %460 = sbr.rel (%p458) target = $region52
        $region51: #{tpu_custom_call.1} parent=35 // pred_region
          %p461 = scmp.lt.s32.totalorder %s25, 1
          %s462 = scalar_select %p461, %s25, 1
          %s463 = smul.addr %s462, 8
          %s464 = scalar_lea.vmem %s6, %s463
        $region52: #{tpu_custom_call.1} parent=35 // pred_fallthru
          _
        // Predicated region
        $region53: #{tpu_custom_call.1} parent=35 // pred_check
          %p465 = pneg %p212
        $region54: #{tpu_custom_call.1} parent=35 // pred_check_branch
          %467 = sbr.rel (%p465) target = $region56
        $region55: #{tpu_custom_call.1} parent=35 // pred_region
          %s468 = sand.u32 %s25, 1
          %s469 = scalar_lea.sflag [#allocation5], %s468
          %s470 = sand.u32 %s202, 1
          %s471 = smul.addr %s470, 8
          %s472 = scalar_lea.vmem [#allocation12], %s471
          %s474 = ssub.s32 128, 128
          %475 = vsyncadd %s469, %s474
          %s476 = smul.addr %s25, 128
          %s477 = scalar_lea.hbm %s7, %s476
          %s479 = sshll.u32 %s472, 4
          %s480 = int_to_ptr.vmem [resolvable:$true] %s479
          %482 = dma.hbm_to_vmem [thread:$0]  %s477, 128, %s480, %s469
        $region56: #{tpu_custom_call.1} parent=35 // pred_fallthru
          _
      $region36: #{tpu_custom_call.1} parent=5 // pred_fallthru
        _
      %p483 = scmp.le.s32.totalorder 1, %s25
      %p484 = scmp.lt.s32.totalorder %s25, 3
      %p485 = pnand %p483, %p484
      %p486 = pneg %p485
      // Predicated region
      $region57: #{tpu_custom_call.1} parent=5 // pred_check
        _
      $region58: #{tpu_custom_call.1} parent=5 // pred_check_branch
        %488 = sbr.rel (%p485) target = $region60
      $region59: #{tpu_custom_call.1} parent=5 // pred_region
        %s489 = ssub.s32 %s25, 1
        // Predicated region
        $region61: #{tpu_custom_call.1} parent=59 // pred_check
          %p490 = pneg %p46
        $region62: #{tpu_custom_call.1} parent=59 // pred_check_branch
          %492 = sbr.rel (%p490) target = $region64
        $region63: #{tpu_custom_call.1} parent=59 // pred_region
          %493 = dma.done [#allocation5], 512
        $region64: #{tpu_custom_call.1} parent=59 // pred_fallthru
          _
        // Predicated region
        $region65: #{tpu_custom_call.1} parent=59 // pred_check
          %p494 = pneg %p67
        $region66: #{tpu_custom_call.1} parent=59 // pred_check_branch
          %496 = sbr.rel (%p494) target = $region68
        $region67: #{tpu_custom_call.1} parent=59 // pred_region
          %497 = dma.done [#allocation8], 1024
        $region68: #{tpu_custom_call.1} parent=59 // pred_fallthru
          _
        %s498 = sand.u32 %s30, 1
        %s499 = scalar_lea.sflag [#allocation5], %s498
        %s500 = sand.u32 %s101, 1
        %s501 = smul.addr %s500, 256
        %s502 = scalar_lea.vmem [#allocation9], %s501
        // Predicated region
        $region69: #{tpu_custom_call.1} parent=59 // pred_check
          %p503 = pneg %p114
        $region70: #{tpu_custom_call.1} parent=59 // pred_check_branch
          %505 = sbr.rel (%p503) target = $region72
        $region71: #{tpu_custom_call.1} parent=59 // pred_region
          %506 = dma.done %s499, 4096
        $region72: #{tpu_custom_call.1} parent=59 // pred_fallthru
          _
        %s507 = sand.u32 %s30, 1
        %s508 = scalar_lea.sflag [#allocation5], %s507
        %s509 = sand.u32 %s127, 1
        %s510 = smul.addr %s509, 4
        %s511 = scalar_lea.vmem [#allocation10], %s510
        // Predicated region
        $region73: #{tpu_custom_call.1} parent=59 // pred_check
          %p512 = pneg %p140
        $region74: #{tpu_custom_call.1} parent=59 // pred_check_branch
          %514 = sbr.rel (%p512) target = $region76
        $region75: #{tpu_custom_call.1} parent=59 // pred_region
          %515 = dma.done %s508, 64
        $region76: #{tpu_custom_call.1} parent=59 // pred_fallthru
          _
        %s516 = sand.u32 %s30, 1
        %s517 = scalar_lea.sflag [#allocation5], %s516
        %s518 = sand.u32 %s153, 1
        %s519 = smul.addr %s518, 256
        %s520 = scalar_lea.vmem [#allocation11], %s519
        // Predicated region
        $region77: #{tpu_custom_call.1} parent=59 // pred_check
          %p521 = pneg %p166
        $region78: #{tpu_custom_call.1} parent=59 // pred_check_branch
          %523 = sbr.rel (%p521) target = $region80
        $region79: #{tpu_custom_call.1} parent=59 // pred_region
          %524 = dma.done %s517, 4096
        $region80: #{tpu_custom_call.1} parent=59 // pred_fallthru
          _
        %s525 = sand.u32 %s30, 1
        %s526 = scalar_lea.sflag [#allocation5], %s525
        %s527 = sand.u32 %s205, 1
        %s528 = smul.addr %s527, 8
        %s529 = scalar_lea.vmem [#allocation12], %s528
        // Predicated region
        $region81: #{tpu_custom_call.1} parent=59 // pred_check
          %p530 = pneg %p218
        $region82: #{tpu_custom_call.1} parent=59 // pred_check_branch
          %532 = sbr.rel (%p530) target = $region84
        $region83: #{tpu_custom_call.1} parent=59 // pred_region
          %533 = dma.done %s526, 128
        $region84: #{tpu_custom_call.1} parent=59 // pred_fallthru
          _
        // Predicated region
        $region85: #{tpu_custom_call.1} parent=59 // pred_check
          %p534 = pneg %p239
        $region86: #{tpu_custom_call.1} parent=59 // pred_check_branch
          %536 = sbr.rel (%p534) target = $region88
        $region87: #{tpu_custom_call.1} parent=59 // pred_region
          %537 = dma.done [#allocation8], 1024
        $region88: #{tpu_custom_call.1} parent=59 // pred_fallthru
          _
        %p538 = pneg %p46
        %p539 = pneg %p43
        %p540 = pneg %p67
        %p541 = pneg %p64
        %p542 = pneg %p88
        %p543 = pneg %p85
        %s544 = sand.u32 %s30, 1
        %s545 = scalar_lea.sflag [#allocation5], %s544
        %s546 = sand.u32 %s101, 1
        %s547 = smul.addr %s546, 256
        %s548 = scalar_lea.vmem [#allocation9], %s547
        %p549 = pneg %p114
        %p550 = pneg %p111
        %s551 = sand.u32 %s30, 1
        %s552 = scalar_lea.sflag [#allocation5], %s551
        %s553 = sand.u32 %s127, 1
        %s554 = smul.addr %s553, 4
        %s555 = scalar_lea.vmem [#allocation10], %s554
        %p556 = pneg %p140
        %p557 = pneg %p137
        %s558 = sand.u32 %s30, 1
        %s559 = scalar_lea.sflag [#allocation5], %s558
        %s560 = sand.u32 %s153, 1
        %s561 = smul.addr %s560, 256
        %s562 = scalar_lea.vmem [#allocation11], %s561
        %p563 = pneg %p166
        %p564 = pneg %p163
        %p565 = scmp.lt.s32.totalorder %s30, 1
        %s566 = scalar_select %p565, %s30, 1
        %s567 = smul.addr %s566, 8
        %s568 = scalar_lea.vmem %s6, %s567
        %p569 = pneg %p192
        %p570 = pneg %p189
        %s571 = sand.u32 %s30, 1
        %s572 = scalar_lea.sflag [#allocation5], %s571
        %s573 = sand.u32 %s205, 1
        %s574 = smul.addr %s573, 8
        %s575 = scalar_lea.vmem [#allocation12], %s574
        %p576 = pneg %p218
        %p577 = pneg %p215
        %p578 = pneg %p239
        %p579 = pneg %p236
        %p580 = pneg %p260
        %p581 = pneg %p257
        %p582 = pneg %p281
        %p583 = pneg %p278
        %p584 = pneg %p307
        %p585 = pneg %p304
        %s586 = sand.u32 %s30, 1
        %s587 = scalar_lea.sflag [#allocation16], %s586
        %s588 = sand.u32 %s294, 1
        %s589 = smul.addr %s588, 8
        %s590 = scalar_lea.vmem [#allocation15], %s589
        %p591 = pneg %p333
        %p592 = pneg %p330
        %s593 = sand.u32 %s30, 1
        %s594 = scalar_lea.sflag [#allocation16], %s593
        %s595 = sand.u32 %s320, 1
        %s596 = smul.addr %s595, 8
        %s597 = scalar_lea.vmem [#allocation17], %s596
        %p598 = scmp.lt.s32.totalorder %s30, 1
        %s599 = scalar_select %p598, %s30, 1
        %s600 = smul.addr %s599, 8
        %s601 = scalar_lea.vmem %s6, %s600
        %v603 = vld [vmem:[%s502] sm:$0xff]
        %v604 = vld [vmem:[%s502 + $0x8] sm:$0xff]
        %v605 = vld [vmem:[%s502 + $0x10] sm:$0xff]
        %v606 = vld [vmem:[%s502 + $0x18] sm:$0xff]
        %v607 = vld [vmem:[%s502 + $0x20] sm:$0xff]
        %v608 = vld [vmem:[%s502 + $0x28] sm:$0xff]
        %v609 = vld [vmem:[%s502 + $0x30] sm:$0xff]
        %v610 = vld [vmem:[%s502 + $0x38] sm:$0xff]
        %v611 = vld [vmem:[%s502 + $0x40] sm:$0xff]
        %v612 = vld [vmem:[%s502 + $0x48] sm:$0xff]
        %v613 = vld [vmem:[%s502 + $0x50] sm:$0xff]
        %v614 = vld [vmem:[%s502 + $0x58] sm:$0xff]
        %v615 = vld [vmem:[%s502 + $0x60] sm:$0xff]
        %v616 = vld [vmem:[%s502 + $0x68] sm:$0xff]
        %v617 = vld [vmem:[%s502 + $0x70] sm:$0xff]
        %v618 = vld [vmem:[%s502 + $0x78] sm:$0xff]
        %v619 = vld [vmem:[%s502 + $0x80] sm:$0xff]
        %v620 = vld [vmem:[%s502 + $0x88] sm:$0xff]
        %v621 = vld [vmem:[%s502 + $0x90] sm:$0xff]
        %v622 = vld [vmem:[%s502 + $0x98] sm:$0xff]
        %v623 = vld [vmem:[%s502 + $0xa0] sm:$0xff]
        %v624 = vld [vmem:[%s502 + $0xa8] sm:$0xff]
        %v625 = vld [vmem:[%s502 + $0xb0] sm:$0xff]
        %v626 = vld [vmem:[%s502 + $0xb8] sm:$0xff]
        %v627 = vld [vmem:[%s502 + $0xc0] sm:$0xff]
        %v628 = vld [vmem:[%s502 + $0xc8] sm:$0xff]
        %v629 = vld [vmem:[%s502 + $0xd0] sm:$0xff]
        %v630 = vld [vmem:[%s502 + $0xd8] sm:$0xff]
        %v631 = vld [vmem:[%s502 + $0xe0] sm:$0xff]
        %v632 = vld [vmem:[%s502 + $0xe8] sm:$0xff]
        %v633 = vld [vmem:[%s502 + $0xf0] sm:$0xff]
        %v634 = vld [vmem:[%s502 + $0xf8] sm:$0xff]
        %v635 = vld [vmem:[%s520] sm:$0xff]
        %v636 = vld [vmem:[%s520 + $0x8] sm:$0xff]
        %v637 = vld [vmem:[%s520 + $0x10] sm:$0xff]
        %v638 = vld [vmem:[%s520 + $0x18] sm:$0xff]
        %v639 = vld [vmem:[%s520 + $0x20] sm:$0xff]
        %v640 = vld [vmem:[%s520 + $0x28] sm:$0xff]
        %v641 = vld [vmem:[%s520 + $0x30] sm:$0xff]
        %v642 = vld [vmem:[%s520 + $0x38] sm:$0xff]
        %v643 = vld [vmem:[%s520 + $0x40] sm:$0xff]
        %v644 = vld [vmem:[%s520 + $0x48] sm:$0xff]
        %v645 = vld [vmem:[%s520 + $0x50] sm:$0xff]
        %v646 = vld [vmem:[%s520 + $0x58] sm:$0xff]
        %v647 = vld [vmem:[%s520 + $0x60] sm:$0xff]
        %v648 = vld [vmem:[%s520 + $0x68] sm:$0xff]
        %v649 = vld [vmem:[%s520 + $0x70] sm:$0xff]
        %v650 = vld [vmem:[%s520 + $0x78] sm:$0xff]
        %v651 = vld [vmem:[%s520 + $0x80] sm:$0xff]
        %v652 = vld [vmem:[%s520 + $0x88] sm:$0xff]
        %v653 = vld [vmem:[%s520 + $0x90] sm:$0xff]
        %v654 = vld [vmem:[%s520 + $0x98] sm:$0xff]
        %v655 = vld [vmem:[%s520 + $0xa0] sm:$0xff]
        %v656 = vld [vmem:[%s520 + $0xa8] sm:$0xff]
        %v657 = vld [vmem:[%s520 + $0xb0] sm:$0xff]
        %v658 = vld [vmem:[%s520 + $0xb8] sm:$0xff]
        %v659 = vld [vmem:[%s520 + $0xc0] sm:$0xff]
        %v660 = vld [vmem:[%s520 + $0xc8] sm:$0xff]
        %v661 = vld [vmem:[%s520 + $0xd0] sm:$0xff]
        %v662 = vld [vmem:[%s520 + $0xd8] sm:$0xff]
        %v663 = vld [vmem:[%s520 + $0xe0] sm:$0xff]
        %v664 = vld [vmem:[%s520 + $0xe8] sm:$0xff]
        %v665 = vld [vmem:[%s520 + $0xf0] sm:$0xff]
        %v666 = vld [vmem:[%s520 + $0xf8] sm:$0xff]
        %v667 = vld [vmem:[%s511] sm:$0xf]
        %v668 = vld [vmem:[%s601] sm:$0xff]
        %v669 = vld [vmem:[%s529] sm:$0xff]
        %p670 = scmp.eq.s32.totalorder %s30, 0
        // Predicated region
        $region89: #{tpu_custom_call.1} parent=59 // pred_check
          %p671 = pneg %p670
        $region90: #{tpu_custom_call.1} parent=59 // pred_check_branch
          %673 = sbr.rel (%p671) target = $region92
        $region91: #{tpu_custom_call.1} parent=59 // pred_region
          %v674 = vld [vmem:[#allocation4] sm:$0xf]
          %v675 = vld [vmem:[#allocation4 + $0x4] sm:$0xf]
          %v676 = vld [vmem:[#allocation4 + $0x8] sm:$0xf]
          %v677 = vld [vmem:[#allocation4 + $0xc] sm:$0xf]
          %v678 = vld [vmem:[#allocation4 + $0x10] sm:$0xf]
          %v679 = vld [vmem:[#allocation4 + $0x14] sm:$0xf]
          %v680 = vld [vmem:[#allocation4 + $0x18] sm:$0xf]
          %v681 = vld [vmem:[#allocation4 + $0x1c] sm:$0xf]
          %v682 = vld [vmem:[#allocation7] sm:$0xf]
          %v683 = vld [vmem:[#allocation7 + $0x4] sm:$0xf]
          %v684 = vld [vmem:[#allocation7 + $0x8] sm:$0xf]
          %v685 = vld [vmem:[#allocation7 + $0xc] sm:$0xf]
          %v686 = vld [vmem:[#allocation7 + $0x10] sm:$0xf]
          %v687 = vld [vmem:[#allocation7 + $0x14] sm:$0xf]
          %v688 = vld [vmem:[#allocation7 + $0x18] sm:$0xf]
          %v689 = vld [vmem:[#allocation7 + $0x1c] sm:$0xf]
          %v690 = vld [vmem:[#allocation7 + $0x20] sm:$0xf]
          %v691 = vld [vmem:[#allocation7 + $0x24] sm:$0xf]
          %v692 = vld [vmem:[#allocation7 + $0x28] sm:$0xf]
          %v693 = vld [vmem:[#allocation7 + $0x2c] sm:$0xf]
          %v694 = vld [vmem:[#allocation7 + $0x30] sm:$0xf]
          %v695 = vld [vmem:[#allocation7 + $0x34] sm:$0xf]
          %v696 = vld [vmem:[#allocation7 + $0x38] sm:$0xf]
          %v697 = vld [vmem:[#allocation7 + $0x3c] sm:$0xf]
          %v698 = vld [vmem:[%s2] sm:$0x1]
          %v700 = vlaneseq
          %v701 = vshrl.u32 %v700, 7
          %v702 = vsub.s32 0, %v701
          %v703 = vrot.slane %v698, %v702
          %v713 = vunpack.c.l.b16 %v674
          %v714 = vunpack.c.l.b16 %v675
          %v715 = vunpack.c.l.b16 %v676
          %v716 = vunpack.c.l.b16 %v677
          %v717 = vunpack.c.l.b16 %v678
          %v718 = vunpack.c.l.b16 %v679
          %v719 = vunpack.c.l.b16 %v680
          %v720 = vunpack.c.l.b16 %v681
          %v721 = vpack.c.b16 %v714, %v713
          %v722 = vpack.c.b16 %v716, %v715
          %v723 = vpack.c.b16 %v718, %v717
          %v724 = vpack.c.b16 %v720, %v719
          %v745 = vunpack.c.l.b16 %v682
          %v746 = vunpack.c.l.b16 %v683
          %v747 = vunpack.c.l.b16 %v684
          %v748 = vunpack.c.l.b16 %v685
          %v749 = vunpack.c.l.b16 %v686
          %v750 = vunpack.c.l.b16 %v687
          %v751 = vunpack.c.l.b16 %v688
          %v752 = vunpack.c.l.b16 %v689
          %v753 = vunpack.c.l.b16 %v690
          %v754 = vunpack.c.l.b16 %v691
          %v755 = vunpack.c.l.b16 %v692
          %v756 = vunpack.c.l.b16 %v693
          %v757 = vunpack.c.l.b16 %v694
          %v758 = vunpack.c.l.b16 %v695
          %v759 = vunpack.c.l.b16 %v696
          %v760 = vunpack.c.l.b16 %v697
          %v761 = vpack.c.b16 %v746, %v745
          %v762 = vpack.c.b16 %v748, %v747
          %v763 = vpack.c.b16 %v750, %v749
          %v764 = vpack.c.b16 %v752, %v751
          %v765 = vpack.c.b16 %v754, %v753
          %v766 = vpack.c.b16 %v756, %v755
          %v767 = vpack.c.b16 %v758, %v757
          %v768 = vpack.c.b16 %v760, %v759
          %777 = vmatprep.subr.bf16.mxu0 0
          %778 = vmatpush1.bf16.msra.mxu0 %v761
          %779 = vmatprep.subr.bf16.mxu0 0
          %780 = vmatpush1.bf16.msra.mxu0 %v762
          %781 = vmatprep.subr.bf16.mxu0 0
          %782 = vmatpush1.bf16.msra.mxu0 %v763
          %783 = vmatprep.subr.bf16.mxu0 0
          %784 = vmatpush1.bf16.msra.mxu0 %v764
          %785 = vmatprep.subr.bf16.mxu0 0
          %786 = vmatpush1.bf16.msra.mxu0 %v765
          %787 = vmatprep.subr.bf16.mxu0 0
          %788 = vmatpush1.bf16.msra.mxu0 %v766
          %789 = vmatprep.subr.bf16.mxu0 0
          %790 = vmatpush1.bf16.msra.mxu0 %v767
          %791 = vmatprep.subr.bf16.mxu0 0
          %792 = vmatpush1.bf16.msra.mxu0 %v768
          %793 = vmatprep.subr.bf16.mxu0 0
          %794 = vmatpush1.bf16.msra.mxu0 0
          %795 = vmatprep.subr.bf16.mxu0 0
          %796 = vmatpush1.bf16.msra.mxu0 0
          %797 = vmatprep.subr.bf16.mxu0 0
          %798 = vmatpush1.bf16.msra.mxu0 0
          %799 = vmatprep.subr.bf16.mxu0 0
          %800 = vmatpush1.bf16.msra.mxu0 0
          %801 = vmatprep.subr.bf16.mxu0 0
          %802 = vmatpush1.bf16.msra.mxu0 0
          %803 = vmatprep.subr.bf16.mxu0 0
          %804 = vmatpush1.bf16.msra.mxu0 0
          %805 = vmatprep.subr.bf16.mxu0 0
          %806 = vmatpush1.bf16.msra.mxu0 0
          %807 = vmatprep.subr.bf16.mxu0 0
          %808 = vmatpush1.bf16.msra.mxu0 0
          %809 = vmatprep.mubr.bf16.mxu0 0
          %810 = vmatmul.mubr.bf16.gmra.mrb[0].mxu0 %v721
          %v811 = vpop.f32.mrb[0].mxu0
          %v812 = vadd.f32 %v703, %v811
          %v813 = vpop.f32.mrb[0].mxu0
          %v814 = vpop.f32.mrb[0].mxu0
          %v815 = vadd.f32 %v703, %v814
          %v816 = vpop.f32.mrb[0].mxu0
          %817 = vmatprep.mubr.bf16.mxu0 0
          %818 = vmatmul.mubr.bf16.gmra.mrb[0].mxu0 %v722
          %v819 = vpop.f32.mrb[0].mxu0
          %v820 = vadd.f32 %v703, %v819
          %v821 = vpop.f32.mrb[0].mxu0
          %v822 = vpop.f32.mrb[0].mxu0
          %v823 = vadd.f32 %v703, %v822
          %v824 = vpop.f32.mrb[0].mxu0
          %825 = vmatprep.mubr.bf16.mxu0 0
          %826 = vmatmul.mubr.bf16.gmra.mrb[0].mxu0 %v723
          %v827 = vpop.f32.mrb[0].mxu0
          %v828 = vadd.f32 %v703, %v827
          %v829 = vpop.f32.mrb[0].mxu0
          %v830 = vpop.f32.mrb[0].mxu0
          %v831 = vadd.f32 %v703, %v830
          %v832 = vpop.f32.mrb[0].mxu0
          %833 = vmatprep.mubr.bf16.mxu0 0
          %834 = vmatmul.mubr.bf16.gmra.mrb[0].mxu0 %v724
          %v835 = vpop.f32.mrb[0].mxu0
          %v836 = vadd.f32 %v703, %v835
          %v837 = vpop.f32.mrb[0].mxu0
          %v838 = vpop.f32.mrb[0].mxu0
          %v839 = vadd.f32 %v703, %v838
          %v840 = vpop.f32.mrb[0].mxu0
          %841 = vdwg.mxu0
          %842 = vst [vmem:[#allocation2] sm:$0xff] %v812
          %843 = vst [vmem:[#allocation2 + $0x8] sm:$0xff] %v815
          %844 = vst [vmem:[#allocation2 + $0x10] sm:$0xff] %v820
          %845 = vst [vmem:[#allocation2 + $0x18] sm:$0xff] %v823
          %846 = vst [vmem:[#allocation2 + $0x20] sm:$0xff] %v828
          %847 = vst [vmem:[#allocation2 + $0x28] sm:$0xff] %v831
          %848 = vst [vmem:[#allocation2 + $0x30] sm:$0xff] %v836
          %849 = vst [vmem:[#allocation2 + $0x38] sm:$0xff] %v839
        $region92: #{tpu_custom_call.1} parent=59 // pred_fallthru
          _
        %v850 = vld [vmem:[#allocation2] sm:$0xff]
        %v851 = vld [vmem:[#allocation2 + $0x8] sm:$0xff]
        %v852 = vld [vmem:[#allocation2 + $0x10] sm:$0xff]
        %v853 = vld [vmem:[#allocation2 + $0x18] sm:$0xff]
        %v854 = vld [vmem:[#allocation2 + $0x20] sm:$0xff]
        %v855 = vld [vmem:[#allocation2 + $0x28] sm:$0xff]
        %v856 = vld [vmem:[#allocation2 + $0x30] sm:$0xff]
        %v857 = vld [vmem:[#allocation2 + $0x38] sm:$0xff]
        %v858 = vpack.c.bf16 %v851, %v850
        %v859 = vpack.c.bf16 %v853, %v852
        %v860 = vpack.c.bf16 %v855, %v854
        %v861 = vpack.c.bf16 %v857, %v856
        %v863 = vlaneseq
        %v864 = vshrl.u32 %v863, 7
        %v865 = vsub.s32 0, %v864
        %v866 = vrot.slane %v667, %v865
        %v867 = vlaneseq
        %v868 = vshrl.u32 %v867, 7
        %v869 = vsub.s32 1, %v868
        %v870 = vrot.slane %v667, %v869
        %v871 = vlaneseq
        %v872 = vshrl.u32 %v871, 7
        %v873 = vsub.s32 2, %v872
        %v874 = vrot.slane %v667, %v873
        %v875 = vlaneseq
        %v876 = vshrl.u32 %v875, 7
        %v877 = vsub.s32 3, %v876
        %v878 = vrot.slane %v667, %v877
        %v915 = vunpack.c.l.b16 %v603
        %v916 = vunpack.c.h.b16 %v603
        %v917 = vunpack.c.l.b16 %v604
        %v918 = vunpack.c.h.b16 %v604
        %v919 = vunpack.c.l.b16 %v605
        %v920 = vunpack.c.h.b16 %v605
        %v921 = vunpack.c.l.b16 %v606
        %v922 = vunpack.c.h.b16 %v606
        %v923 = vunpack.c.l.b16 %v607
        %v924 = vunpack.c.h.b16 %v607
        %v925 = vunpack.c.l.b16 %v608
        %v926 = vunpack.c.h.b16 %v608
        %v927 = vunpack.c.l.b16 %v609
        %v928 = vunpack.c.h.b16 %v609
        %v929 = vunpack.c.l.b16 %v610
        %v930 = vunpack.c.h.b16 %v610
        %v931 = vunpack.c.l.b16 %v611
        %v932 = vunpack.c.h.b16 %v611
        %v933 = vunpack.c.l.b16 %v612
        %v934 = vunpack.c.h.b16 %v612
        %v935 = vunpack.c.l.b16 %v613
        %v936 = vunpack.c.h.b16 %v613
        %v937 = vunpack.c.l.b16 %v614
        %v938 = vunpack.c.h.b16 %v614
        %v939 = vunpack.c.l.b16 %v615
        %v940 = vunpack.c.h.b16 %v615
        %v941 = vunpack.c.l.b16 %v616
        %v942 = vunpack.c.h.b16 %v616
        %v943 = vunpack.c.l.b16 %v617
        %v944 = vunpack.c.h.b16 %v617
        %v945 = vunpack.c.l.b16 %v618
        %v946 = vunpack.c.h.b16 %v618
        %v947 = vunpack.c.l.b16 %v619
        %v948 = vunpack.c.h.b16 %v619
        %v949 = vunpack.c.l.b16 %v620
        %v950 = vunpack.c.h.b16 %v620
        %v951 = vunpack.c.l.b16 %v621
        %v952 = vunpack.c.h.b16 %v621
        %v953 = vunpack.c.l.b16 %v622
        %v954 = vunpack.c.h.b16 %v622
        %v955 = vunpack.c.l.b16 %v623
        %v956 = vunpack.c.h.b16 %v623
        %v957 = vunpack.c.l.b16 %v624
        %v958 = vunpack.c.h.b16 %v624
        %v959 = vunpack.c.l.b16 %v625
        %v960 = vunpack.c.h.b16 %v625
        %v961 = vunpack.c.l.b16 %v626
        %v962 = vunpack.c.h.b16 %v626
        %v963 = vunpack.c.l.b16 %v627
        %v964 = vunpack.c.h.b16 %v627
        %v965 = vunpack.c.l.b16 %v628
        %v966 = vunpack.c.h.b16 %v628
        %v967 = vunpack.c.l.b16 %v629
        %v968 = vunpack.c.h.b16 %v629
        %v969 = vunpack.c.l.b16 %v630
        %v970 = vunpack.c.h.b16 %v630
        %v971 = vunpack.c.l.b16 %v631
        %v972 = vunpack.c.h.b16 %v631
        %v973 = vunpack.c.l.b16 %v632
        %v974 = vunpack.c.h.b16 %v632
        %v975 = vunpack.c.l.b16 %v633
        %v976 = vunpack.c.h.b16 %v633
        %v977 = vunpack.c.l.b16 %v634
        %v978 = vunpack.c.h.b16 %v634
        %v979 = vpack.c.b16 %v919, %v915
        %v980 = vpack.c.b16 %v920, %v916
        %v981 = vpack.c.b16 %v921, %v917
        %v982 = vpack.c.b16 %v922, %v918
        %v983 = vpack.c.b16 %v927, %v923
        %v984 = vpack.c.b16 %v928, %v924
        %v985 = vpack.c.b16 %v929, %v925
        %v986 = vpack.c.b16 %v930, %v926
        %v987 = vpack.c.b16 %v935, %v931
        %v988 = vpack.c.b16 %v936, %v932
        %v989 = vpack.c.b16 %v937, %v933
        %v990 = vpack.c.b16 %v938, %v934
        %v991 = vpack.c.b16 %v943, %v939
        %v992 = vpack.c.b16 %v944, %v940
        %v993 = vpack.c.b16 %v945, %v941
        %v994 = vpack.c.b16 %v946, %v942
        %v995 = vpack.c.b16 %v951, %v947
        %v996 = vpack.c.b16 %v952, %v948
        %v997 = vpack.c.b16 %v953, %v949
        %v998 = vpack.c.b16 %v954, %v950
        %v999 = vpack.c.b16 %v959, %v955
        %v1000 = vpack.c.b16 %v960, %v956
        %v1001 = vpack.c.b16 %v961, %v957
        %v1002 = vpack.c.b16 %v962, %v958
        %v1003 = vpack.c.b16 %v967, %v963
        %v1004 = vpack.c.b16 %v968, %v964
        %v1005 = vpack.c.b16 %v969, %v965
        %v1006 = vpack.c.b16 %v970, %v966
        %v1007 = vpack.c.b16 %v975, %v971
        %v1008 = vpack.c.b16 %v976, %v972
        %v1009 = vpack.c.b16 %v977, %v973
        %v1010 = vpack.c.b16 %v978, %v974
        %1043 = vmatprep.subr.bf16.mxu0 %v980
        %1044 = vmatpush1.bf16.msra.mxu0 %v979
        %1045 = vmatprep.subr.bf16.mxu0 %v984
        %1046 = vmatpush1.bf16.msra.mxu0 %v983
        %1047 = vmatprep.subr.bf16.mxu0 %v988
        %1048 = vmatpush1.bf16.msra.mxu0 %v987
        %1049 = vmatprep.subr.bf16.mxu0 %v992
        %1050 = vmatpush1.bf16.msra.mxu0 %v991
        %1051 = vmatprep.subr.bf16.mxu0 %v996
        %1052 = vmatpush1.bf16.msra.mxu0 %v995
        %1053 = vmatprep.subr.bf16.mxu0 %v1000
        %1054 = vmatpush1.bf16.msra.mxu0 %v999
        %1055 = vmatprep.subr.bf16.mxu0 %v1004
        %1056 = vmatpush1.bf16.msra.mxu0 %v1003
        %1057 = vmatprep.subr.bf16.mxu0 %v1008
        %1058 = vmatpush1.bf16.msra.mxu0 %v1007
        %1059 = vmatprep.subr.bf16.mxu0 0
        %1060 = vmatpush1.bf16.msra.mxu0 0
        %1061 = vmatprep.subr.bf16.mxu0 0
        %1062 = vmatpush1.bf16.msra.mxu0 0
        %1063 = vmatprep.subr.bf16.mxu0 0
        %1064 = vmatpush1.bf16.msra.mxu0 0
        %1065 = vmatprep.subr.bf16.mxu0 0
        %1066 = vmatpush1.bf16.msra.mxu0 0
        %1067 = vmatprep.subr.bf16.mxu0 0
        %1068 = vmatpush1.bf16.msra.mxu0 0
        %1069 = vmatprep.subr.bf16.mxu0 0
        %1070 = vmatpush1.bf16.msra.mxu0 0
        %1071 = vmatprep.subr.bf16.mxu0 0
        %1072 = vmatpush1.bf16.msra.mxu0 0
        %1073 = vmatprep.subr.bf16.mxu0 0
        %1074 = vmatpush1.bf16.msra.mxu0 0
        %1075 = vmatprep.mubr.bf16.mxu0 0
        %1076 = vmatmul.mubr.bf16.gmra.mrb[0].mxu0 %v858
        %v1077 = vpop.f32.mrb[0].mxu0
        %v1078 = vadd.f32 %v866, %v1077
        %v1079 = vpop.f32.mrb[0].mxu0
        %v1080 = vadd.f32 %v870, %v1079
        %v1081 = vpop.f32.mrb[0].mxu0
        %v1082 = vadd.f32 %v866, %v1081
        %v1083 = vpop.f32.mrb[0].mxu0
        %v1084 = vadd.f32 %v870, %v1083
        %1085 = vmatprep.mubr.bf16.mxu0 0
        %1086 = vmatmul.mubr.bf16.gmra.mrb[0].mxu0 %v859
        %v1087 = vpop.f32.mrb[0].mxu0
        %v1088 = vadd.f32 %v866, %v1087
        %v1089 = vpop.f32.mrb[0].mxu0
        %v1090 = vadd.f32 %v870, %v1089
        %v1091 = vpop.f32.mrb[0].mxu0
        %v1092 = vadd.f32 %v866, %v1091
        %v1093 = vpop.f32.mrb[0].mxu0
        %v1094 = vadd.f32 %v870, %v1093
        %1095 = vmatprep.mubr.bf16.mxu0 0
        %1096 = vmatmul.mubr.bf16.gmra.mrb[0].mxu0 %v860
        %v1097 = vpop.f32.mrb[0].mxu0
        %v1098 = vadd.f32 %v866, %v1097
        %v1099 = vpop.f32.mrb[0].mxu0
        %v1100 = vadd.f32 %v870, %v1099
        %v1101 = vpop.f32.mrb[0].mxu0
        %v1102 = vadd.f32 %v866, %v1101
        %v1103 = vpop.f32.mrb[0].mxu0
        %v1104 = vadd.f32 %v870, %v1103
        %1105 = vmatprep.mubr.bf16.mxu0 0
        %1106 = vmatmul.mubr.bf16.gmra.mrb[0].mxu0 %v861
        %v1107 = vpop.f32.mrb[0].mxu0
        %v1108 = vadd.f32 %v866, %v1107
        %v1109 = vpop.f32.mrb[0].mxu0
        %v1110 = vadd.f32 %v870, %v1109
        %v1111 = vpop.f32.mrb[0].mxu0
        %v1112 = vadd.f32 %v866, %v1111
        %v1113 = vpop.f32.mrb[0].mxu0
        %v1114 = vadd.f32 %v870, %v1113
        %1115 = vdwg.mxu0
        %1116 = vmatprep.subr.bf16.mxu0 %v982
        %1117 = vmatpush1.bf16.msra.mxu0 %v981
        %1118 = vmatprep.subr.bf16.mxu0 %v986
        %1119 = vmatpush1.bf16.msra.mxu0 %v985
        %1120 = vmatprep.subr.bf16.mxu0 %v990
        %1121 = vmatpush1.bf16.msra.mxu0 %v989
        %1122 = vmatprep.subr.bf16.mxu0 %v994
        %1123 = vmatpush1.bf16.msra.mxu0 %v993
        %1124 = vmatprep.subr.bf16.mxu0 %v998
        %1125 = vmatpush1.bf16.msra.mxu0 %v997
        %1126 = vmatprep.subr.bf16.mxu0 %v1002
        %1127 = vmatpush1.bf16.msra.mxu0 %v1001
        %1128 = vmatprep.subr.bf16.mxu0 %v1006
        %1129 = vmatpush1.bf16.msra.mxu0 %v1005
        %1130 = vmatprep.subr.bf16.mxu0 %v1010
        %1131 = vmatpush1.bf16.msra.mxu0 %v1009
        %1132 = vmatprep.subr.bf16.mxu0 0
        %1133 = vmatpush1.bf16.msra.mxu0 0
        %1134 = vmatprep.subr.bf16.mxu0 0
        %1135 = vmatpush1.bf16.msra.mxu0 0
        %1136 = vmatprep.subr.bf16.mxu0 0
        %1137 = vmatpush1.bf16.msra.mxu0 0
        %1138 = vmatprep.subr.bf16.mxu0 0
        %1139 = vmatpush1.bf16.msra.mxu0 0
        %1140 = vmatprep.subr.bf16.mxu0 0
        %1141 = vmatpush1.bf16.msra.mxu0 0
        %1142 = vmatprep.subr.bf16.mxu0 0
        %1143 = vmatpush1.bf16.msra.mxu0 0
        %1144 = vmatprep.subr.bf16.mxu0 0
        %1145 = vmatpush1.bf16.msra.mxu0 0
        %1146 = vmatprep.subr.bf16.mxu0 0
        %1147 = vmatpush1.bf16.msra.mxu0 0
        %1148 = vmatprep.mubr.bf16.mxu0 0
        %1149 = vmatmul.mubr.bf16.gmra.mrb[0].mxu0 %v858
        %v1150 = vpop.f32.mrb[0].mxu0
        %v1151 = vadd.f32 %v874, %v1150
        %v1152 = vpop.f32.mrb[0].mxu0
        %v1153 = vadd.f32 %v878, %v1152
        %v1154 = vpop.f32.mrb[0].mxu0
        %v1155 = vadd.f32 %v874, %v1154
        %v1156 = vpop.f32.mrb[0].mxu0
        %v1157 = vadd.f32 %v878, %v1156
        %1158 = vmatprep.mubr.bf16.mxu0 0
        %1159 = vmatmul.mubr.bf16.gmra.mrb[0].mxu0 %v859
        %v1160 = vpop.f32.mrb[0].mxu0
        %v1161 = vadd.f32 %v874, %v1160
        %v1162 = vpop.f32.mrb[0].mxu0
        %v1163 = vadd.f32 %v878, %v1162
        %v1164 = vpop.f32.mrb[0].mxu0
        %v1165 = vadd.f32 %v874, %v1164
        %v1166 = vpop.f32.mrb[0].mxu0
        %v1167 = vadd.f32 %v878, %v1166
        %1168 = vmatprep.mubr.bf16.mxu0 0
        %1169 = vmatmul.mubr.bf16.gmra.mrb[0].mxu0 %v860
        %v1170 = vpop.f32.mrb[0].mxu0
        %v1171 = vadd.f32 %v874, %v1170
        %v1172 = vpop.f32.mrb[0].mxu0
        %v1173 = vadd.f32 %v878, %v1172
        %v1174 = vpop.f32.mrb[0].mxu0
        %v1175 = vadd.f32 %v874, %v1174
        %v1176 = vpop.f32.mrb[0].mxu0
        %v1177 = vadd.f32 %v878, %v1176
        %1178 = vmatprep.mubr.bf16.mxu0 0
        %1179 = vmatmul.mubr.bf16.gmra.mrb[0].mxu0 %v861
        %v1180 = vpop.f32.mrb[0].mxu0
        %v1181 = vadd.f32 %v874, %v1180
        %v1182 = vpop.f32.mrb[0].mxu0
        %v1183 = vadd.f32 %v878, %v1182
        %v1184 = vpop.f32.mrb[0].mxu0
        %v1185 = vadd.f32 %v874, %v1184
        %v1186 = vpop.f32.mrb[0].mxu0
        %v1187 = vadd.f32 %v878, %v1186
        %1188 = vdwg.mxu0
        %1189 = vst [vmem:[#allocation3] sm:$0xff] %v1078
        %1190 = vst [vmem:[#allocation3 + $0x8] sm:$0xff] %v1080
        %1191 = vst [vmem:[#allocation3 + $0x10] sm:$0xff] %v1151
        %1192 = vst [vmem:[#allocation3 + $0x18] sm:$0xff] %v1153
        %1193 = vst [vmem:[#allocation3 + $0x20] sm:$0xff] %v1082
        %1194 = vst [vmem:[#allocation3 + $0x28] sm:$0xff] %v1084
        %1195 = vst [vmem:[#allocation3 + $0x30] sm:$0xff] %v1155
        %1196 = vst [vmem:[#allocation3 + $0x38] sm:$0xff] %v1157
        %1197 = vst [vmem:[#allocation3 + $0x40] sm:$0xff] %v1088
        %1198 = vst [vmem:[#allocation3 + $0x48] sm:$0xff] %v1090
        %1199 = vst [vmem:[#allocation3 + $0x50] sm:$0xff] %v1161
        %1200 = vst [vmem:[#allocation3 + $0x58] sm:$0xff] %v1163
        %1201 = vst [vmem:[#allocation3 + $0x60] sm:$0xff] %v1092
        %1202 = vst [vmem:[#allocation3 + $0x68] sm:$0xff] %v1094
        %1203 = vst [vmem:[#allocation3 + $0x70] sm:$0xff] %v1165
        %1204 = vst [vmem:[#allocation3 + $0x78] sm:$0xff] %v1167
        %1205 = vst [vmem:[#allocation3 + $0x80] sm:$0xff] %v1098
        %1206 = vst [vmem:[#allocation3 + $0x88] sm:$0xff] %v1100
        %1207 = vst [vmem:[#allocation3 + $0x90] sm:$0xff] %v1171
        %1208 = vst [vmem:[#allocation3 + $0x98] sm:$0xff] %v1173
        %1209 = vst [vmem:[#allocation3 + $0xa0] sm:$0xff] %v1102
        %1210 = vst [vmem:[#allocation3 + $0xa8] sm:$0xff] %v1104
        %1211 = vst [vmem:[#allocation3 + $0xb0] sm:$0xff] %v1175
        %1212 = vst [vmem:[#allocation3 + $0xb8] sm:$0xff] %v1177
        %1213 = vst [vmem:[#allocation3 + $0xc0] sm:$0xff] %v1108
        %1214 = vst [vmem:[#allocation3 + $0xc8] sm:$0xff] %v1110
        %1215 = vst [vmem:[#allocation3 + $0xd0] sm:$0xff] %v1181
        %1216 = vst [vmem:[#allocation3 + $0xd8] sm:$0xff] %v1183
        %1217 = vst [vmem:[#allocation3 + $0xe0] sm:$0xff] %v1112
        %1218 = vst [vmem:[#allocation3 + $0xe8] sm:$0xff] %v1114
        %1219 = vst [vmem:[#allocation3 + $0xf0] sm:$0xff] %v1185
        %1220 = vst [vmem:[#allocation3 + $0xf8] sm:$0xff] %v1187
        %s1221 = smul.u32 0, 4
        %s1222 = smul.addr %s1221, 8
        %s1223 = scalar_lea.vmem [#allocation3], %s1222
        %v1224 = vld [vmem:[%s1223] sm:$0xff]
        %v1225 = vld [vmem:[%s1223 + $0x8] sm:$0xff]
        %v1226 = vld [vmem:[%s1223 + $0x10] sm:$0xff]
        %v1227 = vld [vmem:[%s1223 + $0x18] sm:$0xff]
        %v1228 = vpack.c.bf16 %v668, %v668
        %v1261 = vunpack.c.l.b16 %v635
        %v1262 = vunpack.c.h.b16 %v635
        %v1263 = vunpack.c.l.b16 %v636
        %v1264 = vunpack.c.h.b16 %v636
        %v1265 = vunpack.c.l.b16 %v637
        %v1266 = vunpack.c.h.b16 %v637
        %v1267 = vunpack.c.l.b16 %v638
        %v1268 = vunpack.c.h.b16 %v638
        %v1269 = vunpack.c.l.b16 %v639
        %v1270 = vunpack.c.h.b16 %v639
        %v1271 = vunpack.c.l.b16 %v640
        %v1272 = vunpack.c.h.b16 %v640
        %v1273 = vunpack.c.l.b16 %v641
        %v1274 = vunpack.c.h.b16 %v641
        %v1275 = vunpack.c.l.b16 %v642
        %v1276 = vunpack.c.h.b16 %v642
        %v1277 = vunpack.c.l.b16 %v643
        %v1278 = vunpack.c.h.b16 %v643
        %v1279 = vunpack.c.l.b16 %v644
        %v1280 = vunpack.c.h.b16 %v644
        %v1281 = vunpack.c.l.b16 %v645
        %v1282 = vunpack.c.h.b16 %v645
        %v1283 = vunpack.c.l.b16 %v646
        %v1284 = vunpack.c.h.b16 %v646
        %v1285 = vunpack.c.l.b16 %v647
        %v1286 = vunpack.c.h.b16 %v647
        %v1287 = vunpack.c.l.b16 %v648
        %v1288 = vunpack.c.h.b16 %v648
        %v1289 = vunpack.c.l.b16 %v649
        %v1290 = vunpack.c.h.b16 %v649
        %v1291 = vunpack.c.l.b16 %v650
        %v1292 = vunpack.c.h.b16 %v650
        %v1293 = vunpack.c.l.b16 %v651
        %v1294 = vunpack.c.h.b16 %v651
        %v1295 = vunpack.c.l.b16 %v652
        %v1296 = vunpack.c.h.b16 %v652
        %v1297 = vunpack.c.l.b16 %v653
        %v1298 = vunpack.c.h.b16 %v653
        %v1299 = vunpack.c.l.b16 %v654
        %v1300 = vunpack.c.h.b16 %v654
        %v1301 = vunpack.c.l.b16 %v655
        %v1302 = vunpack.c.h.b16 %v655
        %v1303 = vunpack.c.l.b16 %v656
        %v1304 = vunpack.c.h.b16 %v656
        %v1305 = vunpack.c.l.b16 %v657
        %v1306 = vunpack.c.h.b16 %v657
        %v1307 = vunpack.c.l.b16 %v658
        %v1308 = vunpack.c.h.b16 %v658
        %v1309 = vunpack.c.l.b16 %v659
        %v1310 = vunpack.c.h.b16 %v659
        %v1311 = vunpack.c.l.b16 %v660
        %v1312 = vunpack.c.h.b16 %v660
        %v1313 = vunpack.c.l.b16 %v661
        %v1314 = vunpack.c.h.b16 %v661
        %v1315 = vunpack.c.l.b16 %v662
        %v1316 = vunpack.c.h.b16 %v662
        %v1317 = vunpack.c.l.b16 %v663
        %v1318 = vunpack.c.h.b16 %v663
        %v1319 = vunpack.c.l.b16 %v664
        %v1320 = vunpack.c.h.b16 %v664
        %v1321 = vunpack.c.l.b16 %v665
        %v1322 = vunpack.c.h.b16 %v665
        %v1323 = vunpack.c.l.b16 %v666
        %v1324 = vunpack.c.h.b16 %v666
        %v1325 = vpack.c.b16 %v1265, %v1261
        %v1326 = vpack.c.b16 %v1266, %v1262
        %v1327 = vpack.c.b16 %v1267, %v1263
        %v1328 = vpack.c.b16 %v1268, %v1264
        %v1329 = vpack.c.b16 %v1273, %v1269
        %v1330 = vpack.c.b16 %v1274, %v1270
        %v1331 = vpack.c.b16 %v1275, %v1271
        %v1332 = vpack.c.b16 %v1276, %v1272
        %v1333 = vpack.c.b16 %v1281, %v1277
        %v1334 = vpack.c.b16 %v1282, %v1278
        %v1335 = vpack.c.b16 %v1283, %v1279
        %v1336 = vpack.c.b16 %v1284, %v1280
        %v1337 = vpack.c.b16 %v1289, %v1285
        %v1338 = vpack.c.b16 %v1290, %v1286
        %v1339 = vpack.c.b16 %v1291, %v1287
        %v1340 = vpack.c.b16 %v1292, %v1288
        %v1341 = vpack.c.b16 %v1297, %v1293
        %v1342 = vpack.c.b16 %v1298, %v1294
        %v1343 = vpack.c.b16 %v1299, %v1295
        %v1344 = vpack.c.b16 %v1300, %v1296
        %v1345 = vpack.c.b16 %v1305, %v1301
        %v1346 = vpack.c.b16 %v1306, %v1302
        %v1347 = vpack.c.b16 %v1307, %v1303
        %v1348 = vpack.c.b16 %v1308, %v1304
        %v1349 = vpack.c.b16 %v1313, %v1309
        %v1350 = vpack.c.b16 %v1314, %v1310
        %v1351 = vpack.c.b16 %v1315, %v1311
        %v1352 = vpack.c.b16 %v1316, %v1312
        %v1353 = vpack.c.b16 %v1321, %v1317
        %v1354 = vpack.c.b16 %v1322, %v1318
        %v1355 = vpack.c.b16 %v1323, %v1319
        %v1356 = vpack.c.b16 %v1324, %v1320
        %1389 = vmatprep.subr.bf16.mxu0 %v1326
        %1390 = vmatpush1.bf16.msra.mxu0 %v1325
        %1391 = vmatprep.subr.bf16.mxu0 %v1330
        %1392 = vmatpush1.bf16.msra.mxu0 %v1329
        %1393 = vmatprep.subr.bf16.mxu0 %v1334
        %1394 = vmatpush1.bf16.msra.mxu0 %v1333
        %1395 = vmatprep.subr.bf16.mxu0 %v1338
        %1396 = vmatpush1.bf16.msra.mxu0 %v1337
        %1397 = vmatprep.subr.bf16.mxu0 %v1342
        %1398 = vmatpush1.bf16.msra.mxu0 %v1341
        %1399 = vmatprep.subr.bf16.mxu0 %v1346
        %1400 = vmatpush1.bf16.msra.mxu0 %v1345
        %1401 = vmatprep.subr.bf16.mxu0 %v1350
        %1402 = vmatpush1.bf16.msra.mxu0 %v1349
        %1403 = vmatprep.subr.bf16.mxu0 %v1354
        %1404 = vmatpush1.bf16.msra.mxu0 %v1353
        %1405 = vmatprep.subr.bf16.mxu0 0
        %1406 = vmatpush1.bf16.msra.mxu0 0
        %1407 = vmatprep.subr.bf16.mxu0 0
        %1408 = vmatpush1.bf16.msra.mxu0 0
        %1409 = vmatprep.subr.bf16.mxu0 0
        %1410 = vmatpush1.bf16.msra.mxu0 0
        %1411 = vmatprep.subr.bf16.mxu0 0
        %1412 = vmatpush1.bf16.msra.mxu0 0
        %1413 = vmatprep.subr.bf16.mxu0 0
        %1414 = vmatpush1.bf16.msra.mxu0 0
        %1415 = vmatprep.subr.bf16.mxu0 0
        %1416 = vmatpush1.bf16.msra.mxu0 0
        %1417 = vmatprep.subr.bf16.mxu0 0
        %1418 = vmatpush1.bf16.msra.mxu0 0
        %1419 = vmatprep.subr.bf16.mxu0 0
        %1420 = vmatpush1.bf16.msra.mxu0 0
        %1421 = vmatprep.mubr.bf16.mxu0 0
        %1422 = vmatmul.mubr.bf16.gmra.mrb[0].mxu0 %v1228
        %v1423 = vpop.f32.mrb[0].mxu0
        %v1424 = vadd.f32 0.0, %v1423
        %v1425 = vpop.f32.mrb[0].mxu0
        %v1426 = vadd.f32 0.0, %v1425
        %v1427 = vpop.f32.mrb[0].mxu0
        %v1428 = vpop.f32.mrb[0].mxu0
        %1429 = vdwg.mxu0
        %1430 = vmatprep.subr.bf16.mxu0 %v1328
        %1431 = vmatpush1.bf16.msra.mxu0 %v1327
        %1432 = vmatprep.subr.bf16.mxu0 %v1332
        %1433 = vmatpush1.bf16.msra.mxu0 %v1331
        %1434 = vmatprep.subr.bf16.mxu0 %v1336
        %1435 = vmatpush1.bf16.msra.mxu0 %v1335
        %1436 = vmatprep.subr.bf16.mxu0 %v1340
        %1437 = vmatpush1.bf16.msra.mxu0 %v1339
        %1438 = vmatprep.subr.bf16.mxu0 %v1344
        %1439 = vmatpush1.bf16.msra.mxu0 %v1343
        %1440 = vmatprep.subr.bf16.mxu0 %v1348
        %1441 = vmatpush1.bf16.msra.mxu0 %v1347
        %1442 = vmatprep.subr.bf16.mxu0 %v1352
        %1443 = vmatpush1.bf16.msra.mxu0 %v1351
        %1444 = vmatprep.subr.bf16.mxu0 %v1356
        %1445 = vmatpush1.bf16.msra.mxu0 %v1355
        %1446 = vmatprep.subr.bf16.mxu0 0
        %1447 = vmatpush1.bf16.msra.mxu0 0
        %1448 = vmatprep.subr.bf16.mxu0 0
        %1449 = vmatpush1.bf16.msra.mxu0 0
        %1450 = vmatprep.subr.bf16.mxu0 0
        %1451 = vmatpush1.bf16.msra.mxu0 0
        %1452 = vmatprep.subr.bf16.mxu0 0
        %1453 = vmatpush1.bf16.msra.mxu0 0
        %1454 = vmatprep.subr.bf16.mxu0 0
        %1455 = vmatpush1.bf16.msra.mxu0 0
        %1456 = vmatprep.subr.bf16.mxu0 0
        %1457 = vmatpush1.bf16.msra.mxu0 0
        %1458 = vmatprep.subr.bf16.mxu0 0
        %1459 = vmatpush1.bf16.msra.mxu0 0
        %1460 = vmatprep.subr.bf16.mxu0 0
        %1461 = vmatpush1.bf16.msra.mxu0 0
        %1462 = vmatprep.mubr.bf16.mxu0 0
        %1463 = vmatmul.mubr.bf16.gmra.mrb[0].mxu0 %v1228
        %v1464 = vpop.f32.mrb[0].mxu0
        %v1465 = vadd.f32 0.0, %v1464
        %v1466 = vpop.f32.mrb[0].mxu0
        %v1467 = vadd.f32 0.0, %v1466
        %v1468 = vpop.f32.mrb[0].mxu0
        %v1469 = vpop.f32.mrb[0].mxu0
        %1470 = vdwg.mxu0
        %v1471 = vadd.f32 %v1224, %v1424
        %v1472 = vadd.f32 %v1225, %v1426
        %v1473 = vadd.f32 %v1226, %v1465
        %v1474 = vadd.f32 %v1227, %v1467
        %v1475 = vxor.u32 %v1471, 2147483648
        %v1476 = vmul.f32 %v1475, 1.442695
        %v1477 = vpow.pop %v1476
        %v1478 = vadd.f32 %v1477, 1.0
        %v1479 = vrcp.pop %v1478
        %v1480 = vmul.f32 1.0, %v1479
        %v1481 = vxor.u32 %v1472, 2147483648
        %v1482 = vmul.f32 %v1481, 1.442695
        %v1483 = vpow.pop %v1482
        %v1484 = vadd.f32 %v1483, 1.0
        %v1485 = vrcp.pop %v1484
        %v1486 = vmul.f32 1.0, %v1485
        %v1487 = vtanh.pop %v1473
        %v1488 = vxor.u32 %v1474, 2147483648
        %v1489 = vmul.f32 %v1488, 1.442695
        %v1490 = vpow.pop %v1489
        %v1491 = vadd.f32 %v1490, 1.0
        %v1492 = vrcp.pop %v1491
        %v1493 = vmul.f32 1.0, %v1492
        %v1494 = vmul.f32 %v1486, %v669
        %v1495 = vmul.f32 %v1480, %v1487
        %v1496 = vadd.f32 %v1494, %v1495
        %v1497 = vtanh.pop %v1496
        %v1498 = vmul.f32 %v1493, %v1497
        %1499 = vst [vmem:[#allocation2] sm:$0xff] %v1498
        %s1500 = smul.u32 1, 4
        %s1501 = smul.addr %s1500, 8
        %s1502 = scalar_lea.vmem [#allocation3], %s1501
        %v1503 = vld [vmem:[%s1502] sm:$0xff]
        %v1504 = vld [vmem:[%s1502 + $0x8] sm:$0xff]
        %v1505 = vld [vmem:[%s1502 + $0x10] sm:$0xff]
        %v1506 = vld [vmem:[%s1502 + $0x18] sm:$0xff]
        %v1507 = vpack.c.bf16 %v1498, %v1498
        %1508 = vmatprep.subr.bf16.mxu0 %v1326
        %1509 = vmatpush1.bf16.msra.mxu0 %v1325
        %1510 = vmatprep.subr.bf16.mxu0 %v1330
        %1511 = vmatpush1.bf16.msra.mxu0 %v1329
        %1512 = vmatprep.subr.bf16.mxu0 %v1334
        %1513 = vmatpush1.bf16.msra.mxu0 %v1333
        %1514 = vmatprep.subr.bf16.mxu0 %v1338
        %1515 = vmatpush1.bf16.msra.mxu0 %v1337
        %1516 = vmatprep.subr.bf16.mxu0 %v1342
        %1517 = vmatpush1.bf16.msra.mxu0 %v1341
        %1518 = vmatprep.subr.bf16.mxu0 %v1346
        %1519 = vmatpush1.bf16.msra.mxu0 %v1345
        %1520 = vmatprep.subr.bf16.mxu0 %v1350
        %1521 = vmatpush1.bf16.msra.mxu0 %v1349
        %1522 = vmatprep.subr.bf16.mxu0 %v1354
        %1523 = vmatpush1.bf16.msra.mxu0 %v1353
        %1524 = vmatprep.subr.bf16.mxu0 0
        %1525 = vmatpush1.bf16.msra.mxu0 0
        %1526 = vmatprep.subr.bf16.mxu0 0
        %1527 = vmatpush1.bf16.msra.mxu0 0
        %1528 = vmatprep.subr.bf16.mxu0 0
        %1529 = vmatpush1.bf16.msra.mxu0 0
        %1530 = vmatprep.subr.bf16.mxu0 0
        %1531 = vmatpush1.bf16.msra.mxu0 0
        %1532 = vmatprep.subr.bf16.mxu0 0
        %1533 = vmatpush1.bf16.msra.mxu0 0
        %1534 = vmatprep.subr.bf16.mxu0 0
        %1535 = vmatpush1.bf16.msra.mxu0 0
        %1536 = vmatprep.subr.bf16.mxu0 0
        %1537 = vmatpush1.bf16.msra.mxu0 0
        %1538 = vmatprep.subr.bf16.mxu0 0
        %1539 = vmatpush1.bf16.msra.mxu0 0
        %1540 = vmatprep.mubr.bf16.mxu0 0
        %1541 = vmatmul.mubr.bf16.gmra.mrb[0].mxu0 %v1507
        %v1542 = vpop.f32.mrb[0].mxu0
        %v1543 = vadd.f32 0.0, %v1542
        %v1544 = vpop.f32.mrb[0].mxu0
        %v1545 = vadd.f32 0.0, %v1544
        %v1546 = vpop.f32.mrb[0].mxu0
        %v1547 = vpop.f32.mrb[0].mxu0
        %1548 = vdwg.mxu0
        %1549 = vmatprep.subr.bf16.mxu0 %v1328
        %1550 = vmatpush1.bf16.msra.mxu0 %v1327
        %1551 = vmatprep.subr.bf16.mxu0 %v1332
        %1552 = vmatpush1.bf16.msra.mxu0 %v1331
        %1553 = vmatprep.subr.bf16.mxu0 %v1336
        %1554 = vmatpush1.bf16.msra.mxu0 %v1335
        %1555 = vmatprep.subr.bf16.mxu0 %v1340
        %1556 = vmatpush1.bf16.msra.mxu0 %v1339
        %1557 = vmatprep.subr.bf16.mxu0 %v1344
        %1558 = vmatpush1.bf16.msra.mxu0 %v1343
        %1559 = vmatprep.subr.bf16.mxu0 %v1348
        %1560 = vmatpush1.bf16.msra.mxu0 %v1347
        %1561 = vmatprep.subr.bf16.mxu0 %v1352
        %1562 = vmatpush1.bf16.msra.mxu0 %v1351
        %1563 = vmatprep.subr.bf16.mxu0 %v1356
        %1564 = vmatpush1.bf16.msra.mxu0 %v1355
        %1565 = vmatprep.subr.bf16.mxu0 0
        %1566 = vmatpush1.bf16.msra.mxu0 0
        %1567 = vmatprep.subr.bf16.mxu0 0
        %1568 = vmatpush1.bf16.msra.mxu0 0
        %1569 = vmatprep.subr.bf16.mxu0 0
        %1570 = vmatpush1.bf16.msra.mxu0 0
        %1571 = vmatprep.subr.bf16.mxu0 0
        %1572 = vmatpush1.bf16.msra.mxu0 0
        %1573 = vmatprep.subr.bf16.mxu0 0
        %1574 = vmatpush1.bf16.msra.mxu0 0
        %1575 = vmatprep.subr.bf16.mxu0 0
        %1576 = vmatpush1.bf16.msra.mxu0 0
        %1577 = vmatprep.subr.bf16.mxu0 0
        %1578 = vmatpush1.bf16.msra.mxu0 0
        %1579 = vmatprep.subr.bf16.mxu0 0
        %1580 = vmatpush1.bf16.msra.mxu0 0
        %1581 = vmatprep.mubr.bf16.mxu0 0
        %1582 = vmatmul.mubr.bf16.gmra.mrb[0].mxu0 %v1507
        %v1583 = vpop.f32.mrb[0].mxu0
        %v1584 = vadd.f32 0.0, %v1583
        %v1585 = vpop.f32.mrb[0].mxu0
        %v1586 = vadd.f32 0.0, %v1585
        %v1587 = vpop.f32.mrb[0].mxu0
        %v1588 = vpop.f32.mrb[0].mxu0
        %1589 = vdwg.mxu0
        %v1590 = vadd.f32 %v1503, %v1543
        %v1591 = vadd.f32 %v1504, %v1545
        %v1592 = vadd.f32 %v1505, %v1584
        %v1593 = vadd.f32 %v1506, %v1586
        %v1594 = vxor.u32 %v1590, 2147483648
        %v1595 = vmul.f32 %v1594, 1.442695
        %v1596 = vpow.pop %v1595
        %v1597 = vadd.f32 %v1596, 1.0
        %v1598 = vrcp.pop %v1597
        %v1599 = vmul.f32 1.0, %v1598
        %v1600 = vxor.u32 %v1591, 2147483648
        %v1601 = vmul.f32 %v1600, 1.442695
        %v1602 = vpow.pop %v1601
        %v1603 = vadd.f32 %v1602, 1.0
        %v1604 = vrcp.pop %v1603
        %v1605 = vmul.f32 1.0, %v1604
        %v1606 = vtanh.pop %v1592
        %v1607 = vxor.u32 %v1593, 2147483648
        %v1608 = vmul.f32 %v1607, 1.442695
        %v1609 = vpow.pop %v1608
        %v1610 = vadd.f32 %v1609, 1.0
        %v1611 = vrcp.pop %v1610
        %v1612 = vmul.f32 1.0, %v1611
        %v1613 = vmul.f32 %v1605, %v1496
        %v1614 = vmul.f32 %v1599, %v1606
        %v1615 = vadd.f32 %v1613, %v1614
        %v1616 = vtanh.pop %v1615
        %v1617 = vmul.f32 %v1612, %v1616
        %s1618 = scalar_lea.vmem [#allocation2], 8
        %1619 = vst [vmem:[%s1618] sm:$0xff] %v1617
        %s1620 = smul.u32 2, 4
        %s1621 = smul.addr %s1620, 8
        %s1622 = scalar_lea.vmem [#allocation3], %s1621
        %v1623 = vld [vmem:[%s1622] sm:$0xff]
        %v1624 = vld [vmem:[%s1622 + $0x8] sm:$0xff]
        %v1625 = vld [vmem:[%s1622 + $0x10] sm:$0xff]
        %v1626 = vld [vmem:[%s1622 + $0x18] sm:$0xff]
        %v1627 = vpack.c.bf16 %v1617, %v1617
        %1628 = vmatprep.subr.bf16.mxu0 %v1326
        %1629 = vmatpush1.bf16.msra.mxu0 %v1325
        %1630 = vmatprep.subr.bf16.mxu0 %v1330
        %1631 = vmatpush1.bf16.msra.mxu0 %v1329
        %1632 = vmatprep.subr.bf16.mxu0 %v1334
        %1633 = vmatpush1.bf16.msra.mxu0 %v1333
        %1634 = vmatprep.subr.bf16.mxu0 %v1338
        %1635 = vmatpush1.bf16.msra.mxu0 %v1337
        %1636 = vmatprep.subr.bf16.mxu0 %v1342
        %1637 = vmatpush1.bf16.msra.mxu0 %v1341
        %1638 = vmatprep.subr.bf16.mxu0 %v1346
        %1639 = vmatpush1.bf16.msra.mxu0 %v1345
        %1640 = vmatprep.subr.bf16.mxu0 %v1350
        %1641 = vmatpush1.bf16.msra.mxu0 %v1349
        %1642 = vmatprep.subr.bf16.mxu0 %v1354
        %1643 = vmatpush1.bf16.msra.mxu0 %v1353
        %1644 = vmatprep.subr.bf16.mxu0 0
        %1645 = vmatpush1.bf16.msra.mxu0 0
        %1646 = vmatprep.subr.bf16.mxu0 0
        %1647 = vmatpush1.bf16.msra.mxu0 0
        %1648 = vmatprep.subr.bf16.mxu0 0
        %1649 = vmatpush1.bf16.msra.mxu0 0
        %1650 = vmatprep.subr.bf16.mxu0 0
        %1651 = vmatpush1.bf16.msra.mxu0 0
        %1652 = vmatprep.subr.bf16.mxu0 0
        %1653 = vmatpush1.bf16.msra.mxu0 0
        %1654 = vmatprep.subr.bf16.mxu0 0
        %1655 = vmatpush1.bf16.msra.mxu0 0
        %1656 = vmatprep.subr.bf16.mxu0 0
        %1657 = vmatpush1.bf16.msra.mxu0 0
        %1658 = vmatprep.subr.bf16.mxu0 0
        %1659 = vmatpush1.bf16.msra.mxu0 0
        %1660 = vmatprep.mubr.bf16.mxu0 0
        %1661 = vmatmul.mubr.bf16.gmra.mrb[0].mxu0 %v1627
        %v1662 = vpop.f32.mrb[0].mxu0
        %v1663 = vadd.f32 0.0, %v1662
        %v1664 = vpop.f32.mrb[0].mxu0
        %v1665 = vadd.f32 0.0, %v1664
        %v1666 = vpop.f32.mrb[0].mxu0
        %v1667 = vpop.f32.mrb[0].mxu0
        %1668 = vdwg.mxu0
        %1669 = vmatprep.subr.bf16.mxu0 %v1328
        %1670 = vmatpush1.bf16.msra.mxu0 %v1327
        %1671 = vmatprep.subr.bf16.mxu0 %v1332
        %1672 = vmatpush1.bf16.msra.mxu0 %v1331
        %1673 = vmatprep.subr.bf16.mxu0 %v1336
        %1674 = vmatpush1.bf16.msra.mxu0 %v1335
        %1675 = vmatprep.subr.bf16.mxu0 %v1340
        %1676 = vmatpush1.bf16.msra.mxu0 %v1339
        %1677 = vmatprep.subr.bf16.mxu0 %v1344
        %1678 = vmatpush1.bf16.msra.mxu0 %v1343
        %1679 = vmatprep.subr.bf16.mxu0 %v1348
        %1680 = vmatpush1.bf16.msra.mxu0 %v1347
        %1681 = vmatprep.subr.bf16.mxu0 %v1352
        %1682 = vmatpush1.bf16.msra.mxu0 %v1351
        %1683 = vmatprep.subr.bf16.mxu0 %v1356
        %1684 = vmatpush1.bf16.msra.mxu0 %v1355
        %1685 = vmatprep.subr.bf16.mxu0 0
        %1686 = vmatpush1.bf16.msra.mxu0 0
        %1687 = vmatprep.subr.bf16.mxu0 0
        %1688 = vmatpush1.bf16.msra.mxu0 0
        %1689 = vmatprep.subr.bf16.mxu0 0
        %1690 = vmatpush1.bf16.msra.mxu0 0
        %1691 = vmatprep.subr.bf16.mxu0 0
        %1692 = vmatpush1.bf16.msra.mxu0 0
        %1693 = vmatprep.subr.bf16.mxu0 0
        %1694 = vmatpush1.bf16.msra.mxu0 0
        %1695 = vmatprep.subr.bf16.mxu0 0
        %1696 = vmatpush1.bf16.msra.mxu0 0
        %1697 = vmatprep.subr.bf16.mxu0 0
        %1698 = vmatpush1.bf16.msra.mxu0 0
        %1699 = vmatprep.subr.bf16.mxu0 0
        %1700 = vmatpush1.bf16.msra.mxu0 0
        %1701 = vmatprep.mubr.bf16.mxu0 0
        %1702 = vmatmul.mubr.bf16.gmra.mrb[0].mxu0 %v1627
        %v1703 = vpop.f32.mrb[0].mxu0
        %v1704 = vadd.f32 0.0, %v1703
        %v1705 = vpop.f32.mrb[0].mxu0
        %v1706 = vadd.f32 0.0, %v1705
        %v1707 = vpop.f32.mrb[0].mxu0
        %v1708 = vpop.f32.mrb[0].mxu0
        %1709 = vdwg.mxu0
        %v1710 = vadd.f32 %v1623, %v1663
        %v1711 = vadd.f32 %v1624, %v1665
        %v1712 = vadd.f32 %v1625, %v1704
        %v1713 = vadd.f32 %v1626, %v1706
        %v1714 = vxor.u32 %v1710, 2147483648
        %v1715 = vmul.f32 %v1714, 1.442695
        %v1716 = vpow.pop %v1715
        %v1717 = vadd.f32 %v1716, 1.0
        %v1718 = vrcp.pop %v1717
        %v1719 = vmul.f32 1.0, %v1718
        %v1720 = vxor.u32 %v1711, 2147483648
        %v1721 = vmul.f32 %v1720, 1.442695
        %v1722 = vpow.pop %v1721
        %v1723 = vadd.f32 %v1722, 1.0
        %v1724 = vrcp.pop %v1723
        %v1725 = vmul.f32 1.0, %v1724
        %v1726 = vtanh.pop %v1712
        %v1727 = vxor.u32 %v1713, 2147483648
        %v1728 = vmul.f32 %v1727, 1.442695
        %v1729 = vpow.pop %v1728
        %v1730 = vadd.f32 %v1729, 1.0
        %v1731 = vrcp.pop %v1730
        %v1732 = vmul.f32 1.0, %v1731
        %v1733 = vmul.f32 %v1725, %v1615
        %v1734 = vmul.f32 %v1719, %v1726
        %v1735 = vadd.f32 %v1733, %v1734
        %v1736 = vtanh.pop %v1735
        %v1737 = vmul.f32 %v1732, %v1736
        %s1738 = scalar_lea.vmem [#allocation2], 16
        %1739 = vst [vmem:[%s1738] sm:$0xff] %v1737
        %s1740 = smul.u32 3, 4
        %s1741 = smul.addr %s1740, 8
        %s1742 = scalar_lea.vmem [#allocation3], %s1741
        %v1743 = vld [vmem:[%s1742] sm:$0xff]
        %v1744 = vld [vmem:[%s1742 + $0x8] sm:$0xff]
        %v1745 = vld [vmem:[%s1742 + $0x10] sm:$0xff]
        %v1746 = vld [vmem:[%s1742 + $0x18] sm:$0xff]
        %v1747 = vpack.c.bf16 %v1737, %v1737
        %1748 = vmatprep.subr.bf16.mxu0 %v1326
        %1749 = vmatpush1.bf16.msra.mxu0 %v1325
        %1750 = vmatprep.subr.bf16.mxu0 %v1330
        %1751 = vmatpush1.bf16.msra.mxu0 %v1329
        %1752 = vmatprep.subr.bf16.mxu0 %v1334
        %1753 = vmatpush1.bf16.msra.mxu0 %v1333
        %1754 = vmatprep.subr.bf16.mxu0 %v1338
        %1755 = vmatpush1.bf16.msra.mxu0 %v1337
        %1756 = vmatprep.subr.bf16.mxu0 %v1342
        %1757 = vmatpush1.bf16.msra.mxu0 %v1341
        %1758 = vmatprep.subr.bf16.mxu0 %v1346
        %1759 = vmatpush1.bf16.msra.mxu0 %v1345
        %1760 = vmatprep.subr.bf16.mxu0 %v1350
        %1761 = vmatpush1.bf16.msra.mxu0 %v1349
        %1762 = vmatprep.subr.bf16.mxu0 %v1354
        %1763 = vmatpush1.bf16.msra.mxu0 %v1353
        %1764 = vmatprep.subr.bf16.mxu0 0
        %1765 = vmatpush1.bf16.msra.mxu0 0
        %1766 = vmatprep.subr.bf16.mxu0 0
        %1767 = vmatpush1.bf16.msra.mxu0 0
        %1768 = vmatprep.subr.bf16.mxu0 0
        %1769 = vmatpush1.bf16.msra.mxu0 0
        %1770 = vmatprep.subr.bf16.mxu0 0
        %1771 = vmatpush1.bf16.msra.mxu0 0
        %1772 = vmatprep.subr.bf16.mxu0 0
        %1773 = vmatpush1.bf16.msra.mxu0 0
        %1774 = vmatprep.subr.bf16.mxu0 0
        %1775 = vmatpush1.bf16.msra.mxu0 0
        %1776 = vmatprep.subr.bf16.mxu0 0
        %1777 = vmatpush1.bf16.msra.mxu0 0
        %1778 = vmatprep.subr.bf16.mxu0 0
        %1779 = vmatpush1.bf16.msra.mxu0 0
        %1780 = vmatprep.mubr.bf16.mxu0 0
        %1781 = vmatmul.mubr.bf16.gmra.mrb[0].mxu0 %v1747
        %v1782 = vpop.f32.mrb[0].mxu0
        %v1783 = vadd.f32 0.0, %v1782
        %v1784 = vpop.f32.mrb[0].mxu0
        %v1785 = vadd.f32 0.0, %v1784
        %v1786 = vpop.f32.mrb[0].mxu0
        %v1787 = vpop.f32.mrb[0].mxu0
        %1788 = vdwg.mxu0
        %1789 = vmatprep.subr.bf16.mxu0 %v1328
        %1790 = vmatpush1.bf16.msra.mxu0 %v1327
        %1791 = vmatprep.subr.bf16.mxu0 %v1332
        %1792 = vmatpush1.bf16.msra.mxu0 %v1331
        %1793 = vmatprep.subr.bf16.mxu0 %v1336
        %1794 = vmatpush1.bf16.msra.mxu0 %v1335
        %1795 = vmatprep.subr.bf16.mxu0 %v1340
        %1796 = vmatpush1.bf16.msra.mxu0 %v1339
        %1797 = vmatprep.subr.bf16.mxu0 %v1344
        %1798 = vmatpush1.bf16.msra.mxu0 %v1343
        %1799 = vmatprep.subr.bf16.mxu0 %v1348
        %1800 = vmatpush1.bf16.msra.mxu0 %v1347
        %1801 = vmatprep.subr.bf16.mxu0 %v1352
        %1802 = vmatpush1.bf16.msra.mxu0 %v1351
        %1803 = vmatprep.subr.bf16.mxu0 %v1356
        %1804 = vmatpush1.bf16.msra.mxu0 %v1355
        %1805 = vmatprep.subr.bf16.mxu0 0
        %1806 = vmatpush1.bf16.msra.mxu0 0
        %1807 = vmatprep.subr.bf16.mxu0 0
        %1808 = vmatpush1.bf16.msra.mxu0 0
        %1809 = vmatprep.subr.bf16.mxu0 0
        %1810 = vmatpush1.bf16.msra.mxu0 0
        %1811 = vmatprep.subr.bf16.mxu0 0
        %1812 = vmatpush1.bf16.msra.mxu0 0
        %1813 = vmatprep.subr.bf16.mxu0 0
        %1814 = vmatpush1.bf16.msra.mxu0 0
        %1815 = vmatprep.subr.bf16.mxu0 0
        %1816 = vmatpush1.bf16.msra.mxu0 0
        %1817 = vmatprep.subr.bf16.mxu0 0
        %1818 = vmatpush1.bf16.msra.mxu0 0
        %1819 = vmatprep.subr.bf16.mxu0 0
        %1820 = vmatpush1.bf16.msra.mxu0 0
        %1821 = vmatprep.mubr.bf16.mxu0 0
        %1822 = vmatmul.mubr.bf16.gmra.mrb[0].mxu0 %v1747
        %v1823 = vpop.f32.mrb[0].mxu0
        %v1824 = vadd.f32 0.0, %v1823
        %v1825 = vpop.f32.mrb[0].mxu0
        %v1826 = vadd.f32 0.0, %v1825
        %v1827 = vpop.f32.mrb[0].mxu0
        %v1828 = vpop.f32.mrb[0].mxu0
        %1829 = vdwg.mxu0
        %v1830 = vadd.f32 %v1743, %v1783
        %v1831 = vadd.f32 %v1744, %v1785
        %v1832 = vadd.f32 %v1745, %v1824
        %v1833 = vadd.f32 %v1746, %v1826
        %v1834 = vxor.u32 %v1830, 2147483648
        %v1835 = vmul.f32 %v1834, 1.442695
        %v1836 = vpow.pop %v1835
        %v1837 = vadd.f32 %v1836, 1.0
        %v1838 = vrcp.pop %v1837
        %v1839 = vmul.f32 1.0, %v1838
        %v1840 = vxor.u32 %v1831, 2147483648
        %v1841 = vmul.f32 %v1840, 1.442695
        %v1842 = vpow.pop %v1841
        %v1843 = vadd.f32 %v1842, 1.0
        %v1844 = vrcp.pop %v1843
        %v1845 = vmul.f32 1.0, %v1844
        %v1846 = vtanh.pop %v1832
        %v1847 = vxor.u32 %v1833, 2147483648
        %v1848 = vmul.f32 %v1847, 1.442695
        %v1849 = vpow.pop %v1848
        %v1850 = vadd.f32 %v1849, 1.0
        %v1851 = vrcp.pop %v1850
        %v1852 = vmul.f32 1.0, %v1851
        %v1853 = vmul.f32 %v1845, %v1735
        %v1854 = vmul.f32 %v1839, %v1846
        %v1855 = vadd.f32 %v1853, %v1854
        %v1856 = vtanh.pop %v1855
        %v1857 = vmul.f32 %v1852, %v1856
        %s1858 = scalar_lea.vmem [#allocation2], 24
        %1859 = vst [vmem:[%s1858] sm:$0xff] %v1857
        %s1860 = smul.u32 4, 4
        %s1861 = smul.addr %s1860, 8
        %s1862 = scalar_lea.vmem [#allocation3], %s1861
        %v1863 = vld [vmem:[%s1862] sm:$0xff]
        %v1864 = vld [vmem:[%s1862 + $0x8] sm:$0xff]
        %v1865 = vld [vmem:[%s1862 + $0x10] sm:$0xff]
        %v1866 = vld [vmem:[%s1862 + $0x18] sm:$0xff]
        %v1867 = vpack.c.bf16 %v1857, %v1857
        %1868 = vmatprep.subr.bf16.mxu0 %v1326
        %1869 = vmatpush1.bf16.msra.mxu0 %v1325
        %1870 = vmatprep.subr.bf16.mxu0 %v1330
        %1871 = vmatpush1.bf16.msra.mxu0 %v1329
        %1872 = vmatprep.subr.bf16.mxu0 %v1334
        %1873 = vmatpush1.bf16.msra.mxu0 %v1333
        %1874 = vmatprep.subr.bf16.mxu0 %v1338
        %1875 = vmatpush1.bf16.msra.mxu0 %v1337
        %1876 = vmatprep.subr.bf16.mxu0 %v1342
        %1877 = vmatpush1.bf16.msra.mxu0 %v1341
        %1878 = vmatprep.subr.bf16.mxu0 %v1346
        %1879 = vmatpush1.bf16.msra.mxu0 %v1345
        %1880 = vmatprep.subr.bf16.mxu0 %v1350
        %1881 = vmatpush1.bf16.msra.mxu0 %v1349
        %1882 = vmatprep.subr.bf16.mxu0 %v1354
        %1883 = vmatpush1.bf16.msra.mxu0 %v1353
        %1884 = vmatprep.subr.bf16.mxu0 0
        %1885 = vmatpush1.bf16.msra.mxu0 0
        %1886 = vmatprep.subr.bf16.mxu0 0
        %1887 = vmatpush1.bf16.msra.mxu0 0
        %1888 = vmatprep.subr.bf16.mxu0 0
        %1889 = vmatpush1.bf16.msra.mxu0 0
        %1890 = vmatprep.subr.bf16.mxu0 0
        %1891 = vmatpush1.bf16.msra.mxu0 0
        %1892 = vmatprep.subr.bf16.mxu0 0
        %1893 = vmatpush1.bf16.msra.mxu0 0
        %1894 = vmatprep.subr.bf16.mxu0 0
        %1895 = vmatpush1.bf16.msra.mxu0 0
        %1896 = vmatprep.subr.bf16.mxu0 0
        %1897 = vmatpush1.bf16.msra.mxu0 0
        %1898 = vmatprep.subr.bf16.mxu0 0
        %1899 = vmatpush1.bf16.msra.mxu0 0
        %1900 = vmatprep.mubr.bf16.mxu0 0
        %1901 = vmatmul.mubr.bf16.gmra.mrb[0].mxu0 %v1867
        %v1902 = vpop.f32.mrb[0].mxu0
        %v1903 = vadd.f32 0.0, %v1902
        %v1904 = vpop.f32.mrb[0].mxu0
        %v1905 = vadd.f32 0.0, %v1904
        %v1906 = vpop.f32.mrb[0].mxu0
        %v1907 = vpop.f32.mrb[0].mxu0
        %1908 = vdwg.mxu0
        %1909 = vmatprep.subr.bf16.mxu0 %v1328
        %1910 = vmatpush1.bf16.msra.mxu0 %v1327
        %1911 = vmatprep.subr.bf16.mxu0 %v1332
        %1912 = vmatpush1.bf16.msra.mxu0 %v1331
        %1913 = vmatprep.subr.bf16.mxu0 %v1336
        %1914 = vmatpush1.bf16.msra.mxu0 %v1335
        %1915 = vmatprep.subr.bf16.mxu0 %v1340
        %1916 = vmatpush1.bf16.msra.mxu0 %v1339
        %1917 = vmatprep.subr.bf16.mxu0 %v1344
        %1918 = vmatpush1.bf16.msra.mxu0 %v1343
        %1919 = vmatprep.subr.bf16.mxu0 %v1348
        %1920 = vmatpush1.bf16.msra.mxu0 %v1347
        %1921 = vmatprep.subr.bf16.mxu0 %v1352
        %1922 = vmatpush1.bf16.msra.mxu0 %v1351
        %1923 = vmatprep.subr.bf16.mxu0 %v1356
        %1924 = vmatpush1.bf16.msra.mxu0 %v1355
        %1925 = vmatprep.subr.bf16.mxu0 0
        %1926 = vmatpush1.bf16.msra.mxu0 0
        %1927 = vmatprep.subr.bf16.mxu0 0
        %1928 = vmatpush1.bf16.msra.mxu0 0
        %1929 = vmatprep.subr.bf16.mxu0 0
        %1930 = vmatpush1.bf16.msra.mxu0 0
        %1931 = vmatprep.subr.bf16.mxu0 0
        %1932 = vmatpush1.bf16.msra.mxu0 0
        %1933 = vmatprep.subr.bf16.mxu0 0
        %1934 = vmatpush1.bf16.msra.mxu0 0
        %1935 = vmatprep.subr.bf16.mxu0 0
        %1936 = vmatpush1.bf16.msra.mxu0 0
        %1937 = vmatprep.subr.bf16.mxu0 0
        %1938 = vmatpush1.bf16.msra.mxu0 0
        %1939 = vmatprep.subr.bf16.mxu0 0
        %1940 = vmatpush1.bf16.msra.mxu0 0
        %1941 = vmatprep.mubr.bf16.mxu0 0
        %1942 = vmatmul.mubr.bf16.gmra.mrb[0].mxu0 %v1867
        %v1943 = vpop.f32.mrb[0].mxu0
        %v1944 = vadd.f32 0.0, %v1943
        %v1945 = vpop.f32.mrb[0].mxu0
        %v1946 = vadd.f32 0.0, %v1945
        %v1947 = vpop.f32.mrb[0].mxu0
        %v1948 = vpop.f32.mrb[0].mxu0
        %1949 = vdwg.mxu0
        %v1950 = vadd.f32 %v1863, %v1903
        %v1951 = vadd.f32 %v1864, %v1905
        %v1952 = vadd.f32 %v1865, %v1944
        %v1953 = vadd.f32 %v1866, %v1946
        %v1954 = vxor.u32 %v1950, 2147483648
        %v1955 = vmul.f32 %v1954, 1.442695
        %v1956 = vpow.pop %v1955
        %v1957 = vadd.f32 %v1956, 1.0
        %v1958 = vrcp.pop %v1957
        %v1959 = vmul.f32 1.0, %v1958
        %v1960 = vxor.u32 %v1951, 2147483648
        %v1961 = vmul.f32 %v1960, 1.442695
        %v1962 = vpow.pop %v1961
        %v1963 = vadd.f32 %v1962, 1.0
        %v1964 = vrcp.pop %v1963
        %v1965 = vmul.f32 1.0, %v1964
        %v1966 = vtanh.pop %v1952
        %v1967 = vxor.u32 %v1953, 2147483648
        %v1968 = vmul.f32 %v1967, 1.442695
        %v1969 = vpow.pop %v1968
        %v1970 = vadd.f32 %v1969, 1.0
        %v1971 = vrcp.pop %v1970
        %v1972 = vmul.f32 1.0, %v1971
        %v1973 = vmul.f32 %v1965, %v1855
        %v1974 = vmul.f32 %v1959, %v1966
        %v1975 = vadd.f32 %v1973, %v1974
        %v1976 = vtanh.pop %v1975
        %v1977 = vmul.f32 %v1972, %v1976
        %s1978 = scalar_lea.vmem [#allocation2], 32
        %1979 = vst [vmem:[%s1978] sm:$0xff] %v1977
        %s1980 = smul.u32 5, 4
        %s1981 = smul.addr %s1980, 8
        %s1982 = scalar_lea.vmem [#allocation3], %s1981
        %v1983 = vld [vmem:[%s1982] sm:$0xff]
        %v1984 = vld [vmem:[%s1982 + $0x8] sm:$0xff]
        %v1985 = vld [vmem:[%s1982 + $0x10] sm:$0xff]
        %v1986 = vld [vmem:[%s1982 + $0x18] sm:$0xff]
        %v1987 = vpack.c.bf16 %v1977, %v1977
        %1988 = vmatprep.subr.bf16.mxu0 %v1326
        %1989 = vmatpush1.bf16.msra.mxu0 %v1325
        %1990 = vmatprep.subr.bf16.mxu0 %v1330
        %1991 = vmatpush1.bf16.msra.mxu0 %v1329
        %1992 = vmatprep.subr.bf16.mxu0 %v1334
        %1993 = vmatpush1.bf16.msra.mxu0 %v1333
        %1994 = vmatprep.subr.bf16.mxu0 %v1338
        %1995 = vmatpush1.bf16.msra.mxu0 %v1337
        %1996 = vmatprep.subr.bf16.mxu0 %v1342
        %1997 = vmatpush1.bf16.msra.mxu0 %v1341
        %1998 = vmatprep.subr.bf16.mxu0 %v1346
        %1999 = vmatpush1.bf16.msra.mxu0 %v1345
        %2000 = vmatprep.subr.bf16.mxu0 %v1350
        %2001 = vmatpush1.bf16.msra.mxu0 %v1349
        %2002 = vmatprep.subr.bf16.mxu0 %v1354
        %2003 = vmatpush1.bf16.msra.mxu0 %v1353
        %2004 = vmatprep.subr.bf16.mxu0 0
        %2005 = vmatpush1.bf16.msra.mxu0 0
        %2006 = vmatprep.subr.bf16.mxu0 0
        %2007 = vmatpush1.bf16.msra.mxu0 0
        %2008 = vmatprep.subr.bf16.mxu0 0
        %2009 = vmatpush1.bf16.msra.mxu0 0
        %2010 = vmatprep.subr.bf16.mxu0 0
        %2011 = vmatpush1.bf16.msra.mxu0 0
        %2012 = vmatprep.subr.bf16.mxu0 0
        %2013 = vmatpush1.bf16.msra.mxu0 0
        %2014 = vmatprep.subr.bf16.mxu0 0
        %2015 = vmatpush1.bf16.msra.mxu0 0
        %2016 = vmatprep.subr.bf16.mxu0 0
        %2017 = vmatpush1.bf16.msra.mxu0 0
        %2018 = vmatprep.subr.bf16.mxu0 0
        %2019 = vmatpush1.bf16.msra.mxu0 0
        %2020 = vmatprep.mubr.bf16.mxu0 0
        %2021 = vmatmul.mubr.bf16.gmra.mrb[0].mxu0 %v1987
        %v2022 = vpop.f32.mrb[0].mxu0
        %v2023 = vadd.f32 0.0, %v2022
        %v2024 = vpop.f32.mrb[0].mxu0
        %v2025 = vadd.f32 0.0, %v2024
        %v2026 = vpop.f32.mrb[0].mxu0
        %v2027 = vpop.f32.mrb[0].mxu0
        %2028 = vdwg.mxu0
        %2029 = vmatprep.subr.bf16.mxu0 %v1328
        %2030 = vmatpush1.bf16.msra.mxu0 %v1327
        %2031 = vmatprep.subr.bf16.mxu0 %v1332
        %2032 = vmatpush1.bf16.msra.mxu0 %v1331
        %2033 = vmatprep.subr.bf16.mxu0 %v1336
        %2034 = vmatpush1.bf16.msra.mxu0 %v1335
        %2035 = vmatprep.subr.bf16.mxu0 %v1340
        %2036 = vmatpush1.bf16.msra.mxu0 %v1339
        %2037 = vmatprep.subr.bf16.mxu0 %v1344
        %2038 = vmatpush1.bf16.msra.mxu0 %v1343
        %2039 = vmatprep.subr.bf16.mxu0 %v1348
        %2040 = vmatpush1.bf16.msra.mxu0 %v1347
        %2041 = vmatprep.subr.bf16.mxu0 %v1352
        %2042 = vmatpush1.bf16.msra.mxu0 %v1351
        %2043 = vmatprep.subr.bf16.mxu0 %v1356
        %2044 = vmatpush1.bf16.msra.mxu0 %v1355
        %2045 = vmatprep.subr.bf16.mxu0 0
        %2046 = vmatpush1.bf16.msra.mxu0 0
        %2047 = vmatprep.subr.bf16.mxu0 0
        %2048 = vmatpush1.bf16.msra.mxu0 0
        %2049 = vmatprep.subr.bf16.mxu0 0
        %2050 = vmatpush1.bf16.msra.mxu0 0
        %2051 = vmatprep.subr.bf16.mxu0 0
        %2052 = vmatpush1.bf16.msra.mxu0 0
        %2053 = vmatprep.subr.bf16.mxu0 0
        %2054 = vmatpush1.bf16.msra.mxu0 0
        %2055 = vmatprep.subr.bf16.mxu0 0
        %2056 = vmatpush1.bf16.msra.mxu0 0
        %2057 = vmatprep.subr.bf16.mxu0 0
        %2058 = vmatpush1.bf16.msra.mxu0 0
        %2059 = vmatprep.subr.bf16.mxu0 0
        %2060 = vmatpush1.bf16.msra.mxu0 0
        %2061 = vmatprep.mubr.bf16.mxu0 0
        %2062 = vmatmul.mubr.bf16.gmra.mrb[0].mxu0 %v1987
        %v2063 = vpop.f32.mrb[0].mxu0
        %v2064 = vadd.f32 0.0, %v2063
        %v2065 = vpop.f32.mrb[0].mxu0
        %v2066 = vadd.f32 0.0, %v2065
        %v2067 = vpop.f32.mrb[0].mxu0
        %v2068 = vpop.f32.mrb[0].mxu0
        %2069 = vdwg.mxu0
        %v2070 = vadd.f32 %v1983, %v2023
        %v2071 = vadd.f32 %v1984, %v2025
        %v2072 = vadd.f32 %v1985, %v2064
        %v2073 = vadd.f32 %v1986, %v2066
        %v2074 = vxor.u32 %v2070, 2147483648
        %v2075 = vmul.f32 %v2074, 1.442695
        %v2076 = vpow.pop %v2075
        %v2077 = vadd.f32 %v2076, 1.0
        %v2078 = vrcp.pop %v2077
        %v2079 = vmul.f32 1.0, %v2078
        %v2080 = vxor.u32 %v2071, 2147483648
        %v2081 = vmul.f32 %v2080, 1.442695
        %v2082 = vpow.pop %v2081
        %v2083 = vadd.f32 %v2082, 1.0
        %v2084 = vrcp.pop %v2083
        %v2085 = vmul.f32 1.0, %v2084
        %v2086 = vtanh.pop %v2072
        %v2087 = vxor.u32 %v2073, 2147483648
        %v2088 = vmul.f32 %v2087, 1.442695
        %v2089 = vpow.pop %v2088
        %v2090 = vadd.f32 %v2089, 1.0
        %v2091 = vrcp.pop %v2090
        %v2092 = vmul.f32 1.0, %v2091
        %v2093 = vmul.f32 %v2085, %v1975
        %v2094 = vmul.f32 %v2079, %v2086
        %v2095 = vadd.f32 %v2093, %v2094
        %v2096 = vtanh.pop %v2095
        %v2097 = vmul.f32 %v2092, %v2096
        %s2098 = scalar_lea.vmem [#allocation2], 40
        %2099 = vst [vmem:[%s2098] sm:$0xff] %v2097
        %s2100 = smul.u32 6, 4
        %s2101 = smul.addr %s2100, 8
        %s2102 = scalar_lea.vmem [#allocation3], %s2101
        %v2103 = vld [vmem:[%s2102] sm:$0xff]
        %v2104 = vld [vmem:[%s2102 + $0x8] sm:$0xff]
        %v2105 = vld [vmem:[%s2102 + $0x10] sm:$0xff]
        %v2106 = vld [vmem:[%s2102 + $0x18] sm:$0xff]
        %v2107 = vpack.c.bf16 %v2097, %v2097
        %2108 = vmatprep.subr.bf16.mxu0 %v1326
        %2109 = vmatpush1.bf16.msra.mxu0 %v1325
        %2110 = vmatprep.subr.bf16.mxu0 %v1330
        %2111 = vmatpush1.bf16.msra.mxu0 %v1329
        %2112 = vmatprep.subr.bf16.mxu0 %v1334
        %2113 = vmatpush1.bf16.msra.mxu0 %v1333
        %2114 = vmatprep.subr.bf16.mxu0 %v1338
        %2115 = vmatpush1.bf16.msra.mxu0 %v1337
        %2116 = vmatprep.subr.bf16.mxu0 %v1342
        %2117 = vmatpush1.bf16.msra.mxu0 %v1341
        %2118 = vmatprep.subr.bf16.mxu0 %v1346
        %2119 = vmatpush1.bf16.msra.mxu0 %v1345
        %2120 = vmatprep.subr.bf16.mxu0 %v1350
        %2121 = vmatpush1.bf16.msra.mxu0 %v1349
        %2122 = vmatprep.subr.bf16.mxu0 %v1354
        %2123 = vmatpush1.bf16.msra.mxu0 %v1353
        %2124 = vmatprep.subr.bf16.mxu0 0
        %2125 = vmatpush1.bf16.msra.mxu0 0
        %2126 = vmatprep.subr.bf16.mxu0 0
        %2127 = vmatpush1.bf16.msra.mxu0 0
        %2128 = vmatprep.subr.bf16.mxu0 0
        %2129 = vmatpush1.bf16.msra.mxu0 0
        %2130 = vmatprep.subr.bf16.mxu0 0
        %2131 = vmatpush1.bf16.msra.mxu0 0
        %2132 = vmatprep.subr.bf16.mxu0 0
        %2133 = vmatpush1.bf16.msra.mxu0 0
        %2134 = vmatprep.subr.bf16.mxu0 0
        %2135 = vmatpush1.bf16.msra.mxu0 0
        %2136 = vmatprep.subr.bf16.mxu0 0
        %2137 = vmatpush1.bf16.msra.mxu0 0
        %2138 = vmatprep.subr.bf16.mxu0 0
        %2139 = vmatpush1.bf16.msra.mxu0 0
        %2140 = vmatprep.mubr.bf16.mxu0 0
        %2141 = vmatmul.mubr.bf16.gmra.mrb[0].mxu0 %v2107
        %v2142 = vpop.f32.mrb[0].mxu0
        %v2143 = vadd.f32 0.0, %v2142
        %v2144 = vpop.f32.mrb[0].mxu0
        %v2145 = vadd.f32 0.0, %v2144
        %v2146 = vpop.f32.mrb[0].mxu0
        %v2147 = vpop.f32.mrb[0].mxu0
        %2148 = vdwg.mxu0
        %2149 = vmatprep.subr.bf16.mxu0 %v1328
        %2150 = vmatpush1.bf16.msra.mxu0 %v1327
        %2151 = vmatprep.subr.bf16.mxu0 %v1332
        %2152 = vmatpush1.bf16.msra.mxu0 %v1331
        %2153 = vmatprep.subr.bf16.mxu0 %v1336
        %2154 = vmatpush1.bf16.msra.mxu0 %v1335
        %2155 = vmatprep.subr.bf16.mxu0 %v1340
        %2156 = vmatpush1.bf16.msra.mxu0 %v1339
        %2157 = vmatprep.subr.bf16.mxu0 %v1344
        %2158 = vmatpush1.bf16.msra.mxu0 %v1343
        %2159 = vmatprep.subr.bf16.mxu0 %v1348
        %2160 = vmatpush1.bf16.msra.mxu0 %v1347
        %2161 = vmatprep.subr.bf16.mxu0 %v1352
        %2162 = vmatpush1.bf16.msra.mxu0 %v1351
        %2163 = vmatprep.subr.bf16.mxu0 %v1356
        %2164 = vmatpush1.bf16.msra.mxu0 %v1355
        %2165 = vmatprep.subr.bf16.mxu0 0
        %2166 = vmatpush1.bf16.msra.mxu0 0
        %2167 = vmatprep.subr.bf16.mxu0 0
        %2168 = vmatpush1.bf16.msra.mxu0 0
        %2169 = vmatprep.subr.bf16.mxu0 0
        %2170 = vmatpush1.bf16.msra.mxu0 0
        %2171 = vmatprep.subr.bf16.mxu0 0
        %2172 = vmatpush1.bf16.msra.mxu0 0
        %2173 = vmatprep.subr.bf16.mxu0 0
        %2174 = vmatpush1.bf16.msra.mxu0 0
        %2175 = vmatprep.subr.bf16.mxu0 0
        %2176 = vmatpush1.bf16.msra.mxu0 0
        %2177 = vmatprep.subr.bf16.mxu0 0
        %2178 = vmatpush1.bf16.msra.mxu0 0
        %2179 = vmatprep.subr.bf16.mxu0 0
        %2180 = vmatpush1.bf16.msra.mxu0 0
        %2181 = vmatprep.mubr.bf16.mxu0 0
        %2182 = vmatmul.mubr.bf16.gmra.mrb[0].mxu0 %v2107
        %v2183 = vpop.f32.mrb[0].mxu0
        %v2184 = vadd.f32 0.0, %v2183
        %v2185 = vpop.f32.mrb[0].mxu0
        %v2186 = vadd.f32 0.0, %v2185
        %v2187 = vpop.f32.mrb[0].mxu0
        %v2188 = vpop.f32.mrb[0].mxu0
        %2189 = vdwg.mxu0
        %v2190 = vadd.f32 %v2103, %v2143
        %v2191 = vadd.f32 %v2104, %v2145
        %v2192 = vadd.f32 %v2105, %v2184
        %v2193 = vadd.f32 %v2106, %v2186
        %v2194 = vxor.u32 %v2190, 2147483648
        %v2195 = vmul.f32 %v2194, 1.442695
        %v2196 = vpow.pop %v2195
        %v2197 = vadd.f32 %v2196, 1.0
        %v2198 = vrcp.pop %v2197
        %v2199 = vmul.f32 1.0, %v2198
        %v2200 = vxor.u32 %v2191, 2147483648
        %v2201 = vmul.f32 %v2200, 1.442695
        %v2202 = vpow.pop %v2201
        %v2203 = vadd.f32 %v2202, 1.0
        %v2204 = vrcp.pop %v2203
        %v2205 = vmul.f32 1.0, %v2204
        %v2206 = vtanh.pop %v2192
        %v2207 = vxor.u32 %v2193, 2147483648
        %v2208 = vmul.f32 %v2207, 1.442695
        %v2209 = vpow.pop %v2208
        %v2210 = vadd.f32 %v2209, 1.0
        %v2211 = vrcp.pop %v2210
        %v2212 = vmul.f32 1.0, %v2211
        %v2213 = vmul.f32 %v2205, %v2095
        %v2214 = vmul.f32 %v2199, %v2206
        %v2215 = vadd.f32 %v2213, %v2214
        %v2216 = vtanh.pop %v2215
        %v2217 = vmul.f32 %v2212, %v2216
        %s2218 = scalar_lea.vmem [#allocation2], 48
        %2219 = vst [vmem:[%s2218] sm:$0xff] %v2217
        %s2220 = smul.u32 7, 4
        %s2221 = smul.addr %s2220, 8
        %s2222 = scalar_lea.vmem [#allocation3], %s2221
        %v2223 = vld [vmem:[%s2222] sm:$0xff]
        %v2224 = vld [vmem:[%s2222 + $0x8] sm:$0xff]
        %v2225 = vld [vmem:[%s2222 + $0x10] sm:$0xff]
        %v2226 = vld [vmem:[%s2222 + $0x18] sm:$0xff]
        %v2227 = vpack.c.bf16 %v2217, %v2217
        %2228 = vmatprep.subr.bf16.mxu0 %v1326
        %2229 = vmatpush1.bf16.msra.mxu0 %v1325
        %2230 = vmatprep.subr.bf16.mxu0 %v1330
        %2231 = vmatpush1.bf16.msra.mxu0 %v1329
        %2232 = vmatprep.subr.bf16.mxu0 %v1334
        %2233 = vmatpush1.bf16.msra.mxu0 %v1333
        %2234 = vmatprep.subr.bf16.mxu0 %v1338
        %2235 = vmatpush1.bf16.msra.mxu0 %v1337
        %2236 = vmatprep.subr.bf16.mxu0 %v1342
        %2237 = vmatpush1.bf16.msra.mxu0 %v1341
        %2238 = vmatprep.subr.bf16.mxu0 %v1346
        %2239 = vmatpush1.bf16.msra.mxu0 %v1345
        %2240 = vmatprep.subr.bf16.mxu0 %v1350
        %2241 = vmatpush1.bf16.msra.mxu0 %v1349
        %2242 = vmatprep.subr.bf16.mxu0 %v1354
        %2243 = vmatpush1.bf16.msra.mxu0 %v1353
        %2244 = vmatprep.subr.bf16.mxu0 0
        %2245 = vmatpush1.bf16.msra.mxu0 0
        %2246 = vmatprep.subr.bf16.mxu0 0
        %2247 = vmatpush1.bf16.msra.mxu0 0
        %2248 = vmatprep.subr.bf16.mxu0 0
        %2249 = vmatpush1.bf16.msra.mxu0 0
        %2250 = vmatprep.subr.bf16.mxu0 0
        %2251 = vmatpush1.bf16.msra.mxu0 0
        %2252 = vmatprep.subr.bf16.mxu0 0
        %2253 = vmatpush1.bf16.msra.mxu0 0
        %2254 = vmatprep.subr.bf16.mxu0 0
        %2255 = vmatpush1.bf16.msra.mxu0 0
        %2256 = vmatprep.subr.bf16.mxu0 0
        %2257 = vmatpush1.bf16.msra.mxu0 0
        %2258 = vmatprep.subr.bf16.mxu0 0
        %2259 = vmatpush1.bf16.msra.mxu0 0
        %2260 = vmatprep.mubr.bf16.mxu0 0
        %2261 = vmatmul.mubr.bf16.gmra.mrb[0].mxu0 %v2227
        %v2262 = vpop.f32.mrb[0].mxu0
        %v2263 = vadd.f32 0.0, %v2262
        %v2264 = vpop.f32.mrb[0].mxu0
        %v2265 = vadd.f32 0.0, %v2264
        %v2266 = vpop.f32.mrb[0].mxu0
        %v2267 = vpop.f32.mrb[0].mxu0
        %2268 = vdwg.mxu0
        %2269 = vmatprep.subr.bf16.mxu0 %v1328
        %2270 = vmatpush1.bf16.msra.mxu0 %v1327
        %2271 = vmatprep.subr.bf16.mxu0 %v1332
        %2272 = vmatpush1.bf16.msra.mxu0 %v1331
        %2273 = vmatprep.subr.bf16.mxu0 %v1336
        %2274 = vmatpush1.bf16.msra.mxu0 %v1335
        %2275 = vmatprep.subr.bf16.mxu0 %v1340
        %2276 = vmatpush1.bf16.msra.mxu0 %v1339
        %2277 = vmatprep.subr.bf16.mxu0 %v1344
        %2278 = vmatpush1.bf16.msra.mxu0 %v1343
        %2279 = vmatprep.subr.bf16.mxu0 %v1348
        %2280 = vmatpush1.bf16.msra.mxu0 %v1347
        %2281 = vmatprep.subr.bf16.mxu0 %v1352
        %2282 = vmatpush1.bf16.msra.mxu0 %v1351
        %2283 = vmatprep.subr.bf16.mxu0 %v1356
        %2284 = vmatpush1.bf16.msra.mxu0 %v1355
        %2285 = vmatprep.subr.bf16.mxu0 0
        %2286 = vmatpush1.bf16.msra.mxu0 0
        %2287 = vmatprep.subr.bf16.mxu0 0
        %2288 = vmatpush1.bf16.msra.mxu0 0
        %2289 = vmatprep.subr.bf16.mxu0 0
        %2290 = vmatpush1.bf16.msra.mxu0 0
        %2291 = vmatprep.subr.bf16.mxu0 0
        %2292 = vmatpush1.bf16.msra.mxu0 0
        %2293 = vmatprep.subr.bf16.mxu0 0
        %2294 = vmatpush1.bf16.msra.mxu0 0
        %2295 = vmatprep.subr.bf16.mxu0 0
        %2296 = vmatpush1.bf16.msra.mxu0 0
        %2297 = vmatprep.subr.bf16.mxu0 0
        %2298 = vmatpush1.bf16.msra.mxu0 0
        %2299 = vmatprep.subr.bf16.mxu0 0
        %2300 = vmatpush1.bf16.msra.mxu0 0
        %2301 = vmatprep.mubr.bf16.mxu0 0
        %2302 = vmatmul.mubr.bf16.gmra.mrb[0].mxu0 %v2227
        %v2303 = vpop.f32.mrb[0].mxu0
        %v2304 = vadd.f32 0.0, %v2303
        %v2305 = vpop.f32.mrb[0].mxu0
        %v2306 = vadd.f32 0.0, %v2305
        %v2307 = vpop.f32.mrb[0].mxu0
        %v2308 = vpop.f32.mrb[0].mxu0
        %2309 = vdwg.mxu0
        %v2310 = vadd.f32 %v2223, %v2263
        %v2311 = vadd.f32 %v2224, %v2265
        %v2312 = vadd.f32 %v2225, %v2304
        %v2313 = vadd.f32 %v2226, %v2306
        %v2314 = vxor.u32 %v2310, 2147483648
        %v2315 = vmul.f32 %v2314, 1.442695
        %v2316 = vpow.pop %v2315
        %v2317 = vadd.f32 %v2316, 1.0
        %v2318 = vrcp.pop %v2317
        %v2319 = vmul.f32 1.0, %v2318
        %v2320 = vxor.u32 %v2311, 2147483648
        %v2321 = vmul.f32 %v2320, 1.442695
        %v2322 = vpow.pop %v2321
        %v2323 = vadd.f32 %v2322, 1.0
        %v2324 = vrcp.pop %v2323
        %v2325 = vmul.f32 1.0, %v2324
        %v2326 = vtanh.pop %v2312
        %v2327 = vxor.u32 %v2313, 2147483648
        %v2328 = vmul.f32 %v2327, 1.442695
        %v2329 = vpow.pop %v2328
        %v2330 = vadd.f32 %v2329, 1.0
        %v2331 = vrcp.pop %v2330
        %v2332 = vmul.f32 1.0, %v2331
        %v2333 = vmul.f32 %v2325, %v2215
        %v2334 = vmul.f32 %v2319, %v2326
        %v2335 = vadd.f32 %v2333, %v2334
        %v2336 = vtanh.pop %v2335
        %v2337 = vmul.f32 %v2332, %v2336
        %s2338 = scalar_lea.vmem [#allocation2], 56
        %2339 = vst [vmem:[%s2338] sm:$0xff] %v2337
        %p2340 = scmp.eq.s32.totalorder %s30, 1
        // Predicated region
        $region93: #{tpu_custom_call.1} parent=59 // pred_check
          %p2341 = pneg %p2340
        $region94: #{tpu_custom_call.1} parent=59 // pred_check_branch
          %2343 = sbr.rel (%p2341) target = $region96
        $region95: #{tpu_custom_call.1} parent=59 // pred_region
          %v2344 = vld [vmem:[#allocation2] sm:$0xff]
          %v2345 = vld [vmem:[#allocation2 + $0x8] sm:$0xff]
          %v2346 = vld [vmem:[#allocation2 + $0x10] sm:$0xff]
          %v2347 = vld [vmem:[#allocation2 + $0x18] sm:$0xff]
          %v2348 = vld [vmem:[#allocation2 + $0x20] sm:$0xff]
          %v2349 = vld [vmem:[#allocation2 + $0x28] sm:$0xff]
          %v2350 = vld [vmem:[#allocation2 + $0x30] sm:$0xff]
          %v2351 = vld [vmem:[#allocation2 + $0x38] sm:$0xff]
          %v2352 = vpack.c.bf16 %v2345, %v2344
          %v2353 = vpack.c.bf16 %v2347, %v2346
          %v2354 = vpack.c.bf16 %v2349, %v2348
          %v2355 = vpack.c.bf16 %v2351, %v2350
          %v2356 = vld [vmem:[#allocation13] sm:$0xf]
          %v2357 = vld [vmem:[#allocation13 + $0x4] sm:$0xf]
          %v2358 = vld [vmem:[#allocation13 + $0x8] sm:$0xf]
          %v2359 = vld [vmem:[#allocation13 + $0xc] sm:$0xf]
          %v2360 = vld [vmem:[#allocation13 + $0x10] sm:$0xf]
          %v2361 = vld [vmem:[#allocation13 + $0x14] sm:$0xf]
          %v2362 = vld [vmem:[#allocation13 + $0x18] sm:$0xf]
          %v2363 = vld [vmem:[#allocation13 + $0x1c] sm:$0xf]
          %v2364 = vld [vmem:[#allocation13 + $0x20] sm:$0xf]
          %v2365 = vld [vmem:[#allocation13 + $0x24] sm:$0xf]
          %v2366 = vld [vmem:[#allocation13 + $0x28] sm:$0xf]
          %v2367 = vld [vmem:[#allocation13 + $0x2c] sm:$0xf]
          %v2368 = vld [vmem:[#allocation13 + $0x30] sm:$0xf]
          %v2369 = vld [vmem:[#allocation13 + $0x34] sm:$0xf]
          %v2370 = vld [vmem:[#allocation13 + $0x38] sm:$0xf]
          %v2371 = vld [vmem:[#allocation13 + $0x3c] sm:$0xf]
          %v2372 = vld [vmem:[%s9] sm:$0x1]
          %v2374 = vlaneseq
          %v2375 = vshrl.u32 %v2374, 7
          %v2376 = vsub.s32 0, %v2375
          %v2377 = vrot.slane %v2372, %v2376
          %v2395 = vunpack.c.l.b16 %v2356
          %v2396 = vunpack.c.l.b16 %v2357
          %v2397 = vunpack.c.l.b16 %v2358
          %v2398 = vunpack.c.l.b16 %v2359
          %v2399 = vunpack.c.l.b16 %v2360
          %v2400 = vunpack.c.l.b16 %v2361
          %v2401 = vunpack.c.l.b16 %v2362
          %v2402 = vunpack.c.l.b16 %v2363
          %v2403 = vunpack.c.l.b16 %v2364
          %v2404 = vunpack.c.l.b16 %v2365
          %v2405 = vunpack.c.l.b16 %v2366
          %v2406 = vunpack.c.l.b16 %v2367
          %v2407 = vunpack.c.l.b16 %v2368
          %v2408 = vunpack.c.l.b16 %v2369
          %v2409 = vunpack.c.l.b16 %v2370
          %v2410 = vunpack.c.l.b16 %v2371
          %v2411 = vpack.c.b16 %v2396, %v2395
          %v2412 = vpack.c.b16 %v2398, %v2397
          %v2413 = vpack.c.b16 %v2400, %v2399
          %v2414 = vpack.c.b16 %v2402, %v2401
          %v2415 = vpack.c.b16 %v2404, %v2403
          %v2416 = vpack.c.b16 %v2406, %v2405
          %v2417 = vpack.c.b16 %v2408, %v2407
          %v2418 = vpack.c.b16 %v2410, %v2409
          %2427 = vmatprep.subr.bf16.mxu0 0
          %2428 = vmatpush1.bf16.msra.mxu0 %v2411
          %2429 = vmatprep.subr.bf16.mxu0 0
          %2430 = vmatpush1.bf16.msra.mxu0 %v2412
          %2431 = vmatprep.subr.bf16.mxu0 0
          %2432 = vmatpush1.bf16.msra.mxu0 %v2413
          %2433 = vmatprep.subr.bf16.mxu0 0
          %2434 = vmatpush1.bf16.msra.mxu0 %v2414
          %2435 = vmatprep.subr.bf16.mxu0 0
          %2436 = vmatpush1.bf16.msra.mxu0 %v2415
          %2437 = vmatprep.subr.bf16.mxu0 0
          %2438 = vmatpush1.bf16.msra.mxu0 %v2416
          %2439 = vmatprep.subr.bf16.mxu0 0
          %2440 = vmatpush1.bf16.msra.mxu0 %v2417
          %2441 = vmatprep.subr.bf16.mxu0 0
          %2442 = vmatpush1.bf16.msra.mxu0 %v2418
          %2443 = vmatprep.subr.bf16.mxu0 0
          %2444 = vmatpush1.bf16.msra.mxu0 0
          %2445 = vmatprep.subr.bf16.mxu0 0
          %2446 = vmatpush1.bf16.msra.mxu0 0
          %2447 = vmatprep.subr.bf16.mxu0 0
          %2448 = vmatpush1.bf16.msra.mxu0 0
          %2449 = vmatprep.subr.bf16.mxu0 0
          %2450 = vmatpush1.bf16.msra.mxu0 0
          %2451 = vmatprep.subr.bf16.mxu0 0
          %2452 = vmatpush1.bf16.msra.mxu0 0
          %2453 = vmatprep.subr.bf16.mxu0 0
          %2454 = vmatpush1.bf16.msra.mxu0 0
          %2455 = vmatprep.subr.bf16.mxu0 0
          %2456 = vmatpush1.bf16.msra.mxu0 0
          %2457 = vmatprep.subr.bf16.mxu0 0
          %2458 = vmatpush1.bf16.msra.mxu0 0
          %2459 = vmatprep.mubr.bf16.mxu0 0
          %2460 = vmatmul.mubr.bf16.gmra.mrb[0].mxu0 %v2352
          %v2461 = vpop.f32.mrb[0].mxu0
          %v2462 = vadd.f32 %v2377, %v2461
          %v2463 = vpop.f32.mrb[0].mxu0
          %v2464 = vpop.f32.mrb[0].mxu0
          %v2465 = vadd.f32 %v2377, %v2464
          %v2466 = vpop.f32.mrb[0].mxu0
          %2467 = vmatprep.mubr.bf16.mxu0 0
          %2468 = vmatmul.mubr.bf16.gmra.mrb[0].mxu0 %v2353
          %v2469 = vpop.f32.mrb[0].mxu0
          %v2470 = vadd.f32 %v2377, %v2469
          %v2471 = vpop.f32.mrb[0].mxu0
          %v2472 = vpop.f32.mrb[0].mxu0
          %v2473 = vadd.f32 %v2377, %v2472
          %v2474 = vpop.f32.mrb[0].mxu0
          %2475 = vmatprep.mubr.bf16.mxu0 0
          %2476 = vmatmul.mubr.bf16.gmra.mrb[0].mxu0 %v2354
          %v2477 = vpop.f32.mrb[0].mxu0
          %v2478 = vadd.f32 %v2377, %v2477
          %v2479 = vpop.f32.mrb[0].mxu0
          %v2480 = vpop.f32.mrb[0].mxu0
          %v2481 = vadd.f32 %v2377, %v2480
          %v2482 = vpop.f32.mrb[0].mxu0
          %2483 = vmatprep.mubr.bf16.mxu0 0
          %2484 = vmatmul.mubr.bf16.gmra.mrb[0].mxu0 %v2355
          %v2485 = vpop.f32.mrb[0].mxu0
          %v2486 = vadd.f32 %v2377, %v2485
          %v2487 = vpop.f32.mrb[0].mxu0
          %v2488 = vpop.f32.mrb[0].mxu0
          %v2489 = vadd.f32 %v2377, %v2488
          %v2490 = vpop.f32.mrb[0].mxu0
          %2491 = vdwg.mxu0
          %2492 = vst [vmem:[#allocation14] sm:$0xff] %v2462
          %2493 = vst [vmem:[#allocation14 + $0x8] sm:$0xff] %v2465
          %2494 = vst [vmem:[#allocation14 + $0x10] sm:$0xff] %v2470
          %2495 = vst [vmem:[#allocation14 + $0x18] sm:$0xff] %v2473
          %2496 = vst [vmem:[#allocation14 + $0x20] sm:$0xff] %v2478
          %2497 = vst [vmem:[#allocation14 + $0x28] sm:$0xff] %v2481
          %2498 = vst [vmem:[#allocation14 + $0x30] sm:$0xff] %v2486
          %2499 = vst [vmem:[#allocation14 + $0x38] sm:$0xff] %v2489
        $region96: #{tpu_custom_call.1} parent=59 // pred_fallthru
          _
        %2500 = vst [vmem:[%s590] sm:$0xff] %v2337
        %2501 = vst [vmem:[%s597] sm:$0xff] %v2335
        %s2502 = sand.u32 %s30, 1
        %s2503 = scalar_lea.sflag [#allocation16], %s2502
        %s2504 = sand.u32 %s294, 1
        %s2505 = smul.addr %s2504, 8
        %s2506 = scalar_lea.vmem [#allocation15], %s2505
        %s2507 = sand.u32 %s30, 1
        %s2508 = scalar_lea.sflag [#allocation16], %s2507
        %s2509 = sand.u32 %s320, 1
        %s2510 = smul.addr %s2509, 8
        %s2511 = scalar_lea.vmem [#allocation17], %s2510
        // Predicated region
        $region97: #{tpu_custom_call.1} parent=59 // pred_check
          %p2512 = pneg %p278
        $region98: #{tpu_custom_call.1} parent=59 // pred_check_branch
          %2514 = sbr.rel (%p2512) target = $region100
        $region99: #{tpu_custom_call.1} parent=59 // pred_region
          %s2516 = ssub.s32 1024, 1024
          %2517 = vsyncadd [#allocation6], %s2516
          %s2518 = sshll.u32 [#allocation14], 4
          %s2519 = int_to_ptr.vmem [resolvable:$true] %s2518
          %2524 = dma.vmem_to_hbm [thread:$0]  %s2519, 1024, %s10, [#allocation6], 128, 128, 8
        $region100: #{tpu_custom_call.1} parent=59 // pred_fallthru
          _
        // Predicated region
        $region101: #{tpu_custom_call.1} parent=59 // pred_check
          %p2525 = pneg %p304
        $region102: #{tpu_custom_call.1} parent=59 // pred_check_branch
          %2527 = sbr.rel (%p2525) target = $region104
        $region103: #{tpu_custom_call.1} parent=59 // pred_region
          %s2529 = ssub.s32 128, 128
          %2530 = vsyncadd %s2503, %s2529
          %s2531 = smul.addr %s30, 128
          %s2532 = scalar_lea.hbm %s11, %s2531
          %s2534 = sshll.u32 %s2506, 4
          %s2535 = int_to_ptr.vmem [resolvable:$true] %s2534
          %2537 = dma.vmem_to_hbm [thread:$0]  %s2535, 128, %s2532, %s2503
        $region104: #{tpu_custom_call.1} parent=59 // pred_fallthru
          _
        // Predicated region
        $region105: #{tpu_custom_call.1} parent=59 // pred_check
          %p2538 = pneg %p330
        $region106: #{tpu_custom_call.1} parent=59 // pred_check_branch
          %2540 = sbr.rel (%p2538) target = $region108
        $region107: #{tpu_custom_call.1} parent=59 // pred_region
          %s2542 = ssub.s32 128, 128
          %2543 = vsyncadd %s2508, %s2542
          %s2544 = smul.addr %s30, 128
          %s2545 = scalar_lea.hbm %s12, %s2544
          %s2547 = sshll.u32 %s2511, 4
          %s2548 = int_to_ptr.vmem [resolvable:$true] %s2547
          %2550 = dma.vmem_to_hbm [thread:$0]  %s2548, 128, %s2545, %s2508
        $region108: #{tpu_custom_call.1} parent=59 // pred_fallthru
          _
        // Predicated region
        $region109: #{tpu_custom_call.1} parent=59 // pred_check
          %p2551 = pneg %p278
        $region110: #{tpu_custom_call.1} parent=59 // pred_check_branch
          %2553 = sbr.rel (%p2551) target = $region112
        $region111: #{tpu_custom_call.1} parent=59 // pred_region
          %2554 = dma.done [#allocation6], 1024
        $region112: #{tpu_custom_call.1} parent=59 // pred_fallthru
          _
      $region60: #{tpu_custom_call.1} parent=5 // pred_fallthru
        _
      %p2555 = scmp.le.s32.totalorder 2, %s25
      // Predicated region
      $region113: #{tpu_custom_call.1} parent=5 // pred_check
        %p2556 = pneg %p2555
      $region114: #{tpu_custom_call.1} parent=5 // pred_check_branch
        %2558 = sbr.rel (%p2556) target = $region116
      $region115: #{tpu_custom_call.1} parent=5 // pred_region
        %s2559 = ssub.s32 %s25, 2
        // Predicated region
        $region117: #{tpu_custom_call.1} parent=115 // pred_check
          %p2560 = pneg %p310
        $region118: #{tpu_custom_call.1} parent=115 // pred_check_branch
          %2562 = sbr.rel (%p2560) target = $region120
        $region119: #{tpu_custom_call.1} parent=115 // pred_region
          %s2563 = sand.u32 %s31, 1
          %s2564 = scalar_lea.sflag [#allocation16], %s2563
          %s2565 = sand.u32 %s295, 1
          %s2566 = smul.addr %s2565, 8
          %s2567 = scalar_lea.vmem [#allocation15], %s2566
          %2568 = dma.done %s2564, 128
        $region120: #{tpu_custom_call.1} parent=115 // pred_fallthru
          _
        // Predicated region
        $region121: #{tpu_custom_call.1} parent=115 // pred_check
          %p2569 = pneg %p336
        $region122: #{tpu_custom_call.1} parent=115 // pred_check_branch
          %2571 = sbr.rel (%p2569) target = $region124
        $region123: #{tpu_custom_call.1} parent=115 // pred_region
          %s2572 = sand.u32 %s31, 1
          %s2573 = scalar_lea.sflag [#allocation16], %s2572
          %s2574 = sand.u32 %s321, 1
          %s2575 = smul.addr %s2574, 8
          %s2576 = scalar_lea.vmem [#allocation17], %s2575
          %2577 = dma.done %s2573, 128
        $region124: #{tpu_custom_call.1} parent=115 // pred_fallthru
          _
      $region116: #{tpu_custom_call.1} parent=5 // pred_fallthru
        _
    $region6: #{tpu_custom_call.1} parent=1 // loop_footer
      %s29 = sadd.s32 1, %s25
    $region7: #{tpu_custom_call.1} parent=1 // loop_footer_branch
      %24 = sbr.rel target = $region3
    $region8: #{tpu_custom_call.1} parent=1 // loop_exit
      _
    %2578 = vsyncpa [#allocation5], 1
    %s2579 = scalar_lea.sflag [#allocation5], 1
    %2580 = vsyncpa %s2579, 1
    %2581 = vsyncpa [#allocation8], 1
    %2582 = vsyncpa [#allocation6], 1
    %s2583 = scalar_lea.sflag [#allocation6], 1
    %2584 = vsyncpa %s2583, 1
    %2585 = vsyncpa [#allocation16], 1
    %s2586 = scalar_lea.sflag [#allocation16], 1
    %2587 = vsyncpa %s2586, 1

</llo_original>
